<compile_context>
chip_gen: v7x
topology: tpu7x:2x2x1
jax: 0.10.0
libtpu: 0.0.40
codegen_flags: <defaults>
</compile_context>

<pallas_src>
import math

import jax
import jax.numpy as jnp
from jax import lax
from jax.experimental import pallas as pl
from jax.experimental.pallas import tpu as pltpu

# ----------------------------- model hyper-params ---------------------------
N = 16          # number of graph nodes (= transformer sequence length, batch=1)
NFEAT = 8
NHID = 32
NCLASS = 4
NHEAD = 4
NLAYERS = 4
DFF = 2048      # PyTorch TransformerEncoderLayer default dim_feedforward
FFN_CHUNK = 512
LN_EPS = 1e-5   # PyTorch LayerNorm default eps
HD = NHID // NHEAD


def _gelu_exact(x):
    # matches torch.nn.functional.gelu (erf form)
    return 0.5 * x * (1.0 + lax.erf(x * (1.0 / math.sqrt(2.0))))


def _layernorm(x, gamma, beta):
    mu = jnp.mean(x, axis=-1, keepdims=True)
    var = jnp.maximum(jnp.mean(x * x, axis=-1, keepdims=True) - mu * mu, 0.0)
    return (x - mu) * lax.rsqrt(var + LN_EPS) * gamma + beta


# ------------------------------ fused forward kernel ------------------------
def _transgcn_kernel(x_ref, adj_ref,
                     gc1w_ref, gc1b_ref, gc2w_ref, gc2b_ref, gc4w_ref, gc4b_ref,
                     wqkv_ref, bqkv_ref, wo_ref, vec_ref, w1_ref, b1_ref, w2_ref,
                     o_ref, h_ref):
    l = pl.program_id(0)

    # ---- prologue (layer 0 only): gc1 + GELU, gc2 + GELU ----
    @pl.when(l == 0)
    def _():
        adj = adj_ref[...]
        h = jnp.dot(x_ref[...], gc1w_ref[...], preferred_element_type=jnp.float32)
        h = jnp.dot(adj, h, preferred_element_type=jnp.float32) + gc1b_ref[...]
        h = _gelu_exact(h)
        # TODO(synk): F.dropout(p=self.dropout) is identity in eval mode.
        h = jnp.dot(h, gc2w_ref[...], preferred_element_type=jnp.float32)
        h = jnp.dot(adj, h, preferred_element_type=jnp.float32) + gc2b_ref[...]
        h_ref[...] = _gelu_exact(h)

    # ---- transformer encoder layer l (post-norm, norm_first=False default) ----
    h = h_ref[...]                                                   # (N, d)

    # fused QKV projection; 1/sqrt(head_dim) is folded into Wq / bq host-side
    qkv = jnp.dot(h, wqkv_ref[...], preferred_element_type=jnp.float32) + bqkv_ref[...]

    ctxs = []
    for hh in range(NHEAD):                                          # static unroll
        q = qkv[:, hh * HD:(hh + 1) * HD]
        k = qkv[:, NHID + hh * HD: NHID + (hh + 1) * HD]
        v = qkv[:, 2 * NHID + hh * HD: 2 * NHID + (hh + 1) * HD]
        s = lax.dot_general(q, k, (((1,), (1,)), ((), ())),
                            preferred_element_type=jnp.float32)      # (N, N)
        s = s - jnp.max(s, axis=-1, keepdims=True)
        p = jnp.exp(s)
        p = p * pl.reciprocal(jnp.sum(p, axis=-1, keepdims=True), approx=True)
        ctxs.append(jnp.dot(p, v, preferred_element_type=jnp.float32))   # (N, hd)
    ctx = jnp.concatenate(ctxs, axis=-1)                             # (N, d)
    attn = (jnp.dot(ctx, wo_ref[...], preferred_element_type=jnp.float32)
            + vec_ref[0:1, :])                                       # + out_proj bias
    # TODO(synk): attention / residual dropout (p=0.1) is identity in eval mode.

    # residual + LayerNorm 1
    h1 = _layernorm(h + attn, vec_ref[1:2, :], vec_ref[2:3, :])

    # feed-forward, tiled over DFF so the (N, DFF) intermediate never materializes
    h1_bf = h1.astype(jnp.bfloat16)
    acc = jnp.zeros((N, NHID), jnp.float32)
    for c in range(DFF // FFN_CHUNK):                                # static unroll
        lo = c * FFN_CHUNK
        f = jnp.dot(h1_bf, w1_ref[:, lo:lo + FFN_CHUNK],
                    preferred_element_type=jnp.float32)
        f = jnp.maximum(f + b1_ref[0:1, lo:lo + FFN_CHUNK], 0.0)     # bias+ReLU in f32
        acc = acc + jnp.dot(f.astype(jnp.bfloat16), w2_ref[lo:lo + FFN_CHUNK, :],
                            preferred_element_type=jnp.float32)
    ffn = acc + vec_ref[3:4, :]                                      # linear2 bias

    # residual + LayerNorm 2
    h_new = _layernorm(h1 + ffn, vec_ref[4:5, :], vec_ref[5:6, :])
    h_ref[...] = h_new

    # ---- epilogue (last layer only): gc4 + log_softmax(dim=1) ----
    @pl.when(l == pl.num_programs(0) - 1)
    def _():
        adj = adj_ref[...]
        out = jnp.dot(h_new, gc4w_ref[...], preferred_element_type=jnp.float32)
        out = jnp.dot(adj, out, preferred_element_type=jnp.float32) + gc4b_ref[...]
        z = out - jnp.max(out, axis=-1, keepdims=True)
        lse = jnp.log(jnp.sum(jnp.exp(z), axis=-1, keepdims=True))
        o_ref[...] = (z - lse).astype(o_ref.dtype)


@jax.jit
def transgcn_forward(x, adj, packed):
    n = x.shape[0]
    args = (x, adj,
            packed["gc1_w"], packed["gc1_b"],
            packed["gc2_w"], packed["gc2_b"],
            packed["gc4_w"], packed["gc4_b"],
            packed["wqkv"], packed["bqkv"], packed["wo"], packed["vecs"],
            packed["w1"], packed["b1"], packed["w2"])

    grid_spec = pltpu.PrefetchScalarGridSpec(
        num_scalar_prefetch=0,
        grid=(NLAYERS,),
        in_specs=[
            # resident (constant index) small blocks
            pl.BlockSpec((n, NFEAT), lambda l: (0, 0)),
            pl.BlockSpec((n, n), lambda l: (0, 0)),
            pl.BlockSpec((NFEAT, NHID), lambda l: (0, 0)),
            pl.BlockSpec((1, NHID), lambda l: (0, 0)),
            pl.BlockSpec((NHID, NHID), lambda l: (0, 0)),
            pl.BlockSpec((1, NHID), lambda l: (0, 0)),
            pl.BlockSpec((NHID, NCLASS), lambda l: (0, 0)),
            pl.BlockSpec((1, NCLASS), lambda l: (0, 0)),
            # per-layer pipelined weight blocks
            pl.BlockSpec((None, NHID, 3 * NHID), lambda l: (l, 0, 0)),
            pl.BlockSpec((None, 1, 3 * NHID), lambda l: (l, 0, 0)),
            pl.BlockSpec((None, NHID, NHID), lambda l: (l, 0, 0)),
            pl.BlockSpec((None, 6, NHID), lambda l: (l, 0, 0)),
            pl.BlockSpec((None, NHID, DFF), lambda l: (l, 0, 0)),
            pl.BlockSpec((None, 1, DFF), lambda l: (l, 0, 0)),
            pl.BlockSpec((None, DFF, NHID), lambda l: (l, 0, 0)),
        ],
        out_specs=pl.BlockSpec((n, NCLASS), lambda l: (0, 0)),
        scratch_shapes=[pltpu.VMEM((n, NHID), jnp.float32)],   # h carried across layers
    )
    return pl.pallas_call(
        _transgcn_kernel,
        out_shape=jax.ShapeDtypeStruct((n, NCLASS), jnp.float32),
        grid_spec=grid_spec,
        compiler_params=pltpu.CompilerParams(dimension_semantics=("arbitrary",)),
    )(*args)


# ------------------------------- parameter init -----------------------------
def init_params(key):
    """Parameters in PyTorch conventions (Linear weight = (out, in))."""
    def nrm(k, shape, scale=0.05):
        return scale * jax.random.normal(k, shape, dtype=jnp.float32)

    keys = iter(jax.random.split(key, 8 + NLAYERS))
    params = {
        "gc1_w": nrm(next(keys), (NFEAT, NHID)),  "gc1_b": nrm(next(keys), (NHID,)),
        "gc2_w": nrm(next(keys), (NHID, NHID)),   "gc2_b": nrm(next(keys), (NHID,)),
        "gc4_w": nrm(next(keys), (NHID, NCLASS)), "gc4_b": nrm(next(keys), (NCLASS,)),
        "layers": [],
    }
    for _ in range(NLAYERS):
        lk = jax.random.split(next(keys), 8)
        params["layers"].append({
            "in_proj_w": nrm(lk[0], (3 * NHID, NHID)),  # rows: [Wq; Wk; Wv]
            "in_proj_b": nrm(lk[1], (3 * NHID,)),
            "out_proj_w": nrm(lk[2], (NHID, NHID)),
            "out_proj_b": nrm(lk[3], (NHID,)),
            "linear1_w": nrm(lk[4], (DFF, NHID)),  "linear1_b": nrm(lk[5], (DFF,)),
            "linear2_w": nrm(lk[6], (NHID, DFF)),  "linear2_b": nrm(lk[7], (NHID,)),
            "ln1_g": jnp.ones((NHID,), jnp.float32), "ln1_b": jnp.zeros((NHID,), jnp.float32),
            "ln2_g": jnp.ones((NHID,), jnp.float32), "ln2_b": jnp.zeros((NHID,), jnp.float32),
        })
    return params


def pack_params(params):
    """Repack PyTorch-convention params into the fused kernel's lane-dense layout."""
    scale = 1.0 / math.sqrt(HD)
    wqkv, bqkv, wo, vecs, w1, b1, w2 = ([] for _ in range(7))
    for lp in params["layers"]:
        ipw, ipb = lp["in_proj_w"], lp["in_proj_b"]
        Wq, Wk, Wv = ipw[:NHID], ipw[NHID:2 * NHID], ipw[2 * NHID:]
        bq, bk, bv = ipb[:NHID], ipb[NHID:2 * NHID], ipb[2 * NHID:]
        # x @ [Wq.T*scale | Wk.T | Wv.T] -> (N, 3d); head h owns lanes h*HD:(h+1)*HD
        wqkv.append(jnp.concatenate([Wq.T * scale, Wk.T, Wv.T], axis=1))   # (d, 3d)
        bqkv.append(jnp.concatenate([bq * scale, bk, bv]).reshape(1, -1))  # (1, 3d)
        # attn_out = concat_h(ctx_h) @ Wo.T + bo  (head-concat order matches PyTorch)
        wo.append(lp["out_proj_w"].T)                                      # (d, d)
        vecs.append(jnp.stack([lp["out_proj_b"], lp["ln1_g"], lp["ln1_b"],
                               lp["linear2_b"], lp["ln2_g"], lp["ln2_b"]]))  # (6, d)
        w1.append(lp["linear1_w"].T.astype(jnp.bfloat16))                  # (d, dff)
        b1.append(lp["linear1_b"].reshape(1, -1))                          # (1, dff)
        w2.append(lp["linear2_w"].T.astype(jnp.bfloat16))                  # (dff, d)
    return {
        "gc1_w": params["gc1_w"], "gc1_b": params["gc1_b"].reshape(1, -1),
        "gc2_w": params["gc2_w"], "gc2_b": params["gc2_b"].reshape(1, -1),
        "gc4_w": params["gc4_w"], "gc4_b": params["gc4_b"].reshape(1, -1),
        "wqkv": jnp.stack(wqkv), "bqkv": jnp.stack(bqkv), "wo": jnp.stack(wo),
        "vecs": jnp.stack(vecs),
        "w1": jnp.stack(w1), "b1": jnp.stack(b1), "w2": jnp.stack(w2),
    }


# ----------------------------------- main ------------------------------------
if __name__ == "__main__":
    key = jax.random.PRNGKey(0)
    k_x, k_a, k_p = jax.random.split(key, 3)

    x = jax.random.normal(k_x, (N, NFEAT), dtype=jnp.float32)

    # deterministic normalized adjacency: symmetric + self-loops, row-normalized
    a = jax.random.uniform(k_a, (N, N), dtype=jnp.float32)
    a = 0.5 * (a + a.T) + jnp.eye(N, dtype=jnp.float32)
    adj = a / jnp.sum(a, axis=1, keepdims=True)

    params = init_params(k_p)
    packed = pack_params(params)

    out = transgcn_forward(x, adj, packed)
    out = jax.block_until_ready(out)

    assert out.shape == (N, NCLASS)
    # sanity: rows of log_softmax should exp-sum to ~1
    assert bool(jnp.all(jnp.abs(jnp.sum(jnp.exp(out), axis=1) - 1.0) < 1e-3))
    print("KERNEL_OK")
</pallas_src>

<mosaic_0001>
module attributes {stable_mosaic.version = 11 : i64} {
  func.func @_transgcn_kernel(%arg0: i32, %arg1: memref<16x8xf32, #tpu.memory_space<vmem>>, %arg2: memref<16x16xf32, #tpu.memory_space<vmem>>, %arg3: memref<8x32xf32, #tpu.memory_space<vmem>>, %arg4: memref<1x32xf32, #tpu.memory_space<vmem>>, %arg5: memref<32x32xf32, #tpu.memory_space<vmem>>, %arg6: memref<1x32xf32, #tpu.memory_space<vmem>>, %arg7: memref<32x4xf32, #tpu.memory_space<vmem>>, %arg8: memref<1x4xf32, #tpu.memory_space<vmem>>, %arg9: memref<1x32x96xf32, #tpu.memory_space<vmem>>, %arg10: memref<1x1x96xf32, #tpu.memory_space<vmem>>, %arg11: memref<1x32x32xf32, #tpu.memory_space<vmem>>, %arg12: memref<1x6x32xf32, #tpu.memory_space<vmem>>, %arg13: memref<1x32x2048xbf16, #tpu.memory_space<vmem>>, %arg14: memref<1x1x2048xf32, #tpu.memory_space<vmem>>, %arg15: memref<1x2048x32xbf16, #tpu.memory_space<vmem>>, %arg16: memref<16x4xf32, #tpu.memory_space<vmem>>, %arg17: memref<16x32xf32, #tpu.memory_space<vmem>>) attributes {dimension_semantics = [#tpu.dimension_semantics<arbitrary>], iteration_bounds = array<i64: 4>, scalar_prefetch = 0 : i64, scratch_operands = 1 : i64, tpu.core_type = #tpu.core_type<tc>, window_params = [{pipeline_mode = #tpu.pipeline_mode<synchronous>, transform_indices = @transform_0, window_bounds = array<i64: 16, 8>}, {pipeline_mode = #tpu.pipeline_mode<synchronous>, transform_indices = @transform_1, window_bounds = array<i64: 16, 16>}, {pipeline_mode = #tpu.pipeline_mode<synchronous>, transform_indices = @transform_2, window_bounds = array<i64: 8, 32>}, {pipeline_mode = #tpu.pipeline_mode<synchronous>, transform_indices = @transform_3, window_bounds = array<i64: 1, 32>}, {pipeline_mode = #tpu.pipeline_mode<synchronous>, transform_indices = @transform_4, window_bounds = array<i64: 32, 32>}, {pipeline_mode = #tpu.pipeline_mode<synchronous>, transform_indices = @transform_5, window_bounds = array<i64: 1, 32>}, {pipeline_mode = #tpu.pipeline_mode<synchronous>, transform_indices = @transform_6, window_bounds = array<i64: 32, 4>}, {pipeline_mode = #tpu.pipeline_mode<synchronous>, transform_indices = @transform_7, window_bounds = array<i64: 1, 4>}, {transform_indices = @transform_8, window_bounds = array<i64: 1, 32, 96>}, {transform_indices = @transform_9, window_bounds = array<i64: 1, 1, 96>}, {transform_indices = @transform_10, window_bounds = array<i64: 1, 32, 32>}, {transform_indices = @transform_11, window_bounds = array<i64: 1, 6, 32>}, {transform_indices = @transform_12, window_bounds = array<i64: 1, 32, 2048>}, {transform_indices = @transform_13, window_bounds = array<i64: 1, 1, 2048>}, {transform_indices = @transform_14, window_bounds = array<i64: 1, 2048, 32>}, {pipeline_mode = #tpu.pipeline_mode<synchronous>, transform_indices = @transform_15, window_bounds = array<i64: 16, 4>}]} {
    %c0_i32 = arith.constant 0 : i32
    %0 = arith.cmpi eq, %arg0, %c0_i32 : i32
    %1 = arith.extui %0 : i1 to i32
    %c0_i32_0 = arith.constant 0 : i32
    %2 = arith.cmpi ne, %1, %c0_i32_0 : i32
    scf.if %2 {
      %c0_102 = arith.constant 0 : index
      %c0_103 = arith.constant 0 : index
      %203 = vector.load %arg2[%c0_102, %c0_103] : memref<16x16xf32, #tpu.memory_space<vmem>>, vector<16x16xf32>
      %c0_104 = arith.constant 0 : index
      %c0_105 = arith.constant 0 : index
      %204 = vector.load %arg1[%c0_104, %c0_105] : memref<16x8xf32, #tpu.memory_space<vmem>>, vector<16x8xf32>
      %c0_106 = arith.constant 0 : index
      %c0_107 = arith.constant 0 : index
      %205 = vector.load %arg3[%c0_106, %c0_107] : memref<8x32xf32, #tpu.memory_space<vmem>>, vector<8x32xf32>
      %cst_108 = arith.constant dense<0.000000e+00> : vector<16x32xf32>
      %206 = tpu.matmul %204, %205, %cst_108 {dimension_numbers = #tpu.dot_dimension_numbers<[1], [0], [0], [1], [0, 0, 1, 1], [], []>} : vector<16x8xf32>, vector<8x32xf32>, vector<16x32xf32> -> vector<16x32xf32>
      %cst_109 = arith.constant dense<0.000000e+00> : vector<16x32xf32>
      %207 = tpu.matmul %203, %206, %cst_109 {dimension_numbers = #tpu.dot_dimension_numbers<[1], [0], [0], [1], [0, 0, 1, 1], [], []>} : vector<16x16xf32>, vector<16x32xf32>, vector<16x32xf32> -> vector<16x32xf32>
      %c0_110 = arith.constant 0 : index
      %c0_111 = arith.constant 0 : index
      %208 = vector.load %arg4[%c0_110, %c0_111] : memref<1x32xf32, #tpu.memory_space<vmem>>, vector<1x32xf32>
      %209 = vector.broadcast %208 : vector<1x32xf32> to vector<16x32xf32>
      %210 = arith.addf %207, %209 : vector<16x32xf32>
      %cst_112 = arith.constant 5.000000e-01 : f32
      %211 = vector.broadcast %cst_112 : f32 to vector<16x32xf32>
      %212 = arith.mulf %211, %210 : vector<16x32xf32>
      %cst_113 = arith.constant 0.707106769 : f32
      %213 = vector.broadcast %cst_113 : f32 to vector<16x32xf32>
      %214 = arith.mulf %210, %213 : vector<16x32xf32>
      %215 = math.erf %214 : vector<16x32xf32>
      %cst_114 = arith.constant 1.000000e+00 : f32
      %216 = vector.broadcast %cst_114 : f32 to vector<16x32xf32>
      %217 = arith.addf %216, %215 : vector<16x32xf32>
      %218 = arith.mulf %212, %217 : vector<16x32xf32>
      %c0_115 = arith.constant 0 : index
      %c0_116 = arith.constant 0 : index
      %219 = vector.load %arg5[%c0_115, %c0_116] : memref<32x32xf32, #tpu.memory_space<vmem>>, vector<32x32xf32>
      %cst_117 = arith.constant dense<0.000000e+00> : vector<16x32xf32>
      %220 = tpu.matmul %218, %219, %cst_117 {dimension_numbers = #tpu.dot_dimension_numbers<[1], [0], [0], [1], [0, 0, 1, 1], [], []>} : vector<16x32xf32>, vector<32x32xf32>, vector<16x32xf32> -> vector<16x32xf32>
      %cst_118 = arith.constant dense<0.000000e+00> : vector<16x32xf32>
      %221 = tpu.matmul %203, %220, %cst_118 {dimension_numbers = #tpu.dot_dimension_numbers<[1], [0], [0], [1], [0, 0, 1, 1], [], []>} : vector<16x16xf32>, vector<16x32xf32>, vector<16x32xf32> -> vector<16x32xf32>
      %c0_119 = arith.constant 0 : index
      %c0_120 = arith.constant 0 : index
      %222 = vector.load %arg6[%c0_119, %c0_120] : memref<1x32xf32, #tpu.memory_space<vmem>>, vector<1x32xf32>
      %223 = vector.broadcast %222 : vector<1x32xf32> to vector<16x32xf32>
      %224 = arith.addf %221, %223 : vector<16x32xf32>
      %cst_121 = arith.constant 5.000000e-01 : f32
      %225 = vector.broadcast %cst_121 : f32 to vector<16x32xf32>
      %226 = arith.mulf %225, %224 : vector<16x32xf32>
      %cst_122 = arith.constant 0.707106769 : f32
      %227 = vector.broadcast %cst_122 : f32 to vector<16x32xf32>
      %228 = arith.mulf %224, %227 : vector<16x32xf32>
      %229 = math.erf %228 : vector<16x32xf32>
      %cst_123 = arith.constant 1.000000e+00 : f32
      %230 = vector.broadcast %cst_123 : f32 to vector<16x32xf32>
      %231 = arith.addf %230, %229 : vector<16x32xf32>
      %232 = arith.mulf %226, %231 : vector<16x32xf32>
      %c0_124 = arith.constant 0 : index
      %c0_125 = arith.constant 0 : index
      %233 = vector.load %arg17[%c0_124, %c0_125] : memref<16x32xf32, #tpu.memory_space<vmem>>, vector<16x32xf32>
      tpu.vector_store %arg17[%c0_124, %c0_125], %232 {strides = array<i32>} : memref<16x32xf32, #tpu.memory_space<vmem>>, vector<16x32xf32>,
    } else {
    }
    %c0 = arith.constant 0 : index
    %c0_1 = arith.constant 0 : index
    %3 = vector.load %arg17[%c0, %c0_1] : memref<16x32xf32, #tpu.memory_space<vmem>>, vector<16x32xf32>
    %c0_2 = arith.constant 0 : index
    %c0_3 = arith.constant 0 : index
    %c0_4 = arith.constant 0 : index
    %4 = vector.load %arg9[%c0_2, %c0_3, %c0_4] : memref<1x32x96xf32, #tpu.memory_space<vmem>>, vector<1x32x96xf32>
    %5 = vector.shape_cast %4 : vector<1x32x96xf32> to vector<32x96xf32>
    %cst = arith.constant dense<0.000000e+00> : vector<16x96xf32>
    %6 = tpu.matmul %3, %5, %cst {dimension_numbers = #tpu.dot_dimension_numbers<[1], [0], [0], [1], [0, 0, 1, 1], [], []>} : vector<16x32xf32>, vector<32x96xf32>, vector<16x96xf32> -> vector<16x96xf32>
    %c0_5 = arith.constant 0 : index
    %c0_6 = arith.constant 0 : index
    %c0_7 = arith.constant 0 : index
    %7 = vector.load %arg10[%c0_5, %c0_6, %c0_7] : memref<1x1x96xf32, #tpu.memory_space<vmem>>, vector<1x1x96xf32>
    %8 = vector.shape_cast %7 : vector<1x1x96xf32> to vector<1x96xf32>
    %9 = vector.broadcast %8 : vector<1x96xf32> to vector<16x96xf32>
    %10 = arith.addf %6, %9 : vector<16x96xf32>
    %11 = vector.extract_strided_slice %10 {offsets = [0, 0], sizes = [16, 8], strides = [1, 1]} : vector<16x96xf32> to vector<16x8xf32>
    %12 = vector.extract_strided_slice %10 {offsets = [0, 32], sizes = [16, 8], strides = [1, 1]} : vector<16x96xf32> to vector<16x8xf32>
    %13 = vector.extract_strided_slice %10 {offsets = [0, 64], sizes = [16, 8], strides = [1, 1]} : vector<16x96xf32> to vector<16x8xf32>
    %cst_8 = arith.constant dense<0.000000e+00> : vector<16x16xf32>
    %14 = tpu.matmul %11, %12, %cst_8 {dimension_numbers = #tpu.dot_dimension_numbers<[1], [1], [0], [0], [0, 0, 1, 0], [], []>} : vector<16x8xf32>, vector<16x8xf32>, vector<16x16xf32> -> vector<16x16xf32>
    %cst_9 = arith.constant dense<0xFF800000> : vector<16xf32>
    %15 = vector.multi_reduction <maximumf>, %14, %cst_9 [1] : vector<16x16xf32> to vector<16xf32>
    %16 = vector.shape_cast %15 : vector<16xf32> to vector<16x1xf32>
    %17 = vector.broadcast %16 : vector<16x1xf32> to vector<16x16xf32>
    %18 = arith.subf %14, %17 : vector<16x16xf32>
    %19 = math.exp %18 : vector<16x16xf32>
    %cst_10 = arith.constant dense<0.000000e+00> : vector<16xf32>
    %20 = vector.multi_reduction <add>, %19, %cst_10 [1] : vector<16x16xf32> to vector<16xf32>
    %21 = vector.shape_cast %20 : vector<16xf32> to vector<16x1xf32>
    %22 = tpu.reciprocal %21 {approx = true} : vector<16x1xf32> -> vector<16x1xf32>
    %23 = vector.broadcast %22 : vector<16x1xf32> to vector<16x16xf32>
    %24 = arith.mulf %19, %23 : vector<16x16xf32>
    %cst_11 = arith.constant dense<0.000000e+00> : vector<16x8xf32>
    %25 = tpu.matmul %24, %13, %cst_11 {dimension_numbers = #tpu.dot_dimension_numbers<[1], [0], [0], [1], [0, 0, 1, 1], [], []>} : vector<16x16xf32>, vector<16x8xf32>, vector<16x8xf32> -> vector<16x8xf32>
    %26 = vector.extract_strided_slice %10 {offsets = [0, 8], sizes = [16, 8], strides = [1, 1]} : vector<16x96xf32> to vector<16x8xf32>
    %27 = vector.extract_strided_slice %10 {offsets = [0, 40], sizes = [16, 8], strides = [1, 1]} : vector<16x96xf32> to vector<16x8xf32>
    %28 = vector.extract_strided_slice %10 {offsets = [0, 72], sizes = [16, 8], strides = [1, 1]} : vector<16x96xf32> to vector<16x8xf32>
    %cst_12 = arith.constant dense<0.000000e+00> : vector<16x16xf32>
    %29 = tpu.matmul %26, %27, %cst_12 {dimension_numbers = #tpu.dot_dimension_numbers<[1], [1], [0], [0], [0, 0, 1, 0], [], []>} : vector<16x8xf32>, vector<16x8xf32>, vector<16x16xf32> -> vector<16x16xf32>
    %cst_13 = arith.constant dense<0xFF800000> : vector<16xf32>
    %30 = vector.multi_reduction <maximumf>, %29, %cst_13 [1] : vector<16x16xf32> to vector<16xf32>
    %31 = vector.shape_cast %30 : vector<16xf32> to vector<16x1xf32>
    %32 = vector.broadcast %31 : vector<16x1xf32> to vector<16x16xf32>
    %33 = arith.subf %29, %32 : vector<16x16xf32>
    %34 = math.exp %33 : vector<16x16xf32>
    %cst_14 = arith.constant dense<0.000000e+00> : vector<16xf32>
    %35 = vector.multi_reduction <add>, %34, %cst_14 [1] : vector<16x16xf32> to vector<16xf32>
    %36 = vector.shape_cast %35 : vector<16xf32> to vector<16x1xf32>
    %37 = tpu.reciprocal %36 {approx = true} : vector<16x1xf32> -> vector<16x1xf32>
    %38 = vector.broadcast %37 : vector<16x1xf32> to vector<16x16xf32>
    %39 = arith.mulf %34, %38 : vector<16x16xf32>
    %cst_15 = arith.constant dense<0.000000e+00> : vector<16x8xf32>
    %40 = tpu.matmul %39, %28, %cst_15 {dimension_numbers = #tpu.dot_dimension_numbers<[1], [0], [0], [1], [0, 0, 1, 1], [], []>} : vector<16x16xf32>, vector<16x8xf32>, vector<16x8xf32> -> vector<16x8xf32>
    %41 = vector.extract_strided_slice %10 {offsets = [0, 16], sizes = [16, 8], strides = [1, 1]} : vector<16x96xf32> to vector<16x8xf32>
    %42 = vector.extract_strided_slice %10 {offsets = [0, 48], sizes = [16, 8], strides = [1, 1]} : vector<16x96xf32> to vector<16x8xf32>
    %43 = vector.extract_strided_slice %10 {offsets = [0, 80], sizes = [16, 8], strides = [1, 1]} : vector<16x96xf32> to vector<16x8xf32>
    %cst_16 = arith.constant dense<0.000000e+00> : vector<16x16xf32>
    %44 = tpu.matmul %41, %42, %cst_16 {dimension_numbers = #tpu.dot_dimension_numbers<[1], [1], [0], [0], [0, 0, 1, 0], [], []>} : vector<16x8xf32>, vector<16x8xf32>, vector<16x16xf32> -> vector<16x16xf32>
    %cst_17 = arith.constant dense<0xFF800000> : vector<16xf32>
    %45 = vector.multi_reduction <maximumf>, %44, %cst_17 [1] : vector<16x16xf32> to vector<16xf32>
    %46 = vector.shape_cast %45 : vector<16xf32> to vector<16x1xf32>
    %47 = vector.broadcast %46 : vector<16x1xf32> to vector<16x16xf32>
    %48 = arith.subf %44, %47 : vector<16x16xf32>
    %49 = math.exp %48 : vector<16x16xf32>
    %cst_18 = arith.constant dense<0.000000e+00> : vector<16xf32>
    %50 = vector.multi_reduction <add>, %49, %cst_18 [1] : vector<16x16xf32> to vector<16xf32>
    %51 = vector.shape_cast %50 : vector<16xf32> to vector<16x1xf32>
    %52 = tpu.reciprocal %51 {approx = true} : vector<16x1xf32> -> vector<16x1xf32>
    %53 = vector.broadcast %52 : vector<16x1xf32> to vector<16x16xf32>
    %54 = arith.mulf %49, %53 : vector<16x16xf32>
    %cst_19 = arith.constant dense<0.000000e+00> : vector<16x8xf32>
    %55 = tpu.matmul %54, %43, %cst_19 {dimension_numbers = #tpu.dot_dimension_numbers<[1], [0], [0], [1], [0, 0, 1, 1], [], []>} : vector<16x16xf32>, vector<16x8xf32>, vector<16x8xf32> -> vector<16x8xf32>
    %56 = vector.extract_strided_slice %10 {offsets = [0, 24], sizes = [16, 8], strides = [1, 1]} : vector<16x96xf32> to vector<16x8xf32>
    %57 = vector.extract_strided_slice %10 {offsets = [0, 56], sizes = [16, 8], strides = [1, 1]} : vector<16x96xf32> to vector<16x8xf32>
    %58 = vector.extract_strided_slice %10 {offsets = [0, 88], sizes = [16, 8], strides = [1, 1]} : vector<16x96xf32> to vector<16x8xf32>
    %cst_20 = arith.constant dense<0.000000e+00> : vector<16x16xf32>
    %59 = tpu.matmul %56, %57, %cst_20 {dimension_numbers = #tpu.dot_dimension_numbers<[1], [1], [0], [0], [0, 0, 1, 0], [], []>} : vector<16x8xf32>, vector<16x8xf32>, vector<16x16xf32> -> vector<16x16xf32>
    %cst_21 = arith.constant dense<0xFF800000> : vector<16xf32>
    %60 = vector.multi_reduction <maximumf>, %59, %cst_21 [1] : vector<16x16xf32> to vector<16xf32>
    %61 = vector.shape_cast %60 : vector<16xf32> to vector<16x1xf32>
    %62 = vector.broadcast %61 : vector<16x1xf32> to vector<16x16xf32>
    %63 = arith.subf %59, %62 : vector<16x16xf32>
    %64 = math.exp %63 : vector<16x16xf32>
    %cst_22 = arith.constant dense<0.000000e+00> : vector<16xf32>
    %65 = vector.multi_reduction <add>, %64, %cst_22 [1] : vector<16x16xf32> to vector<16xf32>
    %66 = vector.shape_cast %65 : vector<16xf32> to vector<16x1xf32>
    %67 = tpu.reciprocal %66 {approx = true} : vector<16x1xf32> -> vector<16x1xf32>
    %68 = vector.broadcast %67 : vector<16x1xf32> to vector<16x16xf32>
    %69 = arith.mulf %64, %68 : vector<16x16xf32>
    %cst_23 = arith.constant dense<0.000000e+00> : vector<16x8xf32>
    %70 = tpu.matmul %69, %58, %cst_23 {dimension_numbers = #tpu.dot_dimension_numbers<[1], [0], [0], [1], [0, 0, 1, 1], [], []>} : vector<16x16xf32>, vector<16x8xf32>, vector<16x8xf32> -> vector<16x8xf32>
    %71 = tpu.concatenate %25, %40, %55, %70 in 1 : vector<16x8xf32>, vector<16x8xf32>, vector<16x8xf32>, vector<16x8xf32> -> vector<16x32xf32>
    %c0_24 = arith.constant 0 : index
    %c0_25 = arith.constant 0 : index
    %c0_26 = arith.constant 0 : index
    %72 = vector.load %arg11[%c0_24, %c0_25, %c0_26] : memref<1x32x32xf32, #tpu.memory_space<vmem>>, vector<1x32x32xf32>
    %73 = vector.shape_cast %72 : vector<1x32x32xf32> to vector<32x32xf32>
    %cst_27 = arith.constant dense<0.000000e+00> : vector<16x32xf32>
    %74 = tpu.matmul %71, %73, %cst_27 {dimension_numbers = #tpu.dot_dimension_numbers<[1], [0], [0], [1], [0, 0, 1, 1], [], []>} : vector<16x32xf32>, vector<32x32xf32>, vector<16x32xf32> -> vector<16x32xf32>
    %c0_28 = arith.constant 0 : index
    %c0_29 = arith.constant 0 : index
    %c0_30 = arith.constant 0 : index
    %75 = vector.load %arg12[%c0_28, %c0_29, %c0_30] : memref<1x6x32xf32, #tpu.memory_space<vmem>>, vector<1x1x32xf32>
    %76 = vector.shape_cast %75 : vector<1x1x32xf32> to vector<1x32xf32>
    %77 = vector.broadcast %76 : vector<1x32xf32> to vector<16x32xf32>
    %78 = arith.addf %74, %77 : vector<16x32xf32>
    %79 = arith.addf %3, %78 : vector<16x32xf32>
    %c0_31 = arith.constant 0 : index
    %c1 = arith.constant 1 : index
    %c0_32 = arith.constant 0 : index
    %80 = vector.load %arg12[%c0_31, %c1, %c0_32] : memref<1x6x32xf32, #tpu.memory_space<vmem>>, vector<1x1x32xf32>
    %81 = vector.shape_cast %80 : vector<1x1x32xf32> to vector<1x32xf32>
    %c0_33 = arith.constant 0 : index
    %c2 = arith.constant 2 : index
    %c0_34 = arith.constant 0 : index
    %82 = vector.load %arg12[%c0_33, %c2, %c0_34] : memref<1x6x32xf32, #tpu.memory_space<vmem>>, vector<1x1x32xf32>
    %83 = vector.shape_cast %82 : vector<1x1x32xf32> to vector<1x32xf32>
    %cst_35 = arith.constant dense<0.000000e+00> : vector<16xf32>
    %84 = vector.multi_reduction <add>, %79, %cst_35 [1] : vector<16x32xf32> to vector<16xf32>
    %85 = vector.shape_cast %84 : vector<16xf32> to vector<16x1xf32>
    %cst_36 = arith.constant 3.200000e+01 : f32
    %86 = vector.broadcast %cst_36 : f32 to vector<16x1xf32>
    %87 = arith.divf %85, %86 : vector<16x1xf32>
    %88 = arith.mulf %79, %79 : vector<16x32xf32>
    %cst_37 = arith.constant dense<0.000000e+00> : vector<16xf32>
    %89 = vector.multi_reduction <add>, %88, %cst_37 [1] : vector<16x32xf32> to vector<16xf32>
    %90 = vector.shape_cast %89 : vector<16xf32> to vector<16x1xf32>
    %cst_38 = arith.constant 3.200000e+01 : f32
    %91 = vector.broadcast %cst_38 : f32 to vector<16x1xf32>
    %92 = arith.divf %90, %91 : vector<16x1xf32>
    %93 = arith.mulf %87, %87 : vector<16x1xf32>
    %94 = arith.subf %92, %93 : vector<16x1xf32>
    %cst_39 = arith.constant 0.000000e+00 : f32
    %95 = vector.broadcast %cst_39 : f32 to vector<16x1xf32>
    %96 = arith.maximumf %94, %95 : vector<16x1xf32>
    %97 = vector.broadcast %87 : vector<16x1xf32> to vector<16x32xf32>
    %98 = arith.subf %79, %97 : vector<16x32xf32>
    %cst_40 = arith.constant 9.99999974E-6 : f32
    %99 = vector.broadcast %cst_40 : f32 to vector<16x1xf32>
    %100 = arith.addf %96, %99 : vector<16x1xf32>
    %101 = math.rsqrt %100 : vector<16x1xf32>
    %102 = vector.broadcast %101 : vector<16x1xf32> to vector<16x32xf32>
    %103 = arith.mulf %98, %102 : vector<16x32xf32>
    %104 = vector.broadcast %81 : vector<1x32xf32> to vector<16x32xf32>
    %105 = arith.mulf %103, %104 : vector<16x32xf32>
    %106 = vector.broadcast %83 : vector<1x32xf32> to vector<16x32xf32>
    %107 = arith.addf %105, %106 : vector<16x32xf32>
    %108 = arith.truncf %107 : vector<16x32xf32> to vector<16x32xbf16>
    %cst_41 = arith.constant 0.000000e+00 : f32
    %109 = vector.broadcast %cst_41 : f32 to vector<16x32xf32>
    %c0_42 = arith.constant 0 : index
    %c0_43 = arith.constant 0 : index
    %c0_44 = arith.constant 0 : index
    %110 = vector.load %arg13[%c0_42, %c0_43, %c0_44] : memref<1x32x2048xbf16, #tpu.memory_space<vmem>>, vector<1x32x512xbf16>
    %111 = vector.shape_cast %110 : vector<1x32x512xbf16> to vector<32x512xbf16>
    %cst_45 = arith.constant dense<0.000000e+00> : vector<16x512xf32>
    %112 = tpu.matmul %108, %111, %cst_45 {dimension_numbers = #tpu.dot_dimension_numbers<[1], [0], [0], [1], [0, 0, 1, 1], [], []>} : vector<16x32xbf16>, vector<32x512xbf16>, vector<16x512xf32> -> vector<16x512xf32>
    %c0_46 = arith.constant 0 : index
    %c0_47 = arith.constant 0 : index
    %c0_48 = arith.constant 0 : index
    %113 = vector.load %arg14[%c0_46, %c0_47, %c0_48] : memref<1x1x2048xf32, #tpu.memory_space<vmem>>, vector<1x1x512xf32>
    %114 = vector.shape_cast %113 : vector<1x1x512xf32> to vector<1x512xf32>
    %115 = vector.broadcast %114 : vector<1x512xf32> to vector<16x512xf32>
    %116 = arith.addf %112, %115 : vector<16x512xf32>
    %cst_49 = arith.constant 0.000000e+00 : f32
    %117 = vector.broadcast %cst_49 : f32 to vector<16x512xf32>
    %118 = arith.maximumf %116, %117 : vector<16x512xf32>
    %119 = arith.truncf %118 : vector<16x512xf32> to vector<16x512xbf16>
    %c0_50 = arith.constant 0 : index
    %c0_51 = arith.constant 0 : index
    %c0_52 = arith.constant 0 : index
    %120 = vector.load %arg15[%c0_50, %c0_51, %c0_52] : memref<1x2048x32xbf16, #tpu.memory_space<vmem>>, vector<1x512x32xbf16>
    %121 = vector.shape_cast %120 : vector<1x512x32xbf16> to vector<512x32xbf16>
    %cst_53 = arith.constant dense<0.000000e+00> : vector<16x32xf32>
    %122 = tpu.matmul %119, %121, %cst_53 {dimension_numbers = #tpu.dot_dimension_numbers<[1], [0], [0], [1], [0, 0, 1, 1], [], []>} : vector<16x512xbf16>, vector<512x32xbf16>, vector<16x32xf32> -> vector<16x32xf32>
    %123 = arith.addf %109, %122 : vector<16x32xf32>
    %c0_54 = arith.constant 0 : index
    %c0_55 = arith.constant 0 : index
    %c512 = arith.constant 512 : index
    %124 = vector.load %arg13[%c0_54, %c0_55, %c512] : memref<1x32x2048xbf16, #tpu.memory_space<vmem>>, vector<1x32x512xbf16>
    %125 = vector.shape_cast %124 : vector<1x32x512xbf16> to vector<32x512xbf16>
    %cst_56 = arith.constant dense<0.000000e+00> : vector<16x512xf32>
    %126 = tpu.matmul %108, %125, %cst_56 {dimension_numbers = #tpu.dot_dimension_numbers<[1], [0], [0], [1], [0, 0, 1, 1], [], []>} : vector<16x32xbf16>, vector<32x512xbf16>, vector<16x512xf32> -> vector<16x512xf32>
    %c0_57 = arith.constant 0 : index
    %c0_58 = arith.constant 0 : index
    %c512_59 = arith.constant 512 : index
    %127 = vector.load %arg14[%c0_57, %c0_58, %c512_59] : memref<1x1x2048xf32, #tpu.memory_space<vmem>>, vector<1x1x512xf32>
    %128 = vector.shape_cast %127 : vector<1x1x512xf32> to vector<1x512xf32>
    %129 = vector.broadcast %128 : vector<1x512xf32> to vector<16x512xf32>
    %130 = arith.addf %126, %129 : vector<16x512xf32>
    %cst_60 = arith.constant 0.000000e+00 : f32
    %131 = vector.broadcast %cst_60 : f32 to vector<16x512xf32>
    %132 = arith.maximumf %130, %131 : vector<16x512xf32>
    %133 = arith.truncf %132 : vector<16x512xf32> to vector<16x512xbf16>
    %c0_61 = arith.constant 0 : index
    %c512_62 = arith.constant 512 : index
    %c0_63 = arith.constant 0 : index
    %134 = vector.load %arg15[%c0_61, %c512_62, %c0_63] : memref<1x2048x32xbf16, #tpu.memory_space<vmem>>, vector<1x512x32xbf16>
    %135 = vector.shape_cast %134 : vector<1x512x32xbf16> to vector<512x32xbf16>
    %cst_64 = arith.constant dense<0.000000e+00> : vector<16x32xf32>
    %136 = tpu.matmul %133, %135, %cst_64 {dimension_numbers = #tpu.dot_dimension_numbers<[1], [0], [0], [1], [0, 0, 1, 1], [], []>} : vector<16x512xbf16>, vector<512x32xbf16>, vector<16x32xf32> -> vector<16x32xf32>
    %137 = arith.addf %123, %136 : vector<16x32xf32>
    %c0_65 = arith.constant 0 : index
    %c0_66 = arith.constant 0 : index
    %c1024 = arith.constant 1024 : index
    %138 = vector.load %arg13[%c0_65, %c0_66, %c1024] : memref<1x32x2048xbf16, #tpu.memory_space<vmem>>, vector<1x32x512xbf16>
    %139 = vector.shape_cast %138 : vector<1x32x512xbf16> to vector<32x512xbf16>
    %cst_67 = arith.constant dense<0.000000e+00> : vector<16x512xf32>
    %140 = tpu.matmul %108, %139, %cst_67 {dimension_numbers = #tpu.dot_dimension_numbers<[1], [0], [0], [1], [0, 0, 1, 1], [], []>} : vector<16x32xbf16>, vector<32x512xbf16>, vector<16x512xf32> -> vector<16x512xf32>
    %c0_68 = arith.constant 0 : index
    %c0_69 = arith.constant 0 : index
    %c1024_70 = arith.constant 1024 : index
    %141 = vector.load %arg14[%c0_68, %c0_69, %c1024_70] : memref<1x1x2048xf32, #tpu.memory_space<vmem>>, vector<1x1x512xf32>
    %142 = vector.shape_cast %141 : vector<1x1x512xf32> to vector<1x512xf32>
    %143 = vector.broadcast %142 : vector<1x512xf32> to vector<16x512xf32>
    %144 = arith.addf %140, %143 : vector<16x512xf32>
    %cst_71 = arith.constant 0.000000e+00 : f32
    %145 = vector.broadcast %cst_71 : f32 to vector<16x512xf32>
    %146 = arith.maximumf %144, %145 : vector<16x512xf32>
    %147 = arith.truncf %146 : vector<16x512xf32> to vector<16x512xbf16>
    %c0_72 = arith.constant 0 : index
    %c1024_73 = arith.constant 1024 : index
    %c0_74 = arith.constant 0 : index
    %148 = vector.load %arg15[%c0_72, %c1024_73, %c0_74] : memref<1x2048x32xbf16, #tpu.memory_space<vmem>>, vector<1x512x32xbf16>
    %149 = vector.shape_cast %148 : vector<1x512x32xbf16> to vector<512x32xbf16>
    %cst_75 = arith.constant dense<0.000000e+00> : vector<16x32xf32>
    %150 = tpu.matmul %147, %149, %cst_75 {dimension_numbers = #tpu.dot_dimension_numbers<[1], [0], [0], [1], [0, 0, 1, 1], [], []>} : vector<16x512xbf16>, vector<512x32xbf16>, vector<16x32xf32> -> vector<16x32xf32>
    %151 = arith.addf %137, %150 : vector<16x32xf32>
    %c0_76 = arith.constant 0 : index
    %c0_77 = arith.constant 0 : index
    %c1536 = arith.constant 1536 : index
    %152 = vector.load %arg13[%c0_76, %c0_77, %c1536] : memref<1x32x2048xbf16, #tpu.memory_space<vmem>>, vector<1x32x512xbf16>
    %153 = vector.shape_cast %152 : vector<1x32x512xbf16> to vector<32x512xbf16>
    %cst_78 = arith.constant dense<0.000000e+00> : vector<16x512xf32>
    %154 = tpu.matmul %108, %153, %cst_78 {dimension_numbers = #tpu.dot_dimension_numbers<[1], [0], [0], [1], [0, 0, 1, 1], [], []>} : vector<16x32xbf16>, vector<32x512xbf16>, vector<16x512xf32> -> vector<16x512xf32>
    %c0_79 = arith.constant 0 : index
    %c0_80 = arith.constant 0 : index
    %c1536_81 = arith.constant 1536 : index
    %155 = vector.load %arg14[%c0_79, %c0_80, %c1536_81] : memref<1x1x2048xf32, #tpu.memory_space<vmem>>, vector<1x1x512xf32>
    %156 = vector.shape_cast %155 : vector<1x1x512xf32> to vector<1x512xf32>
    %157 = vector.broadcast %156 : vector<1x512xf32> to vector<16x512xf32>
    %158 = arith.addf %154, %157 : vector<16x512xf32>
    %cst_82 = arith.constant 0.000000e+00 : f32
    %159 = vector.broadcast %cst_82 : f32 to vector<16x512xf32>
    %160 = arith.maximumf %158, %159 : vector<16x512xf32>
    %161 = arith.truncf %160 : vector<16x512xf32> to vector<16x512xbf16>
    %c0_83 = arith.constant 0 : index
    %c1536_84 = arith.constant 1536 : index
    %c0_85 = arith.constant 0 : index
    %162 = vector.load %arg15[%c0_83, %c1536_84, %c0_85] : memref<1x2048x32xbf16, #tpu.memory_space<vmem>>, vector<1x512x32xbf16>
    %163 = vector.shape_cast %162 : vector<1x512x32xbf16> to vector<512x32xbf16>
    %cst_86 = arith.constant dense<0.000000e+00> : vector<16x32xf32>
    %164 = tpu.matmul %161, %163, %cst_86 {dimension_numbers = #tpu.dot_dimension_numbers<[1], [0], [0], [1], [0, 0, 1, 1], [], []>} : vector<16x512xbf16>, vector<512x32xbf16>, vector<16x32xf32> -> vector<16x32xf32>
    %165 = arith.addf %151, %164 : vector<16x32xf32>
    %c0_87 = arith.constant 0 : index
    %c3 = arith.constant 3 : index
    %c0_88 = arith.constant 0 : index
    %166 = vector.load %arg12[%c0_87, %c3, %c0_88] : memref<1x6x32xf32, #tpu.memory_space<vmem>>, vector<1x1x32xf32>
    %167 = vector.shape_cast %166 : vector<1x1x32xf32> to vector<1x32xf32>
    %168 = vector.broadcast %167 : vector<1x32xf32> to vector<16x32xf32>
    %169 = arith.addf %165, %168 : vector<16x32xf32>
    %170 = arith.addf %107, %169 : vector<16x32xf32>
    %c0_89 = arith.constant 0 : index
    %c4 = arith.constant 4 : index
    %c0_90 = arith.constant 0 : index
    %171 = vector.load %arg12[%c0_89, %c4, %c0_90] : memref<1x6x32xf32, #tpu.memory_space<vmem>>, vector<1x1x32xf32>
    %172 = vector.shape_cast %171 : vector<1x1x32xf32> to vector<1x32xf32>
    %c0_91 = arith.constant 0 : index
    %c5 = arith.constant 5 : index
    %c0_92 = arith.constant 0 : index
    %173 = vector.load %arg12[%c0_91, %c5, %c0_92] : memref<1x6x32xf32, #tpu.memory_space<vmem>>, vector<1x1x32xf32>
    %174 = vector.shape_cast %173 : vector<1x1x32xf32> to vector<1x32xf32>
    %cst_93 = arith.constant dense<0.000000e+00> : vector<16xf32>
    %175 = vector.multi_reduction <add>, %170, %cst_93 [1] : vector<16x32xf32> to vector<16xf32>
    %176 = vector.shape_cast %175 : vector<16xf32> to vector<16x1xf32>
    %cst_94 = arith.constant 3.200000e+01 : f32
    %177 = vector.broadcast %cst_94 : f32 to vector<16x1xf32>
    %178 = arith.divf %176, %177 : vector<16x1xf32>
    %179 = arith.mulf %170, %170 : vector<16x32xf32>
    %cst_95 = arith.constant dense<0.000000e+00> : vector<16xf32>
    %180 = vector.multi_reduction <add>, %179, %cst_95 [1] : vector<16x32xf32> to vector<16xf32>
    %181 = vector.shape_cast %180 : vector<16xf32> to vector<16x1xf32>
    %cst_96 = arith.constant 3.200000e+01 : f32
    %182 = vector.broadcast %cst_96 : f32 to vector<16x1xf32>
    %183 = arith.divf %181, %182 : vector<16x1xf32>
    %184 = arith.mulf %178, %178 : vector<16x1xf32>
    %185 = arith.subf %183, %184 : vector<16x1xf32>
    %cst_97 = arith.constant 0.000000e+00 : f32
    %186 = vector.broadcast %cst_97 : f32 to vector<16x1xf32>
    %187 = arith.maximumf %185, %186 : vector<16x1xf32>
    %188 = vector.broadcast %178 : vector<16x1xf32> to vector<16x32xf32>
    %189 = arith.subf %170, %188 : vector<16x32xf32>
    %cst_98 = arith.constant 9.99999974E-6 : f32
    %190 = vector.broadcast %cst_98 : f32 to vector<16x1xf32>
    %191 = arith.addf %187, %190 : vector<16x1xf32>
    %192 = math.rsqrt %191 : vector<16x1xf32>
    %193 = vector.broadcast %192 : vector<16x1xf32> to vector<16x32xf32>
    %194 = arith.mulf %189, %193 : vector<16x32xf32>
    %195 = vector.broadcast %172 : vector<1x32xf32> to vector<16x32xf32>
    %196 = arith.mulf %194, %195 : vector<16x32xf32>
    %197 = vector.broadcast %174 : vector<1x32xf32> to vector<16x32xf32>
    %198 = arith.addf %196, %197 : vector<16x32xf32>
    %c0_99 = arith.constant 0 : index
    %c0_100 = arith.constant 0 : index
    %199 = vector.load %arg17[%c0_99, %c0_100] : memref<16x32xf32, #tpu.memory_space<vmem>>, vector<16x32xf32>
    tpu.vector_store %arg17[%c0_99, %c0_100], %198 {strides = array<i32>} : memref<16x32xf32, #tpu.memory_space<vmem>>, vector<16x32xf32>,
    %c3_i32 = arith.constant 3 : i32
    %200 = arith.cmpi eq, %arg0, %c3_i32 : i32
    %201 = arith.extui %200 : i1 to i32
    %c0_i32_101 = arith.constant 0 : i32
    %202 = arith.cmpi ne, %201, %c0_i32_101 : i32
    scf.if %202 {
      %c0_102 = arith.constant 0 : index
      %c0_103 = arith.constant 0 : index
      %203 = vector.load %arg2[%c0_102, %c0_103] : memref<16x16xf32, #tpu.memory_space<vmem>>, vector<16x16xf32>
      %c0_104 = arith.constant 0 : index
      %c0_105 = arith.constant 0 : index
      %204 = vector.load %arg7[%c0_104, %c0_105] : memref<32x4xf32, #tpu.memory_space<vmem>>, vector<32x4xf32>
      %cst_106 = arith.constant dense<0.000000e+00> : vector<16x4xf32>
      %205 = tpu.matmul %198, %204, %cst_106 {dimension_numbers = #tpu.dot_dimension_numbers<[1], [0], [0], [1], [0, 0, 1, 1], [], []>} : vector<16x32xf32>, vector<32x4xf32>, vector<16x4xf32> -> vector<16x4xf32>
      %cst_107 = arith.constant dense<0.000000e+00> : vector<16x4xf32>
      %206 = tpu.matmul %203, %205, %cst_107 {dimension_numbers = #tpu.dot_dimension_numbers<[1], [0], [0], [1], [0, 0, 1, 1], [], []>} : vector<16x16xf32>, vector<16x4xf32>, vector<16x4xf32> -> vector<16x4xf32>
      %c0_108 = arith.constant 0 : index
      %c0_109 = arith.constant 0 : index
      %207 = vector.load %arg8[%c0_108, %c0_109] : memref<1x4xf32, #tpu.memory_space<vmem>>, vector<1x4xf32>
      %208 = vector.broadcast %207 : vector<1x4xf32> to vector<16x4xf32>
      %209 = arith.addf %206, %208 : vector<16x4xf32>
      %cst_110 = arith.constant dense<0xFF800000> : vector<16xf32>
      %210 = vector.multi_reduction <maximumf>, %209, %cst_110 [1] : vector<16x4xf32> to vector<16xf32>
      %211 = vector.shape_cast %210 : vector<16xf32> to vector<16x1xf32>
      %212 = vector.broadcast %211 : vector<16x1xf32> to vector<16x4xf32>
      %213 = arith.subf %209, %212 : vector<16x4xf32>
      %214 = math.exp %213 : vector<16x4xf32>
      %cst_111 = arith.constant dense<0.000000e+00> : vector<16xf32>
      %215 = vector.multi_reduction <add>, %214, %cst_111 [1] : vector<16x4xf32> to vector<16xf32>
      %216 = vector.shape_cast %215 : vector<16xf32> to vector<16x1xf32>
      %217 = math.log %216 : vector<16x1xf32>
      %218 = vector.broadcast %217 : vector<16x1xf32> to vector<16x4xf32>
      %219 = arith.subf %213, %218 : vector<16x4xf32>
      %c0_112 = arith.constant 0 : index
      %c0_113 = arith.constant 0 : index
      %220 = vector.load %arg16[%c0_112, %c0_113] : memref<16x4xf32, #tpu.memory_space<vmem>>, vector<16x4xf32>
      tpu.vector_store %arg16[%c0_112, %c0_113], %219 {strides = array<i32>} : memref<16x4xf32, #tpu.memory_space<vmem>>, vector<16x4xf32>,
    } else {
    }
    return
  }
  func.func @transform_0(%arg0: i32) -> (i32, i32) {
    %c0_i32 = arith.constant 0 : i32
    %c0_i32_0 = arith.constant 0 : i32
    %c0_i32_1 = arith.constant 0 : i32
    return %c0_i32, %c0_i32_0 : i32, i32
  }
  func.func @transform_1(%arg0: i32) -> (i32, i32) {
    %c0_i32 = arith.constant 0 : i32
    %c0_i32_0 = arith.constant 0 : i32
    %c0_i32_1 = arith.constant 0 : i32
    return %c0_i32, %c0_i32_0 : i32, i32
  }
  func.func @transform_2(%arg0: i32) -> (i32, i32) {
    %c0_i32 = arith.constant 0 : i32
    %c0_i32_0 = arith.constant 0 : i32
    %c0_i32_1 = arith.constant 0 : i32
    return %c0_i32, %c0_i32_0 : i32, i32
  }
  func.func @transform_3(%arg0: i32) -> (i32, i32) {
    %c0_i32 = arith.constant 0 : i32
    %c0_i32_0 = arith.constant 0 : i32
    %c0_i32_1 = arith.constant 0 : i32
    return %c0_i32, %c0_i32_0 : i32, i32
  }
  func.func @transform_4(%arg0: i32) -> (i32, i32) {
    %c0_i32 = arith.constant 0 : i32
    %c0_i32_0 = arith.constant 0 : i32
    %c0_i32_1 = arith.constant 0 : i32
    return %c0_i32, %c0_i32_0 : i32, i32
  }
  func.func @transform_5(%arg0: i32) -> (i32, i32) {
    %c0_i32 = arith.constant 0 : i32
    %c0_i32_0 = arith.constant 0 : i32
    %c0_i32_1 = arith.constant 0 : i32
    return %c0_i32, %c0_i32_0 : i32, i32
  }
  func.func @transform_6(%arg0: i32) -> (i32, i32) {
    %c0_i32 = arith.constant 0 : i32
    %c0_i32_0 = arith.constant 0 : i32
    %c0_i32_1 = arith.constant 0 : i32
    return %c0_i32, %c0_i32_0 : i32, i32
  }
  func.func @transform_7(%arg0: i32) -> (i32, i32) {
    %c0_i32 = arith.constant 0 : i32
    %c0_i32_0 = arith.constant 0 : i32
    %c0_i32_1 = arith.constant 0 : i32
    return %c0_i32, %c0_i32_0 : i32, i32
  }
  func.func @transform_8(%arg0: i32) -> (i32, i32, i32) {
    %c0_i32 = arith.constant 0 : i32
    %c0_i32_0 = arith.constant 0 : i32
    %c0_i32_1 = arith.constant 0 : i32
    return %arg0, %c0_i32, %c0_i32_0 : i32, i32, i32
  }
  func.func @transform_9(%arg0: i32) -> (i32, i32, i32) {
    %c0_i32 = arith.constant 0 : i32
    %c0_i32_0 = arith.constant 0 : i32
    %c0_i32_1 = arith.constant 0 : i32
    return %arg0, %c0_i32, %c0_i32_0 : i32, i32, i32
  }
  func.func @transform_10(%arg0: i32) -> (i32, i32, i32) {
    %c0_i32 = arith.constant 0 : i32
    %c0_i32_0 = arith.constant 0 : i32
    %c0_i32_1 = arith.constant 0 : i32
    return %arg0, %c0_i32, %c0_i32_0 : i32, i32, i32
  }
  func.func @transform_11(%arg0: i32) -> (i32, i32, i32) {
    %c0_i32 = arith.constant 0 : i32
    %c0_i32_0 = arith.constant 0 : i32
    %c0_i32_1 = arith.constant 0 : i32
    return %arg0, %c0_i32, %c0_i32_0 : i32, i32, i32
  }
  func.func @transform_12(%arg0: i32) -> (i32, i32, i32) {
    %c0_i32 = arith.constant 0 : i32
    %c0_i32_0 = arith.constant 0 : i32
    %c0_i32_1 = arith.constant 0 : i32
    return %arg0, %c0_i32, %c0_i32_0 : i32, i32, i32
  }
  func.func @transform_13(%arg0: i32) -> (i32, i32, i32) {
    %c0_i32 = arith.constant 0 : i32
    %c0_i32_0 = arith.constant 0 : i32
    %c0_i32_1 = arith.constant 0 : i32
    return %arg0, %c0_i32, %c0_i32_0 : i32, i32, i32
  }
  func.func @transform_14(%arg0: i32) -> (i32, i32, i32) {
    %c0_i32 = arith.constant 0 : i32
    %c0_i32_0 = arith.constant 0 : i32
    %c0_i32_1 = arith.constant 0 : i32
    return %arg0, %c0_i32, %c0_i32_0 : i32, i32, i32
  }
  func.func @transform_15(%arg0: i32) -> (i32, i32) {
    %c0_i32 = arith.constant 0 : i32
    %c0_i32_0 = arith.constant 0 : i32
    %c0_i32_1 = arith.constant 0 : i32
    return %c0_i32, %c0_i32_0 : i32, i32
  }
}

</mosaic_0001>

<llo_original>
// kernel: transgcn_forward.1
$region0: #{transgcn_forward.1}
  #allocation0 [shape = 'u32[]', space=smem, size = 0x4, offset = 0x4, fixed_abs, tag = 'smem constant byte address 0x4 - core index']
  #allocation1 [shape = 'u32[144,128]{1,0:T(1,128)}', space=vmem, size = 0x12000, scoped, tag = 'internal scratch']
  #allocation2 [shape = 'f32[16,32]{1,0:T(8,128)}', space=vmem, size = 0x2000, scoped, tag = 'scratch operand']
  %s0 = inlined_call_operand.vmem [shape: f32[16,8], index: 0, kind: input, shape index: {}]
  %s1 = inlined_call_operand.vmem [shape: f32[16,16], index: 1, kind: input, shape index: {}]
  %s2 = inlined_call_operand.vmem [shape: f32[8,32], index: 2, kind: input, shape index: {}]
  %s3 = inlined_call_operand.vmem [shape: f32[1,32], index: 3, kind: input, shape index: {}]
  %s4 = inlined_call_operand.vmem [shape: f32[32,32], index: 4, kind: input, shape index: {}]
  %s5 = inlined_call_operand.vmem [shape: f32[1,32], index: 5, kind: input, shape index: {}]
  %s6 = inlined_call_operand.vmem [shape: f32[32,4], index: 6, kind: input, shape index: {}]
  %s7 = inlined_call_operand.vmem [shape: f32[1,4], index: 7, kind: input, shape index: {}]
  %s8 = inlined_call_operand.vmem [shape: f32[4,32,96], index: 8, kind: input, shape index: {}]
  %s9 = inlined_call_operand.vmem [shape: f32[4,1,96], index: 9, kind: input, shape index: {}]
  %s10 = inlined_call_operand.vmem [shape: f32[4,32,32], index: 10, kind: input, shape index: {}]
  %s11 = inlined_call_operand.vmem [shape: f32[4,6,32], index: 11, kind: input, shape index: {}]
  %s12 = inlined_call_operand.vmem [shape: bf16[4,32,2048], index: 12, kind: input, shape index: {}]
  %s13 = inlined_call_operand.vmem [shape: f32[4,1,2048], index: 13, kind: input, shape index: {}]
  %s14 = inlined_call_operand.vmem [shape: bf16[4,2048,32], index: 14, kind: input, shape index: {}]
  %s15 = inlined_call_operand.vmem [shape: f32[16,4], index: 15, kind: output, shape index: {}]
  %s16 = sld [smem:[#allocation0]]
  $region101: #{transgcn_forward.1} parent=0
    _
  %s18 = ssub.s32 1, %s16
  %s19 = scalar_select 0, %s18, %s16
  loop: start=0, step=1, limit=6
  $region2: #{transgcn_forward.1} parent=0 // loop_pre_header
    _
  $region3: #{transgcn_forward.1} parent=0 // loop_header
    %s21 = sphi 0, %s25
    %p22 = scmp.ge.s32.totalorder %s21, 6
    %s29 = sphi 0, %s29
    %s31 = sphi 0, %s29
    %s32 = sphi 0, %s31
    %s46 = sphi 0, %s32
    %s50 = sphi 0, %s50
    %s52 = sphi 0, %s50
    %s53 = sphi 0, %s52
    %s67 = sphi 0, %s53
    %s71 = sphi 0, %s71
    %s73 = sphi 0, %s71
    %s74 = sphi 0, %s73
    %s88 = sphi 0, %s74
    %s92 = sphi 0, %s92
    %s94 = sphi 0, %s92
    %s95 = sphi 0, %s94
    %s109 = sphi 0, %s95
    %s113 = sphi 0, %s113
    %s115 = sphi 0, %s113
    %s116 = sphi 0, %s115
    %s130 = sphi 0, %s116
    %s134 = sphi 0, %s134
    %s136 = sphi 0, %s134
    %s137 = sphi 0, %s136
    %s151 = sphi 0, %s137
    %s155 = sphi 0, %s155
    %s157 = sphi 0, %s155
    %s158 = sphi 0, %s157
    %s172 = sphi 0, %s158
    %s176 = sphi 0, %s176
    %s178 = sphi 0, %s176
    %s179 = sphi 0, %s178
    %s193 = sphi 0, %s179
    %s199 = sphi 0, %s201
    %s202 = sphi 0, %s199
    %s203 = sphi 0, %s202
    %s219 = sphi 0, %s203
    %s225 = sphi 0, %s227
    %s228 = sphi 0, %s225
    %s229 = sphi 0, %s228
    %s245 = sphi 0, %s229
    %s251 = sphi 0, %s253
    %s254 = sphi 0, %s251
    %s255 = sphi 0, %s254
    %s271 = sphi 0, %s255
    %s277 = sphi 0, %s279
    %s280 = sphi 0, %s277
    %s281 = sphi 0, %s280
    %s297 = sphi 0, %s281
    %s303 = sphi 0, %s305
    %s306 = sphi 0, %s303
    %s307 = sphi 0, %s306
    %s323 = sphi 0, %s307
    %s329 = sphi 0, %s331
    %s332 = sphi 0, %s329
    %s333 = sphi 0, %s332
    %s349 = sphi 0, %s333
    %s355 = sphi 0, %s357
    %s358 = sphi 0, %s355
    %s359 = sphi 0, %s358
    %s375 = sphi 0, %s359
    %s379 = sphi 0, %s379
    %s381 = sphi 0, %s379
    %s382 = sphi 0, %s381
    %s396 = sphi 0, %s382
  $region4: #{transgcn_forward.1} parent=0 // loop_header_branch
    %24 = sbr.rel (%p22) target = $region8
  $region5: #{transgcn_forward.1} parent=0 // loop_body
    %s26 = ssub.s32 %s21, 1
    %s27 = ssub.s32 %s21, 2
    %s28 = sadd.s32 %s21, 1
    %s30 = sadd.s32 %s29, 1
    %p33 = scmp.eq.s32.totalorder %s21, 3
    %p34 = scmp.ne.s32.totalorder %s29, %s31
    %p35 = scmp.eq.s32.totalorder %s21, 0
    %p36 = por %p34, %p35
    %p37 = scmp.ne.s32.totalorder %s29, %s31
    %p38 = scmp.eq.s32.totalorder %s26, 3
    %p39 = por %p37, %p38
    %p40 = scmp.ne.s32.totalorder %s31, %s32
    %p41 = scmp.eq.s32.totalorder %s26, 0
    %p42 = por %p40, %p41
    %p43 = scmp.ne.s32.totalorder %s31, %s32
    %p44 = scmp.eq.s32.totalorder %s27, 3
    %p45 = por %p43, %p44
    %p47 = scmp.ne.s32.totalorder %s32, %s46
    %p48 = scmp.eq.s32.totalorder %s27, 0
    %p49 = por %p47, %p48
    %s51 = sadd.s32 %s50, 1
    %p54 = scmp.eq.s32.totalorder %s21, 3
    %p55 = scmp.ne.s32.totalorder %s50, %s52
    %p56 = scmp.eq.s32.totalorder %s21, 0
    %p57 = por %p55, %p56
    %p58 = scmp.ne.s32.totalorder %s50, %s52
    %p59 = scmp.eq.s32.totalorder %s26, 3
    %p60 = por %p58, %p59
    %p61 = scmp.ne.s32.totalorder %s52, %s53
    %p62 = scmp.eq.s32.totalorder %s26, 0
    %p63 = por %p61, %p62
    %p64 = scmp.ne.s32.totalorder %s52, %s53
    %p65 = scmp.eq.s32.totalorder %s27, 3
    %p66 = por %p64, %p65
    %p68 = scmp.ne.s32.totalorder %s53, %s67
    %p69 = scmp.eq.s32.totalorder %s27, 0
    %p70 = por %p68, %p69
    %s72 = sadd.s32 %s71, 1
    %p75 = scmp.eq.s32.totalorder %s21, 3
    %p76 = scmp.ne.s32.totalorder %s71, %s73
    %p77 = scmp.eq.s32.totalorder %s21, 0
    %p78 = por %p76, %p77
    %p79 = scmp.ne.s32.totalorder %s71, %s73
    %p80 = scmp.eq.s32.totalorder %s26, 3
    %p81 = por %p79, %p80
    %p82 = scmp.ne.s32.totalorder %s73, %s74
    %p83 = scmp.eq.s32.totalorder %s26, 0
    %p84 = por %p82, %p83
    %p85 = scmp.ne.s32.totalorder %s73, %s74
    %p86 = scmp.eq.s32.totalorder %s27, 3
    %p87 = por %p85, %p86
    %p89 = scmp.ne.s32.totalorder %s74, %s88
    %p90 = scmp.eq.s32.totalorder %s27, 0
    %p91 = por %p89, %p90
    %s93 = sadd.s32 %s92, 1
    %p96 = scmp.eq.s32.totalorder %s21, 3
    %p97 = scmp.ne.s32.totalorder %s92, %s94
    %p98 = scmp.eq.s32.totalorder %s21, 0
    %p99 = por %p97, %p98
    %p100 = scmp.ne.s32.totalorder %s92, %s94
    %p101 = scmp.eq.s32.totalorder %s26, 3
    %p102 = por %p100, %p101
    %p103 = scmp.ne.s32.totalorder %s94, %s95
    %p104 = scmp.eq.s32.totalorder %s26, 0
    %p105 = por %p103, %p104
    %p106 = scmp.ne.s32.totalorder %s94, %s95
    %p107 = scmp.eq.s32.totalorder %s27, 3
    %p108 = por %p106, %p107
    %p110 = scmp.ne.s32.totalorder %s95, %s109
    %p111 = scmp.eq.s32.totalorder %s27, 0
    %p112 = por %p110, %p111
    %s114 = sadd.s32 %s113, 1
    %p117 = scmp.eq.s32.totalorder %s21, 3
    %p118 = scmp.ne.s32.totalorder %s113, %s115
    %p119 = scmp.eq.s32.totalorder %s21, 0
    %p120 = por %p118, %p119
    %p121 = scmp.ne.s32.totalorder %s113, %s115
    %p122 = scmp.eq.s32.totalorder %s26, 3
    %p123 = por %p121, %p122
    %p124 = scmp.ne.s32.totalorder %s115, %s116
    %p125 = scmp.eq.s32.totalorder %s26, 0
    %p126 = por %p124, %p125
    %p127 = scmp.ne.s32.totalorder %s115, %s116
    %p128 = scmp.eq.s32.totalorder %s27, 3
    %p129 = por %p127, %p128
    %p131 = scmp.ne.s32.totalorder %s116, %s130
    %p132 = scmp.eq.s32.totalorder %s27, 0
    %p133 = por %p131, %p132
    %s135 = sadd.s32 %s134, 1
    %p138 = scmp.eq.s32.totalorder %s21, 3
    %p139 = scmp.ne.s32.totalorder %s134, %s136
    %p140 = scmp.eq.s32.totalorder %s21, 0
    %p141 = por %p139, %p140
    %p142 = scmp.ne.s32.totalorder %s134, %s136
    %p143 = scmp.eq.s32.totalorder %s26, 3
    %p144 = por %p142, %p143
    %p145 = scmp.ne.s32.totalorder %s136, %s137
    %p146 = scmp.eq.s32.totalorder %s26, 0
    %p147 = por %p145, %p146
    %p148 = scmp.ne.s32.totalorder %s136, %s137
    %p149 = scmp.eq.s32.totalorder %s27, 3
    %p150 = por %p148, %p149
    %p152 = scmp.ne.s32.totalorder %s137, %s151
    %p153 = scmp.eq.s32.totalorder %s27, 0
    %p154 = por %p152, %p153
    %s156 = sadd.s32 %s155, 1
    %p159 = scmp.eq.s32.totalorder %s21, 3
    %p160 = scmp.ne.s32.totalorder %s155, %s157
    %p161 = scmp.eq.s32.totalorder %s21, 0
    %p162 = por %p160, %p161
    %p163 = scmp.ne.s32.totalorder %s155, %s157
    %p164 = scmp.eq.s32.totalorder %s26, 3
    %p165 = por %p163, %p164
    %p166 = scmp.ne.s32.totalorder %s157, %s158
    %p167 = scmp.eq.s32.totalorder %s26, 0
    %p168 = por %p166, %p167
    %p169 = scmp.ne.s32.totalorder %s157, %s158
    %p170 = scmp.eq.s32.totalorder %s27, 3
    %p171 = por %p169, %p170
    %p173 = scmp.ne.s32.totalorder %s158, %s172
    %p174 = scmp.eq.s32.totalorder %s27, 0
    %p175 = por %p173, %p174
    %s177 = sadd.s32 %s176, 1
    %p180 = scmp.eq.s32.totalorder %s21, 3
    %p181 = scmp.ne.s32.totalorder %s176, %s178
    %p182 = scmp.eq.s32.totalorder %s21, 0
    %p183 = por %p181, %p182
    %p184 = scmp.ne.s32.totalorder %s176, %s178
    %p185 = scmp.eq.s32.totalorder %s26, 3
    %p186 = por %p184, %p185
    %p187 = scmp.ne.s32.totalorder %s178, %s179
    %p188 = scmp.eq.s32.totalorder %s26, 0
    %p189 = por %p187, %p188
    %p190 = scmp.ne.s32.totalorder %s178, %s179
    %p191 = scmp.eq.s32.totalorder %s27, 3
    %p192 = por %p190, %p191
    %p194 = scmp.ne.s32.totalorder %s179, %s193
    %p195 = scmp.eq.s32.totalorder %s27, 0
    %p196 = por %p194, %p195
    %s197 = ssub.s32 %s21, %s28
    %p198 = scmp.eq.s32.totalorder %s197, 0
    %s200 = sadd.s32 %s199, 1
    %s201 = scalar_select %p198, %s199, %s200
    %p204 = pneg %p198
    %p205 = scmp.eq.s32.totalorder %s21, 3
    %p206 = por %p204, %p205
    %p207 = scmp.ne.s32.totalorder %s199, %s202
    %p208 = scmp.eq.s32.totalorder %s21, 0
    %p209 = por %p207, %p208
    %p210 = scmp.ne.s32.totalorder %s199, %s202
    %p211 = scmp.eq.s32.totalorder %s26, 3
    %p212 = por %p210, %p211
    %p213 = scmp.ne.s32.totalorder %s202, %s203
    %p214 = scmp.eq.s32.totalorder %s26, 0
    %p215 = por %p213, %p214
    %p216 = scmp.ne.s32.totalorder %s202, %s203
    %p217 = scmp.eq.s32.totalorder %s27, 3
    %p218 = por %p216, %p217
    %p220 = scmp.ne.s32.totalorder %s203, %s219
    %p221 = scmp.eq.s32.totalorder %s27, 0
    %p222 = por %p220, %p221
    %s223 = ssub.s32 %s21, %s28
    %p224 = scmp.eq.s32.totalorder %s223, 0
    %s226 = sadd.s32 %s225, 1
    %s227 = scalar_select %p224, %s225, %s226
    %p230 = pneg %p224
    %p231 = scmp.eq.s32.totalorder %s21, 3
    %p232 = por %p230, %p231
    %p233 = scmp.ne.s32.totalorder %s225, %s228
    %p234 = scmp.eq.s32.totalorder %s21, 0
    %p235 = por %p233, %p234
    %p236 = scmp.ne.s32.totalorder %s225, %s228
    %p237 = scmp.eq.s32.totalorder %s26, 3
    %p238 = por %p236, %p237
    %p239 = scmp.ne.s32.totalorder %s228, %s229
    %p240 = scmp.eq.s32.totalorder %s26, 0
    %p241 = por %p239, %p240
    %p242 = scmp.ne.s32.totalorder %s228, %s229
    %p243 = scmp.eq.s32.totalorder %s27, 3
    %p244 = por %p242, %p243
    %p246 = scmp.ne.s32.totalorder %s229, %s245
    %p247 = scmp.eq.s32.totalorder %s27, 0
    %p248 = por %p246, %p247
    %s249 = ssub.s32 %s21, %s28
    %p250 = scmp.eq.s32.totalorder %s249, 0
    %s252 = sadd.s32 %s251, 1
    %s253 = scalar_select %p250, %s251, %s252
    %p256 = pneg %p250
    %p257 = scmp.eq.s32.totalorder %s21, 3
    %p258 = por %p256, %p257
    %p259 = scmp.ne.s32.totalorder %s251, %s254
    %p260 = scmp.eq.s32.totalorder %s21, 0
    %p261 = por %p259, %p260
    %p262 = scmp.ne.s32.totalorder %s251, %s254
    %p263 = scmp.eq.s32.totalorder %s26, 3
    %p264 = por %p262, %p263
    %p265 = scmp.ne.s32.totalorder %s254, %s255
    %p266 = scmp.eq.s32.totalorder %s26, 0
    %p267 = por %p265, %p266
    %p268 = scmp.ne.s32.totalorder %s254, %s255
    %p269 = scmp.eq.s32.totalorder %s27, 3
    %p270 = por %p268, %p269
    %p272 = scmp.ne.s32.totalorder %s255, %s271
    %p273 = scmp.eq.s32.totalorder %s27, 0
    %p274 = por %p272, %p273
    %s275 = ssub.s32 %s21, %s28
    %p276 = scmp.eq.s32.totalorder %s275, 0
    %s278 = sadd.s32 %s277, 1
    %s279 = scalar_select %p276, %s277, %s278
    %p282 = pneg %p276
    %p283 = scmp.eq.s32.totalorder %s21, 3
    %p284 = por %p282, %p283
    %p285 = scmp.ne.s32.totalorder %s277, %s280
    %p286 = scmp.eq.s32.totalorder %s21, 0
    %p287 = por %p285, %p286
    %p288 = scmp.ne.s32.totalorder %s277, %s280
    %p289 = scmp.eq.s32.totalorder %s26, 3
    %p290 = por %p288, %p289
    %p291 = scmp.ne.s32.totalorder %s280, %s281
    %p292 = scmp.eq.s32.totalorder %s26, 0
    %p293 = por %p291, %p292
    %p294 = scmp.ne.s32.totalorder %s280, %s281
    %p295 = scmp.eq.s32.totalorder %s27, 3
    %p296 = por %p294, %p295
    %p298 = scmp.ne.s32.totalorder %s281, %s297
    %p299 = scmp.eq.s32.totalorder %s27, 0
    %p300 = por %p298, %p299
    %s301 = ssub.s32 %s21, %s28
    %p302 = scmp.eq.s32.totalorder %s301, 0
    %s304 = sadd.s32 %s303, 1
    %s305 = scalar_select %p302, %s303, %s304
    %p308 = pneg %p302
    %p309 = scmp.eq.s32.totalorder %s21, 3
    %p310 = por %p308, %p309
    %p311 = scmp.ne.s32.totalorder %s303, %s306
    %p312 = scmp.eq.s32.totalorder %s21, 0
    %p313 = por %p311, %p312
    %p314 = scmp.ne.s32.totalorder %s303, %s306
    %p315 = scmp.eq.s32.totalorder %s26, 3
    %p316 = por %p314, %p315
    %p317 = scmp.ne.s32.totalorder %s306, %s307
    %p318 = scmp.eq.s32.totalorder %s26, 0
    %p319 = por %p317, %p318
    %p320 = scmp.ne.s32.totalorder %s306, %s307
    %p321 = scmp.eq.s32.totalorder %s27, 3
    %p322 = por %p320, %p321
    %p324 = scmp.ne.s32.totalorder %s307, %s323
    %p325 = scmp.eq.s32.totalorder %s27, 0
    %p326 = por %p324, %p325
    %s327 = ssub.s32 %s21, %s28
    %p328 = scmp.eq.s32.totalorder %s327, 0
    %s330 = sadd.s32 %s329, 1
    %s331 = scalar_select %p328, %s329, %s330
    %p334 = pneg %p328
    %p335 = scmp.eq.s32.totalorder %s21, 3
    %p336 = por %p334, %p335
    %p337 = scmp.ne.s32.totalorder %s329, %s332
    %p338 = scmp.eq.s32.totalorder %s21, 0
    %p339 = por %p337, %p338
    %p340 = scmp.ne.s32.totalorder %s329, %s332
    %p341 = scmp.eq.s32.totalorder %s26, 3
    %p342 = por %p340, %p341
    %p343 = scmp.ne.s32.totalorder %s332, %s333
    %p344 = scmp.eq.s32.totalorder %s26, 0
    %p345 = por %p343, %p344
    %p346 = scmp.ne.s32.totalorder %s332, %s333
    %p347 = scmp.eq.s32.totalorder %s27, 3
    %p348 = por %p346, %p347
    %p350 = scmp.ne.s32.totalorder %s333, %s349
    %p351 = scmp.eq.s32.totalorder %s27, 0
    %p352 = por %p350, %p351
    %s353 = ssub.s32 %s21, %s28
    %p354 = scmp.eq.s32.totalorder %s353, 0
    %s356 = sadd.s32 %s355, 1
    %s357 = scalar_select %p354, %s355, %s356
    %p360 = pneg %p354
    %p361 = scmp.eq.s32.totalorder %s21, 3
    %p362 = por %p360, %p361
    %p363 = scmp.ne.s32.totalorder %s355, %s358
    %p364 = scmp.eq.s32.totalorder %s21, 0
    %p365 = por %p363, %p364
    %p366 = scmp.ne.s32.totalorder %s355, %s358
    %p367 = scmp.eq.s32.totalorder %s26, 3
    %p368 = por %p366, %p367
    %p369 = scmp.ne.s32.totalorder %s358, %s359
    %p370 = scmp.eq.s32.totalorder %s26, 0
    %p371 = por %p369, %p370
    %p372 = scmp.ne.s32.totalorder %s358, %s359
    %p373 = scmp.eq.s32.totalorder %s27, 3
    %p374 = por %p372, %p373
    %p376 = scmp.ne.s32.totalorder %s359, %s375
    %p377 = scmp.eq.s32.totalorder %s27, 0
    %p378 = por %p376, %p377
    %s380 = sadd.s32 %s379, 1
    %p383 = scmp.eq.s32.totalorder %s21, 3
    %p384 = scmp.ne.s32.totalorder %s379, %s381
    %p385 = scmp.eq.s32.totalorder %s21, 0
    %p386 = por %p384, %p385
    %p387 = scmp.ne.s32.totalorder %s379, %s381
    %p388 = scmp.eq.s32.totalorder %s26, 3
    %p389 = por %p387, %p388
    %p390 = scmp.ne.s32.totalorder %s381, %s382
    %p391 = scmp.eq.s32.totalorder %s26, 0
    %p392 = por %p390, %p391
    %p393 = scmp.ne.s32.totalorder %s381, %s382
    %p394 = scmp.eq.s32.totalorder %s27, 3
    %p395 = por %p393, %p394
    %p397 = scmp.ne.s32.totalorder %s382, %s396
    %p398 = scmp.eq.s32.totalorder %s27, 0
    %p399 = por %p397, %p398
    %p400 = scmp.le.s32.totalorder 1, %s21
    %p401 = scmp.lt.s32.totalorder %s21, 5
    %p402 = pnand %p400, %p401
    %p403 = pneg %p402
    // Predicated region
    $region9: #{transgcn_forward.1} parent=5 // pred_check
      _
    $region10: #{transgcn_forward.1} parent=5 // pred_check_branch
      %405 = sbr.rel (%p402) target = $region12
    $region11: #{transgcn_forward.1} parent=5 // pred_region
      %s406 = ssub.s32 %s21, 1
      // Predicated region
      $region13: #{transgcn_forward.1} parent=11 // pred_check
        %p407 = pneg %p42
      $region14: #{transgcn_forward.1} parent=11 // pred_check_branch
        %409 = sbr.rel (%p407) target = $region16
      $region15: #{transgcn_forward.1} parent=11 // pred_region
        _
      $region16: #{transgcn_forward.1} parent=11 // pred_fallthru
        _
      // Predicated region
      $region17: #{transgcn_forward.1} parent=11 // pred_check
        %p410 = pneg %p63
      $region18: #{transgcn_forward.1} parent=11 // pred_check_branch
        %412 = sbr.rel (%p410) target = $region20
      $region19: #{transgcn_forward.1} parent=11 // pred_region
        _
      $region20: #{transgcn_forward.1} parent=11 // pred_fallthru
        _
      // Predicated region
      $region21: #{transgcn_forward.1} parent=11 // pred_check
        %p413 = pneg %p84
      $region22: #{transgcn_forward.1} parent=11 // pred_check_branch
        %415 = sbr.rel (%p413) target = $region24
      $region23: #{transgcn_forward.1} parent=11 // pred_region
        _
      $region24: #{transgcn_forward.1} parent=11 // pred_fallthru
        _
      // Predicated region
      $region25: #{transgcn_forward.1} parent=11 // pred_check
        %p416 = pneg %p105
      $region26: #{transgcn_forward.1} parent=11 // pred_check_branch
        %418 = sbr.rel (%p416) target = $region28
      $region27: #{transgcn_forward.1} parent=11 // pred_region
        _
      $region28: #{transgcn_forward.1} parent=11 // pred_fallthru
        _
      // Predicated region
      $region29: #{transgcn_forward.1} parent=11 // pred_check
        %p419 = pneg %p126
      $region30: #{transgcn_forward.1} parent=11 // pred_check_branch
        %421 = sbr.rel (%p419) target = $region32
      $region31: #{transgcn_forward.1} parent=11 // pred_region
        _
      $region32: #{transgcn_forward.1} parent=11 // pred_fallthru
        _
      // Predicated region
      $region33: #{transgcn_forward.1} parent=11 // pred_check
        %p422 = pneg %p147
      $region34: #{transgcn_forward.1} parent=11 // pred_check_branch
        %424 = sbr.rel (%p422) target = $region36
      $region35: #{transgcn_forward.1} parent=11 // pred_region
        _
      $region36: #{transgcn_forward.1} parent=11 // pred_fallthru
        _
      // Predicated region
      $region37: #{transgcn_forward.1} parent=11 // pred_check
        %p425 = pneg %p168
      $region38: #{transgcn_forward.1} parent=11 // pred_check_branch
        %427 = sbr.rel (%p425) target = $region40
      $region39: #{transgcn_forward.1} parent=11 // pred_region
        _
      $region40: #{transgcn_forward.1} parent=11 // pred_fallthru
        _
      // Predicated region
      $region41: #{transgcn_forward.1} parent=11 // pred_check
        %p428 = pneg %p189
      $region42: #{transgcn_forward.1} parent=11 // pred_check_branch
        %430 = sbr.rel (%p428) target = $region44
      $region43: #{transgcn_forward.1} parent=11 // pred_region
        _
      $region44: #{transgcn_forward.1} parent=11 // pred_fallthru
        _
    $region12: #{transgcn_forward.1} parent=5 // pred_fallthru
      _
    %p431 = scmp.lt.s32.totalorder %s21, 4
    // Predicated region
    $region45: #{transgcn_forward.1} parent=5 // pred_check
      %p432 = pneg %p431
    $region46: #{transgcn_forward.1} parent=5 // pred_check_branch
      %434 = sbr.rel (%p432) target = $region48
    $region47: #{transgcn_forward.1} parent=5 // pred_region
      // Predicated region
      $region49: #{transgcn_forward.1} parent=47 // pred_check
        %p435 = pneg %p209
      $region50: #{transgcn_forward.1} parent=47 // pred_check_branch
        %437 = sbr.rel (%p435) target = $region52
      $region51: #{transgcn_forward.1} parent=47 // pred_region
        %p438 = scmp.lt.s32.totalorder %s21, 3
        %s439 = scalar_select %p438, %s21, 3
        %s440 = smul.addr %s439, 4
        %s441 = smul.addr %s440, 8
        %s442 = scalar_lea.vmem %s8, %s441
      $region52: #{transgcn_forward.1} parent=47 // pred_fallthru
        _
      // Predicated region
      $region53: #{transgcn_forward.1} parent=47 // pred_check
        %p443 = pneg %p235
      $region54: #{transgcn_forward.1} parent=47 // pred_check_branch
        %445 = sbr.rel (%p443) target = $region56
      $region55: #{transgcn_forward.1} parent=47 // pred_region
        %p446 = scmp.lt.s32.totalorder %s21, 3
        %s447 = scalar_select %p446, %s21, 3
        %s448 = scalar_lea.vmem %s9, %s447
      $region56: #{transgcn_forward.1} parent=47 // pred_fallthru
        _
      // Predicated region
      $region57: #{transgcn_forward.1} parent=47 // pred_check
        %p449 = pneg %p261
      $region58: #{transgcn_forward.1} parent=47 // pred_check_branch
        %451 = sbr.rel (%p449) target = $region60
      $region59: #{transgcn_forward.1} parent=47 // pred_region
        %p452 = scmp.lt.s32.totalorder %s21, 3
        %s453 = scalar_select %p452, %s21, 3
        %s454 = smul.addr %s453, 4
        %s455 = smul.addr %s454, 8
        %s456 = scalar_lea.vmem %s10, %s455
      $region60: #{transgcn_forward.1} parent=47 // pred_fallthru
        _
      // Predicated region
      $region61: #{transgcn_forward.1} parent=47 // pred_check
        %p457 = pneg %p287
      $region62: #{transgcn_forward.1} parent=47 // pred_check_branch
        %459 = sbr.rel (%p457) target = $region64
      $region63: #{transgcn_forward.1} parent=47 // pred_region
        %p460 = scmp.lt.s32.totalorder %s21, 3
        %s461 = scalar_select %p460, %s21, 3
        %s462 = smul.addr %s461, 8
        %s463 = scalar_lea.vmem %s11, %s462
      $region64: #{transgcn_forward.1} parent=47 // pred_fallthru
        _
      // Predicated region
      $region65: #{transgcn_forward.1} parent=47 // pred_check
        %p464 = pneg %p313
      $region66: #{transgcn_forward.1} parent=47 // pred_check_branch
        %466 = sbr.rel (%p464) target = $region68
      $region67: #{transgcn_forward.1} parent=47 // pred_region
        %p467 = scmp.lt.s32.totalorder %s21, 3
        %s468 = scalar_select %p467, %s21, 3
        %s469 = smul.addr %s468, 64
        %s470 = smul.addr %s469, 4
        %s471 = scalar_lea.vmem %s12, %s470
      $region68: #{transgcn_forward.1} parent=47 // pred_fallthru
        _
      // Predicated region
      $region69: #{transgcn_forward.1} parent=47 // pred_check
        %p472 = pneg %p339
      $region70: #{transgcn_forward.1} parent=47 // pred_check_branch
        %474 = sbr.rel (%p472) target = $region72
      $region71: #{transgcn_forward.1} parent=47 // pred_region
        %p475 = scmp.lt.s32.totalorder %s21, 3
        %s476 = scalar_select %p475, %s21, 3
        %s477 = smul.addr %s476, 16
        %s478 = scalar_lea.vmem %s13, %s477
      $region72: #{transgcn_forward.1} parent=47 // pred_fallthru
        _
      // Predicated region
      $region73: #{transgcn_forward.1} parent=47 // pred_check
        %p479 = pneg %p365
      $region74: #{transgcn_forward.1} parent=47 // pred_check_branch
        %481 = sbr.rel (%p479) target = $region76
      $region75: #{transgcn_forward.1} parent=47 // pred_region
        %p482 = scmp.lt.s32.totalorder %s21, 3
        %s483 = scalar_select %p482, %s21, 3
        %s484 = smul.addr %s483, 256
        %s485 = smul.addr %s484, 4
        %s486 = scalar_lea.vmem %s14, %s485
      $region76: #{transgcn_forward.1} parent=47 // pred_fallthru
        _
    $region48: #{transgcn_forward.1} parent=5 // pred_fallthru
      _
    %p487 = scmp.le.s32.totalorder 1, %s21
    %p488 = scmp.lt.s32.totalorder %s21, 5
    %p489 = pnand %p487, %p488
    %p490 = pneg %p489
    // Predicated region
    $region77: #{transgcn_forward.1} parent=5 // pred_check
      _
    $region78: #{transgcn_forward.1} parent=5 // pred_check_branch
      %492 = sbr.rel (%p489) target = $region80
    $region79: #{transgcn_forward.1} parent=5 // pred_region
      %s493 = ssub.s32 %s21, 1
      %p494 = pneg %p42
      %p495 = pneg %p39
      %p496 = pneg %p63
      %p497 = pneg %p60
      %p498 = pneg %p84
      %p499 = pneg %p81
      %p500 = pneg %p105
      %p501 = pneg %p102
      %p502 = pneg %p126
      %p503 = pneg %p123
      %p504 = pneg %p147
      %p505 = pneg %p144
      %p506 = pneg %p168
      %p507 = pneg %p165
      %p508 = pneg %p189
      %p509 = pneg %p186
      %p510 = scmp.lt.s32.totalorder %s26, 3
      %s511 = scalar_select %p510, %s26, 3
      %s512 = smul.addr %s511, 4
      %s513 = smul.addr %s512, 8
      %s514 = scalar_lea.vmem %s8, %s513
      %p515 = pneg %p215
      %p516 = pneg %p212
      %p517 = scmp.lt.s32.totalorder %s26, 3
      %s518 = scalar_select %p517, %s26, 3
      %s519 = scalar_lea.vmem %s9, %s518
      %p520 = pneg %p241
      %p521 = pneg %p238
      %p522 = scmp.lt.s32.totalorder %s26, 3
      %s523 = scalar_select %p522, %s26, 3
      %s524 = smul.addr %s523, 4
      %s525 = smul.addr %s524, 8
      %s526 = scalar_lea.vmem %s10, %s525
      %p527 = pneg %p267
      %p528 = pneg %p264
      %p529 = scmp.lt.s32.totalorder %s26, 3
      %s530 = scalar_select %p529, %s26, 3
      %s531 = smul.addr %s530, 8
      %s532 = scalar_lea.vmem %s11, %s531
      %p533 = pneg %p293
      %p534 = pneg %p290
      %p535 = scmp.lt.s32.totalorder %s26, 3
      %s536 = scalar_select %p535, %s26, 3
      %s537 = smul.addr %s536, 64
      %s538 = smul.addr %s537, 4
      %s539 = scalar_lea.vmem %s12, %s538
      %p540 = pneg %p319
      %p541 = pneg %p316
      %p542 = scmp.lt.s32.totalorder %s26, 3
      %s543 = scalar_select %p542, %s26, 3
      %s544 = smul.addr %s543, 16
      %s545 = scalar_lea.vmem %s13, %s544
      %p546 = pneg %p345
      %p547 = pneg %p342
      %p548 = scmp.lt.s32.totalorder %s26, 3
      %s549 = scalar_select %p548, %s26, 3
      %s550 = smul.addr %s549, 256
      %s551 = smul.addr %s550, 4
      %s552 = scalar_lea.vmem %s14, %s551
      %p553 = pneg %p371
      %p554 = pneg %p368
      %p555 = pneg %p392
      %p556 = pneg %p389
      %p557 = scmp.lt.s32.totalorder %s26, 3
      %s558 = scalar_select %p557, %s26, 3
      %s559 = smul.addr %s558, 4
      %s560 = smul.addr %s559, 8
      %s561 = scalar_lea.vmem %s8, %s560
      %p562 = scmp.lt.s32.totalorder %s26, 3
      %s563 = scalar_select %p562, %s26, 3
      %s564 = scalar_lea.vmem %s9, %s563
      %p565 = scmp.lt.s32.totalorder %s26, 3
      %s566 = scalar_select %p565, %s26, 3
      %s567 = smul.addr %s566, 4
      %s568 = smul.addr %s567, 8
      %s569 = scalar_lea.vmem %s10, %s568
      %p570 = scmp.lt.s32.totalorder %s26, 3
      %s571 = scalar_select %p570, %s26, 3
      %s572 = smul.addr %s571, 8
      %s573 = scalar_lea.vmem %s11, %s572
      %p574 = scmp.lt.s32.totalorder %s26, 3
      %s575 = scalar_select %p574, %s26, 3
      %s576 = smul.addr %s575, 64
      %s577 = smul.addr %s576, 4
      %s578 = scalar_lea.vmem %s12, %s577
      %p579 = scmp.lt.s32.totalorder %s26, 3
      %s580 = scalar_select %p579, %s26, 3
      %s581 = smul.addr %s580, 16
      %s582 = scalar_lea.vmem %s13, %s581
      %p583 = scmp.lt.s32.totalorder %s26, 3
      %s584 = scalar_select %p583, %s26, 3
      %s585 = smul.addr %s584, 256
      %s586 = smul.addr %s585, 4
      %s587 = scalar_lea.vmem %s14, %s586
      %p589 = scmp.eq.s32.totalorder %s26, 0
      // Predicated region
      $region81: #{transgcn_forward.1} parent=79 // pred_check
        %p590 = pneg %p589
      $region82: #{transgcn_forward.1} parent=79 // pred_check_branch
        %592 = sbr.rel (%p590) target = $region84
      $region83: #{transgcn_forward.1} parent=79 // pred_region
        %v593 = vld [vmem:[%s1] sm:$0xff]
        %v594 = vld [vmem:[%s1 + $0x8] sm:$0xff]
        %v595 = vld [vmem:[%s0] sm:$0xff]
        %v596 = vld [vmem:[%s0 + $0x8] sm:$0xff]
        %v597 = vld [vmem:[%s2] sm:$0xff]
        %vm598 = vcmask 64512
        %v600 = vsel %vm598, %v595, 0
        %v603 = vsel %vm598, %v596, 0
        %605 = vmatprep.subr.mxu0 0.0
        %606 = vmatpush1.msra.mxu0 %v597
        %607 = vmatprep.subr.mxu0 0.0
        %608 = vmatpush1.msra.mxu0 0.0
        %609 = vmatprep.subr.mxu0 0.0
        %610 = vmatpush1.msra.mxu0 0.0
        %611 = vmatprep.subr.mxu0 0.0
        %612 = vmatpush1.msra.mxu0 0.0
        %613 = vmatprep.subr.mxu0 0.0
        %614 = vmatpush1.msra.mxu0 0.0
        %615 = vmatprep.subr.mxu0 0.0
        %616 = vmatpush1.msra.mxu0 0.0
        %617 = vmatprep.subr.mxu0 0.0
        %618 = vmatpush1.msra.mxu0 0.0
        %619 = vmatprep.subr.mxu0 0.0
        %620 = vmatpush1.msra.mxu0 0.0
        %621 = vmatprep.subr.mxu0 0.0
        %622 = vmatpush1.msra.mxu0 0.0
        %623 = vmatprep.subr.mxu0 0.0
        %624 = vmatpush1.msra.mxu0 0.0
        %625 = vmatprep.subr.mxu0 0.0
        %626 = vmatpush1.msra.mxu0 0.0
        %627 = vmatprep.subr.mxu0 0.0
        %628 = vmatpush1.msra.mxu0 0.0
        %629 = vmatprep.subr.mxu0 0.0
        %630 = vmatpush1.msra.mxu0 0.0
        %631 = vmatprep.subr.mxu0 0.0
        %632 = vmatpush1.msra.mxu0 0.0
        %633 = vmatprep.subr.mxu0 0.0
        %634 = vmatpush1.msra.mxu0 0.0
        %635 = vmatprep.subr.mxu0 0.0
        %636 = vmatpush1.msra.mxu0 0.0
        %637 = vmatprep.subr.mxu0 0.0
        %638 = vmatpush1.msra.mxu0 0.0
        %639 = vmatprep.subr.mxu0 0.0
        %640 = vmatpush1.msra.mxu0 0.0
        %641 = vmatprep.subr.mxu0 0.0
        %642 = vmatpush1.msra.mxu0 0.0
        %643 = vmatprep.subr.mxu0 0.0
        %644 = vmatpush1.msra.mxu0 0.0
        %645 = vmatprep.subr.mxu0 0.0
        %646 = vmatpush1.msra.mxu0 0.0
        %647 = vmatprep.subr.mxu0 0.0
        %648 = vmatpush1.msra.mxu0 0.0
        %649 = vmatprep.subr.mxu0 0.0
        %650 = vmatpush1.msra.mxu0 0.0
        %651 = vmatprep.subr.mxu0 0.0
        %652 = vmatpush1.msra.mxu0 0.0
        %653 = vmatprep.subr.mxu0 0.0
        %654 = vmatpush1.msra.mxu0 0.0
        %655 = vmatprep.subr.mxu0 0.0
        %656 = vmatpush1.msra.mxu0 0.0
        %657 = vmatprep.subr.mxu0 0.0
        %658 = vmatpush1.msra.mxu0 0.0
        %659 = vmatprep.subr.mxu0 0.0
        %660 = vmatpush1.msra.mxu0 0.0
        %661 = vmatprep.subr.mxu0 0.0
        %662 = vmatpush1.msra.mxu0 0.0
        %663 = vmatprep.subr.mxu0 0.0
        %664 = vmatpush1.msra.mxu0 0.0
        %665 = vmatprep.subr.mxu0 0.0
        %666 = vmatpush1.msra.mxu0 0.0
        %667 = vmatprep.subr.mxu0 0.0
        %668 = vmatpush1.msra.mxu0 0.0
        %669 = vmatprep.mubr.f32.mxu0 0.0
        %670 = vmatmul.mubr.f32.gmra.mrb[0].mxu0 %v600
        %v671 = vpop.f32.mrb[0].mxu0
        %v672 = vadd.f32 0.0, %v671
        %v673 = vpop.f32.mrb[0].mxu0
        %674 = vmatprep.mubr.f32.mxu0 0.0
        %675 = vmatmul.mubr.f32.gmra.mrb[0].mxu0 %v603
        %v676 = vpop.f32.mrb[0].mxu0
        %v677 = vadd.f32 0.0, %v676
        %v678 = vpop.f32.mrb[0].mxu0
        %679 = vdwg.mxu0
        %v680 = vld [vmem:[%s3] sm:$0x1]
        %v682 = vlaneseq
        %v683 = vshrl.u32 %v682, 7
        %v684 = vsub.s32 0, %v683
        %v685 = vrot.slane %v680, %v684
        %vm687 = vcmask 130048
        %v689 = vsel %vm687, %v593, 0
        %v692 = vsel %vm687, %v594, 0
        %694 = vmatprep.subr.mxu0 0.0
        %695 = vmatpush1.msra.mxu0 %v672
        %696 = vmatprep.subr.mxu0 0.0
        %697 = vmatpush1.msra.mxu0 %v677
        %698 = vmatprep.subr.mxu0 0.0
        %699 = vmatpush1.msra.mxu0 0.0
        %700 = vmatprep.subr.mxu0 0.0
        %701 = vmatpush1.msra.mxu0 0.0
        %702 = vmatprep.subr.mxu0 0.0
        %703 = vmatpush1.msra.mxu0 0.0
        %704 = vmatprep.subr.mxu0 0.0
        %705 = vmatpush1.msra.mxu0 0.0
        %706 = vmatprep.subr.mxu0 0.0
        %707 = vmatpush1.msra.mxu0 0.0
        %708 = vmatprep.subr.mxu0 0.0
        %709 = vmatpush1.msra.mxu0 0.0
        %710 = vmatprep.subr.mxu0 0.0
        %711 = vmatpush1.msra.mxu0 0.0
        %712 = vmatprep.subr.mxu0 0.0
        %713 = vmatpush1.msra.mxu0 0.0
        %714 = vmatprep.subr.mxu0 0.0
        %715 = vmatpush1.msra.mxu0 0.0
        %716 = vmatprep.subr.mxu0 0.0
        %717 = vmatpush1.msra.mxu0 0.0
        %718 = vmatprep.subr.mxu0 0.0
        %719 = vmatpush1.msra.mxu0 0.0
        %720 = vmatprep.subr.mxu0 0.0
        %721 = vmatpush1.msra.mxu0 0.0
        %722 = vmatprep.subr.mxu0 0.0
        %723 = vmatpush1.msra.mxu0 0.0
        %724 = vmatprep.subr.mxu0 0.0
        %725 = vmatpush1.msra.mxu0 0.0
        %726 = vmatprep.subr.mxu0 0.0
        %727 = vmatpush1.msra.mxu0 0.0
        %728 = vmatprep.subr.mxu0 0.0
        %729 = vmatpush1.msra.mxu0 0.0
        %730 = vmatprep.subr.mxu0 0.0
        %731 = vmatpush1.msra.mxu0 0.0
        %732 = vmatprep.subr.mxu0 0.0
        %733 = vmatpush1.msra.mxu0 0.0
        %734 = vmatprep.subr.mxu0 0.0
        %735 = vmatpush1.msra.mxu0 0.0
        %736 = vmatprep.subr.mxu0 0.0
        %737 = vmatpush1.msra.mxu0 0.0
        %738 = vmatprep.subr.mxu0 0.0
        %739 = vmatpush1.msra.mxu0 0.0
        %740 = vmatprep.subr.mxu0 0.0
        %741 = vmatpush1.msra.mxu0 0.0
        %742 = vmatprep.subr.mxu0 0.0
        %743 = vmatpush1.msra.mxu0 0.0
        %744 = vmatprep.subr.mxu0 0.0
        %745 = vmatpush1.msra.mxu0 0.0
        %746 = vmatprep.subr.mxu0 0.0
        %747 = vmatpush1.msra.mxu0 0.0
        %748 = vmatprep.subr.mxu0 0.0
        %749 = vmatpush1.msra.mxu0 0.0
        %750 = vmatprep.subr.mxu0 0.0
        %751 = vmatpush1.msra.mxu0 0.0
        %752 = vmatprep.subr.mxu0 0.0
        %753 = vmatpush1.msra.mxu0 0.0
        %754 = vmatprep.subr.mxu0 0.0
        %755 = vmatpush1.msra.mxu0 0.0
        %756 = vmatprep.subr.mxu0 0.0
        %757 = vmatpush1.msra.mxu0 0.0
        %758 = vmatprep.mubr.f32.mxu0 0.0
        %759 = vmatmul.mubr.f32.gmra.mrb[0].mxu0 %v689
        %v760 = vpop.f32.mrb[0].mxu0
        %v761 = vadd.f32 %v685, %v760
        %v762 = vpop.f32.mrb[0].mxu0
        %763 = vmatprep.mubr.f32.mxu0 0.0
        %764 = vmatmul.mubr.f32.gmra.mrb[0].mxu0 %v692
        %v765 = vpop.f32.mrb[0].mxu0
        %v766 = vadd.f32 %v685, %v765
        %v767 = vpop.f32.mrb[0].mxu0
        %768 = vdwg.mxu0
        %v769 = vmul.f32 %v761, 0.5
        %v770 = vmul.f32 %v766, 0.5
        %v771 = vmul.f32 %v761, 0.70710677
        %v772 = vmul.f32 %v766, 0.70710677
        %v773 = verf.f32.pop %v771
        %v774 = verf.f32.pop %v772
        %v775 = vadd.f32 %v773, 1.0
        %v776 = vadd.f32 %v774, 1.0
        %v777 = vmul.f32 %v769, %v775
        %v778 = vmul.f32 %v770, %v776
        %v779 = vld [vmem:[%s4] sm:$0xff]
        %v780 = vld [vmem:[%s4 + $0x8] sm:$0xff]
        %v781 = vld [vmem:[%s4 + $0x10] sm:$0xff]
        %v782 = vld [vmem:[%s4 + $0x18] sm:$0xff]
        %vm783 = vcmask 261120
        %v785 = vsel %vm783, %v777, 0
        %v788 = vsel %vm783, %v778, 0
        %790 = vmatprep.subr.mxu0 0.0
        %791 = vmatpush1.msra.mxu0 %v779
        %792 = vmatprep.subr.mxu0 0.0
        %793 = vmatpush1.msra.mxu0 %v780
        %794 = vmatprep.subr.mxu0 0.0
        %795 = vmatpush1.msra.mxu0 %v781
        %796 = vmatprep.subr.mxu0 0.0
        %797 = vmatpush1.msra.mxu0 %v782
        %798 = vmatprep.subr.mxu0 0.0
        %799 = vmatpush1.msra.mxu0 0.0
        %800 = vmatprep.subr.mxu0 0.0
        %801 = vmatpush1.msra.mxu0 0.0
        %802 = vmatprep.subr.mxu0 0.0
        %803 = vmatpush1.msra.mxu0 0.0
        %804 = vmatprep.subr.mxu0 0.0
        %805 = vmatpush1.msra.mxu0 0.0
        %806 = vmatprep.subr.mxu0 0.0
        %807 = vmatpush1.msra.mxu0 0.0
        %808 = vmatprep.subr.mxu0 0.0
        %809 = vmatpush1.msra.mxu0 0.0
        %810 = vmatprep.subr.mxu0 0.0
        %811 = vmatpush1.msra.mxu0 0.0
        %812 = vmatprep.subr.mxu0 0.0
        %813 = vmatpush1.msra.mxu0 0.0
        %814 = vmatprep.subr.mxu0 0.0
        %815 = vmatpush1.msra.mxu0 0.0
        %816 = vmatprep.subr.mxu0 0.0
        %817 = vmatpush1.msra.mxu0 0.0
        %818 = vmatprep.subr.mxu0 0.0
        %819 = vmatpush1.msra.mxu0 0.0
        %820 = vmatprep.subr.mxu0 0.0
        %821 = vmatpush1.msra.mxu0 0.0
        %822 = vmatprep.subr.mxu0 0.0
        %823 = vmatpush1.msra.mxu0 0.0
        %824 = vmatprep.subr.mxu0 0.0
        %825 = vmatpush1.msra.mxu0 0.0
        %826 = vmatprep.subr.mxu0 0.0
        %827 = vmatpush1.msra.mxu0 0.0
        %828 = vmatprep.subr.mxu0 0.0
        %829 = vmatpush1.msra.mxu0 0.0
        %830 = vmatprep.subr.mxu0 0.0
        %831 = vmatpush1.msra.mxu0 0.0
        %832 = vmatprep.subr.mxu0 0.0
        %833 = vmatpush1.msra.mxu0 0.0
        %834 = vmatprep.subr.mxu0 0.0
        %835 = vmatpush1.msra.mxu0 0.0
        %836 = vmatprep.subr.mxu0 0.0
        %837 = vmatpush1.msra.mxu0 0.0
        %838 = vmatprep.subr.mxu0 0.0
        %839 = vmatpush1.msra.mxu0 0.0
        %840 = vmatprep.subr.mxu0 0.0
        %841 = vmatpush1.msra.mxu0 0.0
        %842 = vmatprep.subr.mxu0 0.0
        %843 = vmatpush1.msra.mxu0 0.0
        %844 = vmatprep.subr.mxu0 0.0
        %845 = vmatpush1.msra.mxu0 0.0
        %846 = vmatprep.subr.mxu0 0.0
        %847 = vmatpush1.msra.mxu0 0.0
        %848 = vmatprep.subr.mxu0 0.0
        %849 = vmatpush1.msra.mxu0 0.0
        %850 = vmatprep.subr.mxu0 0.0
        %851 = vmatpush1.msra.mxu0 0.0
        %852 = vmatprep.subr.mxu0 0.0
        %853 = vmatpush1.msra.mxu0 0.0
        %854 = vmatprep.mubr.f32.mxu0 0.0
        %855 = vmatmul.mubr.f32.gmra.mrb[0].mxu0 %v785
        %v856 = vpop.f32.mrb[0].mxu0
        %v857 = vadd.f32 0.0, %v856
        %v858 = vpop.f32.mrb[0].mxu0
        %859 = vmatprep.mubr.f32.mxu0 0.0
        %860 = vmatmul.mubr.f32.gmra.mrb[0].mxu0 %v788
        %v861 = vpop.f32.mrb[0].mxu0
        %v862 = vadd.f32 0.0, %v861
        %v863 = vpop.f32.mrb[0].mxu0
        %864 = vdwg.mxu0
        %v865 = vld [vmem:[%s5] sm:$0x1]
        %v867 = vlaneseq
        %v868 = vshrl.u32 %v867, 7
        %v869 = vsub.s32 0, %v868
        %v870 = vrot.slane %v865, %v869
        %872 = vmatprep.subr.mxu0 0.0
        %873 = vmatpush1.msra.mxu0 %v857
        %874 = vmatprep.subr.mxu0 0.0
        %875 = vmatpush1.msra.mxu0 %v862
        %876 = vmatprep.subr.mxu0 0.0
        %877 = vmatpush1.msra.mxu0 0.0
        %878 = vmatprep.subr.mxu0 0.0
        %879 = vmatpush1.msra.mxu0 0.0
        %880 = vmatprep.subr.mxu0 0.0
        %881 = vmatpush1.msra.mxu0 0.0
        %882 = vmatprep.subr.mxu0 0.0
        %883 = vmatpush1.msra.mxu0 0.0
        %884 = vmatprep.subr.mxu0 0.0
        %885 = vmatpush1.msra.mxu0 0.0
        %886 = vmatprep.subr.mxu0 0.0
        %887 = vmatpush1.msra.mxu0 0.0
        %888 = vmatprep.subr.mxu0 0.0
        %889 = vmatpush1.msra.mxu0 0.0
        %890 = vmatprep.subr.mxu0 0.0
        %891 = vmatpush1.msra.mxu0 0.0
        %892 = vmatprep.subr.mxu0 0.0
        %893 = vmatpush1.msra.mxu0 0.0
        %894 = vmatprep.subr.mxu0 0.0
        %895 = vmatpush1.msra.mxu0 0.0
        %896 = vmatprep.subr.mxu0 0.0
        %897 = vmatpush1.msra.mxu0 0.0
        %898 = vmatprep.subr.mxu0 0.0
        %899 = vmatpush1.msra.mxu0 0.0
        %900 = vmatprep.subr.mxu0 0.0
        %901 = vmatpush1.msra.mxu0 0.0
        %902 = vmatprep.subr.mxu0 0.0
        %903 = vmatpush1.msra.mxu0 0.0
        %904 = vmatprep.subr.mxu0 0.0
        %905 = vmatpush1.msra.mxu0 0.0
        %906 = vmatprep.subr.mxu0 0.0
        %907 = vmatpush1.msra.mxu0 0.0
        %908 = vmatprep.subr.mxu0 0.0
        %909 = vmatpush1.msra.mxu0 0.0
        %910 = vmatprep.subr.mxu0 0.0
        %911 = vmatpush1.msra.mxu0 0.0
        %912 = vmatprep.subr.mxu0 0.0
        %913 = vmatpush1.msra.mxu0 0.0
        %914 = vmatprep.subr.mxu0 0.0
        %915 = vmatpush1.msra.mxu0 0.0
        %916 = vmatprep.subr.mxu0 0.0
        %917 = vmatpush1.msra.mxu0 0.0
        %918 = vmatprep.subr.mxu0 0.0
        %919 = vmatpush1.msra.mxu0 0.0
        %920 = vmatprep.subr.mxu0 0.0
        %921 = vmatpush1.msra.mxu0 0.0
        %922 = vmatprep.subr.mxu0 0.0
        %923 = vmatpush1.msra.mxu0 0.0
        %924 = vmatprep.subr.mxu0 0.0
        %925 = vmatpush1.msra.mxu0 0.0
        %926 = vmatprep.subr.mxu0 0.0
        %927 = vmatpush1.msra.mxu0 0.0
        %928 = vmatprep.subr.mxu0 0.0
        %929 = vmatpush1.msra.mxu0 0.0
        %930 = vmatprep.subr.mxu0 0.0
        %931 = vmatpush1.msra.mxu0 0.0
        %932 = vmatprep.subr.mxu0 0.0
        %933 = vmatpush1.msra.mxu0 0.0
        %934 = vmatprep.subr.mxu0 0.0
        %935 = vmatpush1.msra.mxu0 0.0
        %936 = vmatprep.mubr.f32.mxu0 0.0
        %937 = vmatmul.mubr.f32.gmra.mrb[0].mxu0 %v689
        %v938 = vpop.f32.mrb[0].mxu0
        %v939 = vadd.f32 %v870, %v938
        %v940 = vpop.f32.mrb[0].mxu0
        %941 = vmatprep.mubr.f32.mxu0 0.0
        %942 = vmatmul.mubr.f32.gmra.mrb[0].mxu0 %v692
        %v943 = vpop.f32.mrb[0].mxu0
        %v944 = vadd.f32 %v870, %v943
        %v945 = vpop.f32.mrb[0].mxu0
        %946 = vdwg.mxu0
        %v947 = vmul.f32 %v939, 0.5
        %v948 = vmul.f32 %v944, 0.5
        %v949 = vmul.f32 %v939, 0.70710677
        %v950 = vmul.f32 %v944, 0.70710677
        %v951 = verf.f32.pop %v949
        %v952 = verf.f32.pop %v950
        %v953 = vadd.f32 %v951, 1.0
        %v954 = vadd.f32 %v952, 1.0
        %v955 = vmul.f32 %v947, %v953
        %v956 = vmul.f32 %v948, %v954
        %957 = vst.msk [vmem:[#allocation2] sm:$0xff] %vm783, %v955
        %958 = vst.msk [vmem:[#allocation2 + $0x8] sm:$0xff] %vm783, %v956
      $region84: #{transgcn_forward.1} parent=79 // pred_fallthru
        _
      %v959 = vld [vmem:[#allocation2] sm:$0xff]
      %v960 = vld [vmem:[#allocation2 + $0x8] sm:$0xff]
      %v961 = vld [vmem:[%s561] sm:$0xff]
      %v962 = vld [vmem:[%s561 + $0x8] sm:$0xff]
      %v963 = vld [vmem:[%s561 + $0x10] sm:$0xff]
      %v964 = vld [vmem:[%s561 + $0x18] sm:$0xff]
      %v965 = vld [vmem:[%s564] sm:$0x1]
      %v967 = vlaneseq
      %v968 = vshrl.u32 %v967, 7
      %v969 = vsub.s32 0, %v968
      %v970 = vrot.slane %v965, %v969
      %vm972 = vcmask 261120
      %v974 = vsel %vm972, %v959, 0
      %v977 = vsel %vm972, %v960, 0
      %979 = vmatprep.subr.mxu0 0.0
      %980 = vmatpush1.msra.mxu0 %v961
      %981 = vmatprep.subr.mxu0 0.0
      %982 = vmatpush1.msra.mxu0 %v962
      %983 = vmatprep.subr.mxu0 0.0
      %984 = vmatpush1.msra.mxu0 %v963
      %985 = vmatprep.subr.mxu0 0.0
      %986 = vmatpush1.msra.mxu0 %v964
      %987 = vmatprep.subr.mxu0 0.0
      %988 = vmatpush1.msra.mxu0 0.0
      %989 = vmatprep.subr.mxu0 0.0
      %990 = vmatpush1.msra.mxu0 0.0
      %991 = vmatprep.subr.mxu0 0.0
      %992 = vmatpush1.msra.mxu0 0.0
      %993 = vmatprep.subr.mxu0 0.0
      %994 = vmatpush1.msra.mxu0 0.0
      %995 = vmatprep.subr.mxu0 0.0
      %996 = vmatpush1.msra.mxu0 0.0
      %997 = vmatprep.subr.mxu0 0.0
      %998 = vmatpush1.msra.mxu0 0.0
      %999 = vmatprep.subr.mxu0 0.0
      %1000 = vmatpush1.msra.mxu0 0.0
      %1001 = vmatprep.subr.mxu0 0.0
      %1002 = vmatpush1.msra.mxu0 0.0
      %1003 = vmatprep.subr.mxu0 0.0
      %1004 = vmatpush1.msra.mxu0 0.0
      %1005 = vmatprep.subr.mxu0 0.0
      %1006 = vmatpush1.msra.mxu0 0.0
      %1007 = vmatprep.subr.mxu0 0.0
      %1008 = vmatpush1.msra.mxu0 0.0
      %1009 = vmatprep.subr.mxu0 0.0
      %1010 = vmatpush1.msra.mxu0 0.0
      %1011 = vmatprep.subr.mxu0 0.0
      %1012 = vmatpush1.msra.mxu0 0.0
      %1013 = vmatprep.subr.mxu0 0.0
      %1014 = vmatpush1.msra.mxu0 0.0
      %1015 = vmatprep.subr.mxu0 0.0
      %1016 = vmatpush1.msra.mxu0 0.0
      %1017 = vmatprep.subr.mxu0 0.0
      %1018 = vmatpush1.msra.mxu0 0.0
      %1019 = vmatprep.subr.mxu0 0.0
      %1020 = vmatpush1.msra.mxu0 0.0
      %1021 = vmatprep.subr.mxu0 0.0
      %1022 = vmatpush1.msra.mxu0 0.0
      %1023 = vmatprep.subr.mxu0 0.0
      %1024 = vmatpush1.msra.mxu0 0.0
      %1025 = vmatprep.subr.mxu0 0.0
      %1026 = vmatpush1.msra.mxu0 0.0
      %1027 = vmatprep.subr.mxu0 0.0
      %1028 = vmatpush1.msra.mxu0 0.0
      %1029 = vmatprep.subr.mxu0 0.0
      %1030 = vmatpush1.msra.mxu0 0.0
      %1031 = vmatprep.subr.mxu0 0.0
      %1032 = vmatpush1.msra.mxu0 0.0
      %1033 = vmatprep.subr.mxu0 0.0
      %1034 = vmatpush1.msra.mxu0 0.0
      %1035 = vmatprep.subr.mxu0 0.0
      %1036 = vmatpush1.msra.mxu0 0.0
      %1037 = vmatprep.subr.mxu0 0.0
      %1038 = vmatpush1.msra.mxu0 0.0
      %1039 = vmatprep.subr.mxu0 0.0
      %1040 = vmatpush1.msra.mxu0 0.0
      %1041 = vmatprep.subr.mxu0 0.0
      %1042 = vmatpush1.msra.mxu0 0.0
      %1043 = vmatprep.mubr.f32.mxu0 0.0
      %1044 = vmatmul.mubr.f32.gmra.mrb[0].mxu0 %v974
      %v1045 = vpop.f32.mrb[0].mxu0
      %v1046 = vadd.f32 %v970, %v1045
      %v1047 = vpop.f32.mrb[0].mxu0
      %1048 = vmatprep.mubr.f32.mxu0 0.0
      %1049 = vmatmul.mubr.f32.gmra.mrb[0].mxu0 %v977
      %v1050 = vpop.f32.mrb[0].mxu0
      %v1051 = vadd.f32 %v970, %v1050
      %v1052 = vpop.f32.mrb[0].mxu0
      %1053 = vdwg.mxu0
      %1056 = vrot.lane.b32.xlu0 %v1046, 96
      %v1057 = vpop.permute.xlu0 %1056
      %1058 = vrot.lane.b32.xlu0 %v1051, 96
      %v1059 = vpop.permute.xlu0 %1058
      %vm1060 = vcmask 64512
      %v1061 = vsel %vm1060, %v1046, 0
      %v1063 = vsel %vm1060, %v1051, 0
      %v1065 = vsel %vm1060, %v1057, 0
      %v1067 = vsel %vm1060, %v1059, 0
      %1069 = vmatprep.subr.mxu0 0.0
      %1070 = vmatpush1.xpose.msra.mxu0 %v1065
      %1071 = vmatprep.subr.mxu0 0.0
      %1072 = vmatpush1.xpose.msra.mxu0 %v1067
      %1073 = vmatprep.subr.mxu0 0.0
      %1074 = vmatpush1.xpose.msra.mxu0 0.0
      %1075 = vmatprep.subr.mxu0 0.0
      %1076 = vmatpush1.xpose.msra.mxu0 0.0
      %1077 = vmatprep.subr.mxu0 0.0
      %1078 = vmatpush1.xpose.msra.mxu0 0.0
      %1079 = vmatprep.subr.mxu0 0.0
      %1080 = vmatpush1.xpose.msra.mxu0 0.0
      %1081 = vmatprep.subr.mxu0 0.0
      %1082 = vmatpush1.xpose.msra.mxu0 0.0
      %1083 = vmatprep.subr.mxu0 0.0
      %1084 = vmatpush1.xpose.msra.mxu0 0.0
      %1085 = vmatprep.subr.mxu0 0.0
      %1086 = vmatpush1.xpose.msra.mxu0 0.0
      %1087 = vmatprep.subr.mxu0 0.0
      %1088 = vmatpush1.xpose.msra.mxu0 0.0
      %1089 = vmatprep.subr.mxu0 0.0
      %1090 = vmatpush1.xpose.msra.mxu0 0.0
      %1091 = vmatprep.subr.mxu0 0.0
      %1092 = vmatpush1.xpose.msra.mxu0 0.0
      %1093 = vmatprep.subr.mxu0 0.0
      %1094 = vmatpush1.xpose.msra.mxu0 0.0
      %1095 = vmatprep.subr.mxu0 0.0
      %1096 = vmatpush1.xpose.msra.mxu0 0.0
      %1097 = vmatprep.subr.mxu0 0.0
      %1098 = vmatpush1.xpose.msra.mxu0 0.0
      %1099 = vmatprep.subr.mxu0 0.0
      %1100 = vmatpush1.xpose.msra.mxu0 0.0
      %1101 = vmatprep.subr.mxu0 0.0
      %1102 = vmatpush1.xpose.msra.mxu0 0.0
      %1103 = vmatprep.subr.mxu0 0.0
      %1104 = vmatpush1.xpose.msra.mxu0 0.0
      %1105 = vmatprep.subr.mxu0 0.0
      %1106 = vmatpush1.xpose.msra.mxu0 0.0
      %1107 = vmatprep.subr.mxu0 0.0
      %1108 = vmatpush1.xpose.msra.mxu0 0.0
      %1109 = vmatprep.subr.mxu0 0.0
      %1110 = vmatpush1.xpose.msra.mxu0 0.0
      %1111 = vmatprep.subr.mxu0 0.0
      %1112 = vmatpush1.xpose.msra.mxu0 0.0
      %1113 = vmatprep.subr.mxu0 0.0
      %1114 = vmatpush1.xpose.msra.mxu0 0.0
      %1115 = vmatprep.subr.mxu0 0.0
      %1116 = vmatpush1.xpose.msra.mxu0 0.0
      %1117 = vmatprep.subr.mxu0 0.0
      %1118 = vmatpush1.xpose.msra.mxu0 0.0
      %1119 = vmatprep.subr.mxu0 0.0
      %1120 = vmatpush1.xpose.msra.mxu0 0.0
      %1121 = vmatprep.subr.mxu0 0.0
      %1122 = vmatpush1.xpose.msra.mxu0 0.0
      %1123 = vmatprep.subr.mxu0 0.0
      %1124 = vmatpush1.xpose.msra.mxu0 0.0
      %1125 = vmatprep.subr.mxu0 0.0
      %1126 = vmatpush1.xpose.msra.mxu0 0.0
      %1127 = vmatprep.subr.mxu0 0.0
      %1128 = vmatpush1.xpose.msra.mxu0 0.0
      %1129 = vmatprep.subr.mxu0 0.0
      %1130 = vmatpush1.xpose.msra.mxu0 0.0
      %1131 = vmatprep.subr.mxu0 0.0
      %1132 = vmatpush1.xpose.msra.mxu0 0.0
      %1133 = vmatprep.mubr.f32.mxu0 0.0
      %1134 = vmatmul.mubr.f32.gmra.mrb[0].mxu0 %v1061
      %v1135 = vpop.f32.mrb[0].mxu0
      %v1136 = vadd.f32 0.0, %v1135
      %v1137 = vpop.f32.mrb[0].mxu0
      %1138 = vmatprep.mubr.f32.mxu0 0.0
      %1139 = vmatmul.mubr.f32.gmra.mrb[0].mxu0 %v1063
      %v1140 = vpop.f32.mrb[0].mxu0
      %v1141 = vadd.f32 0.0, %v1140
      %v1142 = vpop.f32.mrb[0].mxu0
      %1143 = vdwg.mxu0
      %vm1144 = vcmask 130048
      %v1145 = vsel %vm1144, %v1136, -inf
      %1146 = vmax.xlane.f32.xlu0 %v1145
      %v1147 = vpop.xlane.xlu0 %1146
      %v1148 = vsel %vm1144, %v1141, -inf
      %1149 = vmax.xlane.f32.xlu0 %v1148
      %v1150 = vpop.xlane.xlu0 %1149
      %v1151 = vsub.f32 %v1136, %v1147
      %v1152 = vsub.f32 %v1141, %v1150
      %v1153 = vmul.f32 %v1151, 1.442695
      %v1154 = vpow.pop %v1153
      %v1155 = vmul.f32 %v1152, 1.442695
      %v1156 = vpow.pop %v1155
      %v1157 = vsel %vm1144, %v1154, 0.0
      %1158 = vadd.xlane.f32.xlu0 %v1157
      %v1159 = vpop.xlane.xlu0 %1158
      %v1160 = vsel %vm1144, %v1156, 0.0
      %1161 = vadd.xlane.f32.xlu0 %v1160
      %v1162 = vpop.xlane.xlu0 %1161
      %v1163 = vrcp.pop %v1159
      %v1164 = vrcp.pop %v1162
      %v1165 = vmul.f32 %v1154, %v1163
      %v1166 = vmul.f32 %v1156, %v1164
      %1167 = vrot.lane.b32.xlu0 %v1046, 64
      %v1168 = vpop.permute.xlu0 %1167
      %1169 = vrot.lane.b32.xlu0 %v1051, 64
      %v1170 = vpop.permute.xlu0 %1169
      %v1174 = vsel %vm1144, %v1165, 0
      %v1177 = vsel %vm1144, %v1166, 0
      %1179 = vmatprep.subr.mxu0 0.0
      %1180 = vmatpush1.msra.mxu0 %v1168
      %1181 = vmatprep.subr.mxu0 0.0
      %1182 = vmatpush1.msra.mxu0 %v1170
      %1183 = vmatprep.subr.mxu0 0.0
      %1184 = vmatpush1.msra.mxu0 0.0
      %1185 = vmatprep.subr.mxu0 0.0
      %1186 = vmatpush1.msra.mxu0 0.0
      %1187 = vmatprep.subr.mxu0 0.0
      %1188 = vmatpush1.msra.mxu0 0.0
      %1189 = vmatprep.subr.mxu0 0.0
      %1190 = vmatpush1.msra.mxu0 0.0
      %1191 = vmatprep.subr.mxu0 0.0
      %1192 = vmatpush1.msra.mxu0 0.0
      %1193 = vmatprep.subr.mxu0 0.0
      %1194 = vmatpush1.msra.mxu0 0.0
      %1195 = vmatprep.subr.mxu0 0.0
      %1196 = vmatpush1.msra.mxu0 0.0
      %1197 = vmatprep.subr.mxu0 0.0
      %1198 = vmatpush1.msra.mxu0 0.0
      %1199 = vmatprep.subr.mxu0 0.0
      %1200 = vmatpush1.msra.mxu0 0.0
      %1201 = vmatprep.subr.mxu0 0.0
      %1202 = vmatpush1.msra.mxu0 0.0
      %1203 = vmatprep.subr.mxu0 0.0
      %1204 = vmatpush1.msra.mxu0 0.0
      %1205 = vmatprep.subr.mxu0 0.0
      %1206 = vmatpush1.msra.mxu0 0.0
      %1207 = vmatprep.subr.mxu0 0.0
      %1208 = vmatpush1.msra.mxu0 0.0
      %1209 = vmatprep.subr.mxu0 0.0
      %1210 = vmatpush1.msra.mxu0 0.0
      %1211 = vmatprep.subr.mxu0 0.0
      %1212 = vmatpush1.msra.mxu0 0.0
      %1213 = vmatprep.subr.mxu0 0.0
      %1214 = vmatpush1.msra.mxu0 0.0
      %1215 = vmatprep.subr.mxu0 0.0
      %1216 = vmatpush1.msra.mxu0 0.0
      %1217 = vmatprep.subr.mxu0 0.0
      %1218 = vmatpush1.msra.mxu0 0.0
      %1219 = vmatprep.subr.mxu0 0.0
      %1220 = vmatpush1.msra.mxu0 0.0
      %1221 = vmatprep.subr.mxu0 0.0
      %1222 = vmatpush1.msra.mxu0 0.0
      %1223 = vmatprep.subr.mxu0 0.0
      %1224 = vmatpush1.msra.mxu0 0.0
      %1225 = vmatprep.subr.mxu0 0.0
      %1226 = vmatpush1.msra.mxu0 0.0
      %1227 = vmatprep.subr.mxu0 0.0
      %1228 = vmatpush1.msra.mxu0 0.0
      %1229 = vmatprep.subr.mxu0 0.0
      %1230 = vmatpush1.msra.mxu0 0.0
      %1231 = vmatprep.subr.mxu0 0.0
      %1232 = vmatpush1.msra.mxu0 0.0
      %1233 = vmatprep.subr.mxu0 0.0
      %1234 = vmatpush1.msra.mxu0 0.0
      %1235 = vmatprep.subr.mxu0 0.0
      %1236 = vmatpush1.msra.mxu0 0.0
      %1237 = vmatprep.subr.mxu0 0.0
      %1238 = vmatpush1.msra.mxu0 0.0
      %1239 = vmatprep.subr.mxu0 0.0
      %1240 = vmatpush1.msra.mxu0 0.0
      %1241 = vmatprep.subr.mxu0 0.0
      %1242 = vmatpush1.msra.mxu0 0.0
      %1243 = vmatprep.mubr.f32.mxu0 0.0
      %1244 = vmatmul.mubr.f32.gmra.mrb[0].mxu0 %v1174
      %v1245 = vpop.f32.mrb[0].mxu0
      %v1246 = vadd.f32 0.0, %v1245
      %v1247 = vpop.f32.mrb[0].mxu0
      %1248 = vmatprep.mubr.f32.mxu0 0.0
      %1249 = vmatmul.mubr.f32.gmra.mrb[0].mxu0 %v1177
      %v1250 = vpop.f32.mrb[0].mxu0
      %v1251 = vadd.f32 0.0, %v1250
      %v1252 = vpop.f32.mrb[0].mxu0
      %1253 = vdwg.mxu0
      %1254 = vrot.lane.b32.xlu0 %v1046, 120
      %v1255 = vpop.permute.xlu0 %1254
      %1256 = vrot.lane.b32.xlu0 %v1051, 120
      %v1257 = vpop.permute.xlu0 %1256
      %1258 = vrot.lane.b32.xlu0 %v1046, 88
      %v1259 = vpop.permute.xlu0 %1258
      %1260 = vrot.lane.b32.xlu0 %v1051, 88
      %v1261 = vpop.permute.xlu0 %1260
      %v1262 = vsel %vm1060, %v1255, 0
      %v1264 = vsel %vm1060, %v1257, 0
      %v1266 = vsel %vm1060, %v1259, 0
      %v1268 = vsel %vm1060, %v1261, 0
      %1270 = vmatprep.subr.mxu0 0.0
      %1271 = vmatpush1.xpose.msra.mxu0 %v1266
      %1272 = vmatprep.subr.mxu0 0.0
      %1273 = vmatpush1.xpose.msra.mxu0 %v1268
      %1274 = vmatprep.subr.mxu0 0.0
      %1275 = vmatpush1.xpose.msra.mxu0 0.0
      %1276 = vmatprep.subr.mxu0 0.0
      %1277 = vmatpush1.xpose.msra.mxu0 0.0
      %1278 = vmatprep.subr.mxu0 0.0
      %1279 = vmatpush1.xpose.msra.mxu0 0.0
      %1280 = vmatprep.subr.mxu0 0.0
      %1281 = vmatpush1.xpose.msra.mxu0 0.0
      %1282 = vmatprep.subr.mxu0 0.0
      %1283 = vmatpush1.xpose.msra.mxu0 0.0
      %1284 = vmatprep.subr.mxu0 0.0
      %1285 = vmatpush1.xpose.msra.mxu0 0.0
      %1286 = vmatprep.subr.mxu0 0.0
      %1287 = vmatpush1.xpose.msra.mxu0 0.0
      %1288 = vmatprep.subr.mxu0 0.0
      %1289 = vmatpush1.xpose.msra.mxu0 0.0
      %1290 = vmatprep.subr.mxu0 0.0
      %1291 = vmatpush1.xpose.msra.mxu0 0.0
      %1292 = vmatprep.subr.mxu0 0.0
      %1293 = vmatpush1.xpose.msra.mxu0 0.0
      %1294 = vmatprep.subr.mxu0 0.0
      %1295 = vmatpush1.xpose.msra.mxu0 0.0
      %1296 = vmatprep.subr.mxu0 0.0
      %1297 = vmatpush1.xpose.msra.mxu0 0.0
      %1298 = vmatprep.subr.mxu0 0.0
      %1299 = vmatpush1.xpose.msra.mxu0 0.0
      %1300 = vmatprep.subr.mxu0 0.0
      %1301 = vmatpush1.xpose.msra.mxu0 0.0
      %1302 = vmatprep.subr.mxu0 0.0
      %1303 = vmatpush1.xpose.msra.mxu0 0.0
      %1304 = vmatprep.subr.mxu0 0.0
      %1305 = vmatpush1.xpose.msra.mxu0 0.0
      %1306 = vmatprep.subr.mxu0 0.0
      %1307 = vmatpush1.xpose.msra.mxu0 0.0
      %1308 = vmatprep.subr.mxu0 0.0
      %1309 = vmatpush1.xpose.msra.mxu0 0.0
      %1310 = vmatprep.subr.mxu0 0.0
      %1311 = vmatpush1.xpose.msra.mxu0 0.0
      %1312 = vmatprep.subr.mxu0 0.0
      %1313 = vmatpush1.xpose.msra.mxu0 0.0
      %1314 = vmatprep.subr.mxu0 0.0
      %1315 = vmatpush1.xpose.msra.mxu0 0.0
      %1316 = vmatprep.subr.mxu0 0.0
      %1317 = vmatpush1.xpose.msra.mxu0 0.0
      %1318 = vmatprep.subr.mxu0 0.0
      %1319 = vmatpush1.xpose.msra.mxu0 0.0
      %1320 = vmatprep.subr.mxu0 0.0
      %1321 = vmatpush1.xpose.msra.mxu0 0.0
      %1322 = vmatprep.subr.mxu0 0.0
      %1323 = vmatpush1.xpose.msra.mxu0 0.0
      %1324 = vmatprep.subr.mxu0 0.0
      %1325 = vmatpush1.xpose.msra.mxu0 0.0
      %1326 = vmatprep.subr.mxu0 0.0
      %1327 = vmatpush1.xpose.msra.mxu0 0.0
      %1328 = vmatprep.subr.mxu0 0.0
      %1329 = vmatpush1.xpose.msra.mxu0 0.0
      %1330 = vmatprep.subr.mxu0 0.0
      %1331 = vmatpush1.xpose.msra.mxu0 0.0
      %1332 = vmatprep.subr.mxu0 0.0
      %1333 = vmatpush1.xpose.msra.mxu0 0.0
      %1334 = vmatprep.mubr.f32.mxu0 0.0
      %1335 = vmatmul.mubr.f32.gmra.mrb[0].mxu0 %v1262
      %v1336 = vpop.f32.mrb[0].mxu0
      %v1337 = vadd.f32 0.0, %v1336
      %v1338 = vpop.f32.mrb[0].mxu0
      %1339 = vmatprep.mubr.f32.mxu0 0.0
      %1340 = vmatmul.mubr.f32.gmra.mrb[0].mxu0 %v1264
      %v1341 = vpop.f32.mrb[0].mxu0
      %v1342 = vadd.f32 0.0, %v1341
      %v1343 = vpop.f32.mrb[0].mxu0
      %1344 = vdwg.mxu0
      %v1345 = vsel %vm1144, %v1337, -inf
      %1346 = vmax.xlane.f32.xlu0 %v1345
      %v1347 = vpop.xlane.xlu0 %1346
      %v1348 = vsel %vm1144, %v1342, -inf
      %1349 = vmax.xlane.f32.xlu0 %v1348
      %v1350 = vpop.xlane.xlu0 %1349
      %v1351 = vsub.f32 %v1337, %v1347
      %v1352 = vsub.f32 %v1342, %v1350
      %v1353 = vmul.f32 %v1351, 1.442695
      %v1354 = vpow.pop %v1353
      %v1355 = vmul.f32 %v1352, 1.442695
      %v1356 = vpow.pop %v1355
      %v1357 = vsel %vm1144, %v1354, 0.0
      %1358 = vadd.xlane.f32.xlu0 %v1357
      %v1359 = vpop.xlane.xlu0 %1358
      %v1360 = vsel %vm1144, %v1356, 0.0
      %1361 = vadd.xlane.f32.xlu0 %v1360
      %v1362 = vpop.xlane.xlu0 %1361
      %v1363 = vrcp.pop %v1359
      %v1364 = vrcp.pop %v1362
      %v1365 = vmul.f32 %v1354, %v1363
      %v1366 = vmul.f32 %v1356, %v1364
      %1367 = vrot.lane.b32.xlu0 %v1046, 56
      %v1368 = vpop.permute.xlu0 %1367
      %1369 = vrot.lane.b32.xlu0 %v1051, 56
      %v1370 = vpop.permute.xlu0 %1369
      %v1374 = vsel %vm1144, %v1365, 0
      %v1377 = vsel %vm1144, %v1366, 0
      %1379 = vmatprep.subr.mxu0 0.0
      %1380 = vmatpush1.msra.mxu0 %v1368
      %1381 = vmatprep.subr.mxu0 0.0
      %1382 = vmatpush1.msra.mxu0 %v1370
      %1383 = vmatprep.subr.mxu0 0.0
      %1384 = vmatpush1.msra.mxu0 0.0
      %1385 = vmatprep.subr.mxu0 0.0
      %1386 = vmatpush1.msra.mxu0 0.0
      %1387 = vmatprep.subr.mxu0 0.0
      %1388 = vmatpush1.msra.mxu0 0.0
      %1389 = vmatprep.subr.mxu0 0.0
      %1390 = vmatpush1.msra.mxu0 0.0
      %1391 = vmatprep.subr.mxu0 0.0
      %1392 = vmatpush1.msra.mxu0 0.0
      %1393 = vmatprep.subr.mxu0 0.0
      %1394 = vmatpush1.msra.mxu0 0.0
      %1395 = vmatprep.subr.mxu0 0.0
      %1396 = vmatpush1.msra.mxu0 0.0
      %1397 = vmatprep.subr.mxu0 0.0
      %1398 = vmatpush1.msra.mxu0 0.0
      %1399 = vmatprep.subr.mxu0 0.0
      %1400 = vmatpush1.msra.mxu0 0.0
      %1401 = vmatprep.subr.mxu0 0.0
      %1402 = vmatpush1.msra.mxu0 0.0
      %1403 = vmatprep.subr.mxu0 0.0
      %1404 = vmatpush1.msra.mxu0 0.0
      %1405 = vmatprep.subr.mxu0 0.0
      %1406 = vmatpush1.msra.mxu0 0.0
      %1407 = vmatprep.subr.mxu0 0.0
      %1408 = vmatpush1.msra.mxu0 0.0
      %1409 = vmatprep.subr.mxu0 0.0
      %1410 = vmatpush1.msra.mxu0 0.0
      %1411 = vmatprep.subr.mxu0 0.0
      %1412 = vmatpush1.msra.mxu0 0.0
      %1413 = vmatprep.subr.mxu0 0.0
      %1414 = vmatpush1.msra.mxu0 0.0
      %1415 = vmatprep.subr.mxu0 0.0
      %1416 = vmatpush1.msra.mxu0 0.0
      %1417 = vmatprep.subr.mxu0 0.0
      %1418 = vmatpush1.msra.mxu0 0.0
      %1419 = vmatprep.subr.mxu0 0.0
      %1420 = vmatpush1.msra.mxu0 0.0
      %1421 = vmatprep.subr.mxu0 0.0
      %1422 = vmatpush1.msra.mxu0 0.0
      %1423 = vmatprep.subr.mxu0 0.0
      %1424 = vmatpush1.msra.mxu0 0.0
      %1425 = vmatprep.subr.mxu0 0.0
      %1426 = vmatpush1.msra.mxu0 0.0
      %1427 = vmatprep.subr.mxu0 0.0
      %1428 = vmatpush1.msra.mxu0 0.0
      %1429 = vmatprep.subr.mxu0 0.0
      %1430 = vmatpush1.msra.mxu0 0.0
      %1431 = vmatprep.subr.mxu0 0.0
      %1432 = vmatpush1.msra.mxu0 0.0
      %1433 = vmatprep.subr.mxu0 0.0
      %1434 = vmatpush1.msra.mxu0 0.0
      %1435 = vmatprep.subr.mxu0 0.0
      %1436 = vmatpush1.msra.mxu0 0.0
      %1437 = vmatprep.subr.mxu0 0.0
      %1438 = vmatpush1.msra.mxu0 0.0
      %1439 = vmatprep.subr.mxu0 0.0
      %1440 = vmatpush1.msra.mxu0 0.0
      %1441 = vmatprep.subr.mxu0 0.0
      %1442 = vmatpush1.msra.mxu0 0.0
      %1443 = vmatprep.mubr.f32.mxu0 0.0
      %1444 = vmatmul.mubr.f32.gmra.mrb[0].mxu0 %v1374
      %v1445 = vpop.f32.mrb[0].mxu0
      %v1446 = vadd.f32 0.0, %v1445
      %v1447 = vpop.f32.mrb[0].mxu0
      %1448 = vmatprep.mubr.f32.mxu0 0.0
      %1449 = vmatmul.mubr.f32.gmra.mrb[0].mxu0 %v1377
      %v1450 = vpop.f32.mrb[0].mxu0
      %v1451 = vadd.f32 0.0, %v1450
      %v1452 = vpop.f32.mrb[0].mxu0
      %1453 = vdwg.mxu0
      %1454 = vrot.lane.b32.xlu0 %v1046, 112
      %v1455 = vpop.permute.xlu0 %1454
      %1456 = vrot.lane.b32.xlu0 %v1051, 112
      %v1457 = vpop.permute.xlu0 %1456
      %1458 = vrot.lane.b32.xlu0 %v1046, 80
      %v1459 = vpop.permute.xlu0 %1458
      %1460 = vrot.lane.b32.xlu0 %v1051, 80
      %v1461 = vpop.permute.xlu0 %1460
      %v1462 = vsel %vm1060, %v1455, 0
      %v1464 = vsel %vm1060, %v1457, 0
      %v1466 = vsel %vm1060, %v1459, 0
      %v1468 = vsel %vm1060, %v1461, 0
      %1470 = vmatprep.subr.mxu0 0.0
      %1471 = vmatpush1.xpose.msra.mxu0 %v1466
      %1472 = vmatprep.subr.mxu0 0.0
      %1473 = vmatpush1.xpose.msra.mxu0 %v1468
      %1474 = vmatprep.subr.mxu0 0.0
      %1475 = vmatpush1.xpose.msra.mxu0 0.0
      %1476 = vmatprep.subr.mxu0 0.0
      %1477 = vmatpush1.xpose.msra.mxu0 0.0
      %1478 = vmatprep.subr.mxu0 0.0
      %1479 = vmatpush1.xpose.msra.mxu0 0.0
      %1480 = vmatprep.subr.mxu0 0.0
      %1481 = vmatpush1.xpose.msra.mxu0 0.0
      %1482 = vmatprep.subr.mxu0 0.0
      %1483 = vmatpush1.xpose.msra.mxu0 0.0
      %1484 = vmatprep.subr.mxu0 0.0
      %1485 = vmatpush1.xpose.msra.mxu0 0.0
      %1486 = vmatprep.subr.mxu0 0.0
      %1487 = vmatpush1.xpose.msra.mxu0 0.0
      %1488 = vmatprep.subr.mxu0 0.0
      %1489 = vmatpush1.xpose.msra.mxu0 0.0
      %1490 = vmatprep.subr.mxu0 0.0
      %1491 = vmatpush1.xpose.msra.mxu0 0.0
      %1492 = vmatprep.subr.mxu0 0.0
      %1493 = vmatpush1.xpose.msra.mxu0 0.0
      %1494 = vmatprep.subr.mxu0 0.0
      %1495 = vmatpush1.xpose.msra.mxu0 0.0
      %1496 = vmatprep.subr.mxu0 0.0
      %1497 = vmatpush1.xpose.msra.mxu0 0.0
      %1498 = vmatprep.subr.mxu0 0.0
      %1499 = vmatpush1.xpose.msra.mxu0 0.0
      %1500 = vmatprep.subr.mxu0 0.0
      %1501 = vmatpush1.xpose.msra.mxu0 0.0
      %1502 = vmatprep.subr.mxu0 0.0
      %1503 = vmatpush1.xpose.msra.mxu0 0.0
      %1504 = vmatprep.subr.mxu0 0.0
      %1505 = vmatpush1.xpose.msra.mxu0 0.0
      %1506 = vmatprep.subr.mxu0 0.0
      %1507 = vmatpush1.xpose.msra.mxu0 0.0
      %1508 = vmatprep.subr.mxu0 0.0
      %1509 = vmatpush1.xpose.msra.mxu0 0.0
      %1510 = vmatprep.subr.mxu0 0.0
      %1511 = vmatpush1.xpose.msra.mxu0 0.0
      %1512 = vmatprep.subr.mxu0 0.0
      %1513 = vmatpush1.xpose.msra.mxu0 0.0
      %1514 = vmatprep.subr.mxu0 0.0
      %1515 = vmatpush1.xpose.msra.mxu0 0.0
      %1516 = vmatprep.subr.mxu0 0.0
      %1517 = vmatpush1.xpose.msra.mxu0 0.0
      %1518 = vmatprep.subr.mxu0 0.0
      %1519 = vmatpush1.xpose.msra.mxu0 0.0
      %1520 = vmatprep.subr.mxu0 0.0
      %1521 = vmatpush1.xpose.msra.mxu0 0.0
      %1522 = vmatprep.subr.mxu0 0.0
      %1523 = vmatpush1.xpose.msra.mxu0 0.0
      %1524 = vmatprep.subr.mxu0 0.0
      %1525 = vmatpush1.xpose.msra.mxu0 0.0
      %1526 = vmatprep.subr.mxu0 0.0
      %1527 = vmatpush1.xpose.msra.mxu0 0.0
      %1528 = vmatprep.subr.mxu0 0.0
      %1529 = vmatpush1.xpose.msra.mxu0 0.0
      %1530 = vmatprep.subr.mxu0 0.0
      %1531 = vmatpush1.xpose.msra.mxu0 0.0
      %1532 = vmatprep.subr.mxu0 0.0
      %1533 = vmatpush1.xpose.msra.mxu0 0.0
      %1534 = vmatprep.mubr.f32.mxu0 0.0
      %1535 = vmatmul.mubr.f32.gmra.mrb[0].mxu0 %v1462
      %v1536 = vpop.f32.mrb[0].mxu0
      %v1537 = vadd.f32 0.0, %v1536
      %v1538 = vpop.f32.mrb[0].mxu0
      %1539 = vmatprep.mubr.f32.mxu0 0.0
      %1540 = vmatmul.mubr.f32.gmra.mrb[0].mxu0 %v1464
      %v1541 = vpop.f32.mrb[0].mxu0
      %v1542 = vadd.f32 0.0, %v1541
      %v1543 = vpop.f32.mrb[0].mxu0
      %1544 = vdwg.mxu0
      %v1545 = vsel %vm1144, %v1537, -inf
      %1546 = vmax.xlane.f32.xlu0 %v1545
      %v1547 = vpop.xlane.xlu0 %1546
      %v1548 = vsel %vm1144, %v1542, -inf
      %1549 = vmax.xlane.f32.xlu0 %v1548
      %v1550 = vpop.xlane.xlu0 %1549
      %v1551 = vsub.f32 %v1537, %v1547
      %v1552 = vsub.f32 %v1542, %v1550
      %v1553 = vmul.f32 %v1551, 1.442695
      %v1554 = vpow.pop %v1553
      %v1555 = vmul.f32 %v1552, 1.442695
      %v1556 = vpow.pop %v1555
      %v1557 = vsel %vm1144, %v1554, 0.0
      %1558 = vadd.xlane.f32.xlu0 %v1557
      %v1559 = vpop.xlane.xlu0 %1558
      %v1560 = vsel %vm1144, %v1556, 0.0
      %1561 = vadd.xlane.f32.xlu0 %v1560
      %v1562 = vpop.xlane.xlu0 %1561
      %v1563 = vrcp.pop %v1559
      %v1564 = vrcp.pop %v1562
      %v1565 = vmul.f32 %v1554, %v1563
      %v1566 = vmul.f32 %v1556, %v1564
      %1567 = vrot.lane.b32.xlu0 %v1046, 48
      %v1568 = vpop.permute.xlu0 %1567
      %1569 = vrot.lane.b32.xlu0 %v1051, 48
      %v1570 = vpop.permute.xlu0 %1569
      %v1574 = vsel %vm1144, %v1565, 0
      %v1577 = vsel %vm1144, %v1566, 0
      %1579 = vmatprep.subr.mxu0 0.0
      %1580 = vmatpush1.msra.mxu0 %v1568
      %1581 = vmatprep.subr.mxu0 0.0
      %1582 = vmatpush1.msra.mxu0 %v1570
      %1583 = vmatprep.subr.mxu0 0.0
      %1584 = vmatpush1.msra.mxu0 0.0
      %1585 = vmatprep.subr.mxu0 0.0
      %1586 = vmatpush1.msra.mxu0 0.0
      %1587 = vmatprep.subr.mxu0 0.0
      %1588 = vmatpush1.msra.mxu0 0.0
      %1589 = vmatprep.subr.mxu0 0.0
      %1590 = vmatpush1.msra.mxu0 0.0
      %1591 = vmatprep.subr.mxu0 0.0
      %1592 = vmatpush1.msra.mxu0 0.0
      %1593 = vmatprep.subr.mxu0 0.0
      %1594 = vmatpush1.msra.mxu0 0.0
      %1595 = vmatprep.subr.mxu0 0.0
      %1596 = vmatpush1.msra.mxu0 0.0
      %1597 = vmatprep.subr.mxu0 0.0
      %1598 = vmatpush1.msra.mxu0 0.0
      %1599 = vmatprep.subr.mxu0 0.0
      %1600 = vmatpush1.msra.mxu0 0.0
      %1601 = vmatprep.subr.mxu0 0.0
      %1602 = vmatpush1.msra.mxu0 0.0
      %1603 = vmatprep.subr.mxu0 0.0
      %1604 = vmatpush1.msra.mxu0 0.0
      %1605 = vmatprep.subr.mxu0 0.0
      %1606 = vmatpush1.msra.mxu0 0.0
      %1607 = vmatprep.subr.mxu0 0.0
      %1608 = vmatpush1.msra.mxu0 0.0
      %1609 = vmatprep.subr.mxu0 0.0
      %1610 = vmatpush1.msra.mxu0 0.0
      %1611 = vmatprep.subr.mxu0 0.0
      %1612 = vmatpush1.msra.mxu0 0.0
      %1613 = vmatprep.subr.mxu0 0.0
      %1614 = vmatpush1.msra.mxu0 0.0
      %1615 = vmatprep.subr.mxu0 0.0
      %1616 = vmatpush1.msra.mxu0 0.0
      %1617 = vmatprep.subr.mxu0 0.0
      %1618 = vmatpush1.msra.mxu0 0.0
      %1619 = vmatprep.subr.mxu0 0.0
      %1620 = vmatpush1.msra.mxu0 0.0
      %1621 = vmatprep.subr.mxu0 0.0
      %1622 = vmatpush1.msra.mxu0 0.0
      %1623 = vmatprep.subr.mxu0 0.0
      %1624 = vmatpush1.msra.mxu0 0.0
      %1625 = vmatprep.subr.mxu0 0.0
      %1626 = vmatpush1.msra.mxu0 0.0
      %1627 = vmatprep.subr.mxu0 0.0
      %1628 = vmatpush1.msra.mxu0 0.0
      %1629 = vmatprep.subr.mxu0 0.0
      %1630 = vmatpush1.msra.mxu0 0.0
      %1631 = vmatprep.subr.mxu0 0.0
      %1632 = vmatpush1.msra.mxu0 0.0
      %1633 = vmatprep.subr.mxu0 0.0
      %1634 = vmatpush1.msra.mxu0 0.0
      %1635 = vmatprep.subr.mxu0 0.0
      %1636 = vmatpush1.msra.mxu0 0.0
      %1637 = vmatprep.subr.mxu0 0.0
      %1638 = vmatpush1.msra.mxu0 0.0
      %1639 = vmatprep.subr.mxu0 0.0
      %1640 = vmatpush1.msra.mxu0 0.0
      %1641 = vmatprep.subr.mxu0 0.0
      %1642 = vmatpush1.msra.mxu0 0.0
      %1643 = vmatprep.mubr.f32.mxu0 0.0
      %1644 = vmatmul.mubr.f32.gmra.mrb[0].mxu0 %v1574
      %v1645 = vpop.f32.mrb[0].mxu0
      %v1646 = vadd.f32 0.0, %v1645
      %v1647 = vpop.f32.mrb[0].mxu0
      %1648 = vmatprep.mubr.f32.mxu0 0.0
      %1649 = vmatmul.mubr.f32.gmra.mrb[0].mxu0 %v1577
      %v1650 = vpop.f32.mrb[0].mxu0
      %v1651 = vadd.f32 0.0, %v1650
      %v1652 = vpop.f32.mrb[0].mxu0
      %1653 = vdwg.mxu0
      %1654 = vrot.lane.b32.xlu0 %v1046, 104
      %v1655 = vpop.permute.xlu0 %1654
      %1656 = vrot.lane.b32.xlu0 %v1051, 104
      %v1657 = vpop.permute.xlu0 %1656
      %1658 = vrot.lane.b32.xlu0 %v1046, 72
      %v1659 = vpop.permute.xlu0 %1658
      %1660 = vrot.lane.b32.xlu0 %v1051, 72
      %v1661 = vpop.permute.xlu0 %1660
      %v1662 = vsel %vm1060, %v1655, 0
      %v1664 = vsel %vm1060, %v1657, 0
      %v1666 = vsel %vm1060, %v1659, 0
      %v1668 = vsel %vm1060, %v1661, 0
      %1670 = vmatprep.subr.mxu0 0.0
      %1671 = vmatpush1.xpose.msra.mxu0 %v1666
      %1672 = vmatprep.subr.mxu0 0.0
      %1673 = vmatpush1.xpose.msra.mxu0 %v1668
      %1674 = vmatprep.subr.mxu0 0.0
      %1675 = vmatpush1.xpose.msra.mxu0 0.0
      %1676 = vmatprep.subr.mxu0 0.0
      %1677 = vmatpush1.xpose.msra.mxu0 0.0
      %1678 = vmatprep.subr.mxu0 0.0
      %1679 = vmatpush1.xpose.msra.mxu0 0.0
      %1680 = vmatprep.subr.mxu0 0.0
      %1681 = vmatpush1.xpose.msra.mxu0 0.0
      %1682 = vmatprep.subr.mxu0 0.0
      %1683 = vmatpush1.xpose.msra.mxu0 0.0
      %1684 = vmatprep.subr.mxu0 0.0
      %1685 = vmatpush1.xpose.msra.mxu0 0.0
      %1686 = vmatprep.subr.mxu0 0.0
      %1687 = vmatpush1.xpose.msra.mxu0 0.0
      %1688 = vmatprep.subr.mxu0 0.0
      %1689 = vmatpush1.xpose.msra.mxu0 0.0
      %1690 = vmatprep.subr.mxu0 0.0
      %1691 = vmatpush1.xpose.msra.mxu0 0.0
      %1692 = vmatprep.subr.mxu0 0.0
      %1693 = vmatpush1.xpose.msra.mxu0 0.0
      %1694 = vmatprep.subr.mxu0 0.0
      %1695 = vmatpush1.xpose.msra.mxu0 0.0
      %1696 = vmatprep.subr.mxu0 0.0
      %1697 = vmatpush1.xpose.msra.mxu0 0.0
      %1698 = vmatprep.subr.mxu0 0.0
      %1699 = vmatpush1.xpose.msra.mxu0 0.0
      %1700 = vmatprep.subr.mxu0 0.0
      %1701 = vmatpush1.xpose.msra.mxu0 0.0
      %1702 = vmatprep.subr.mxu0 0.0
      %1703 = vmatpush1.xpose.msra.mxu0 0.0
      %1704 = vmatprep.subr.mxu0 0.0
      %1705 = vmatpush1.xpose.msra.mxu0 0.0
      %1706 = vmatprep.subr.mxu0 0.0
      %1707 = vmatpush1.xpose.msra.mxu0 0.0
      %1708 = vmatprep.subr.mxu0 0.0
      %1709 = vmatpush1.xpose.msra.mxu0 0.0
      %1710 = vmatprep.subr.mxu0 0.0
      %1711 = vmatpush1.xpose.msra.mxu0 0.0
      %1712 = vmatprep.subr.mxu0 0.0
      %1713 = vmatpush1.xpose.msra.mxu0 0.0
      %1714 = vmatprep.subr.mxu0 0.0
      %1715 = vmatpush1.xpose.msra.mxu0 0.0
      %1716 = vmatprep.subr.mxu0 0.0
      %1717 = vmatpush1.xpose.msra.mxu0 0.0
      %1718 = vmatprep.subr.mxu0 0.0
      %1719 = vmatpush1.xpose.msra.mxu0 0.0
      %1720 = vmatprep.subr.mxu0 0.0
      %1721 = vmatpush1.xpose.msra.mxu0 0.0
      %1722 = vmatprep.subr.mxu0 0.0
      %1723 = vmatpush1.xpose.msra.mxu0 0.0
      %1724 = vmatprep.subr.mxu0 0.0
      %1725 = vmatpush1.xpose.msra.mxu0 0.0
      %1726 = vmatprep.subr.mxu0 0.0
      %1727 = vmatpush1.xpose.msra.mxu0 0.0
      %1728 = vmatprep.subr.mxu0 0.0
      %1729 = vmatpush1.xpose.msra.mxu0 0.0
      %1730 = vmatprep.subr.mxu0 0.0
      %1731 = vmatpush1.xpose.msra.mxu0 0.0
      %1732 = vmatprep.subr.mxu0 0.0
      %1733 = vmatpush1.xpose.msra.mxu0 0.0
      %1734 = vmatprep.mubr.f32.mxu0 0.0
      %1735 = vmatmul.mubr.f32.gmra.mrb[0].mxu0 %v1662
      %v1736 = vpop.f32.mrb[0].mxu0
      %v1737 = vadd.f32 0.0, %v1736
      %v1738 = vpop.f32.mrb[0].mxu0
      %1739 = vmatprep.mubr.f32.mxu0 0.0
      %1740 = vmatmul.mubr.f32.gmra.mrb[0].mxu0 %v1664
      %v1741 = vpop.f32.mrb[0].mxu0
      %v1742 = vadd.f32 0.0, %v1741
      %v1743 = vpop.f32.mrb[0].mxu0
      %1744 = vdwg.mxu0
      %v1745 = vsel %vm1144, %v1737, -inf
      %1746 = vmax.xlane.f32.xlu0 %v1745
      %v1747 = vpop.xlane.xlu0 %1746
      %v1748 = vsel %vm1144, %v1742, -inf
      %1749 = vmax.xlane.f32.xlu0 %v1748
      %v1750 = vpop.xlane.xlu0 %1749
      %v1751 = vsub.f32 %v1737, %v1747
      %v1752 = vsub.f32 %v1742, %v1750
      %v1753 = vmul.f32 %v1751, 1.442695
      %v1754 = vpow.pop %v1753
      %v1755 = vmul.f32 %v1752, 1.442695
      %v1756 = vpow.pop %v1755
      %v1757 = vsel %vm1144, %v1754, 0.0
      %1758 = vadd.xlane.f32.xlu0 %v1757
      %v1759 = vpop.xlane.xlu0 %1758
      %v1760 = vsel %vm1144, %v1756, 0.0
      %1761 = vadd.xlane.f32.xlu0 %v1760
      %v1762 = vpop.xlane.xlu0 %1761
      %v1763 = vrcp.pop %v1759
      %v1764 = vrcp.pop %v1762
      %v1765 = vmul.f32 %v1754, %v1763
      %v1766 = vmul.f32 %v1756, %v1764
      %1767 = vrot.lane.b32.xlu0 %v1046, 40
      %v1768 = vpop.permute.xlu0 %1767
      %1769 = vrot.lane.b32.xlu0 %v1051, 40
      %v1770 = vpop.permute.xlu0 %1769
      %v1774 = vsel %vm1144, %v1765, 0
      %v1777 = vsel %vm1144, %v1766, 0
      %1779 = vmatprep.subr.mxu0 0.0
      %1780 = vmatpush1.msra.mxu0 %v1768
      %1781 = vmatprep.subr.mxu0 0.0
      %1782 = vmatpush1.msra.mxu0 %v1770
      %1783 = vmatprep.subr.mxu0 0.0
      %1784 = vmatpush1.msra.mxu0 0.0
      %1785 = vmatprep.subr.mxu0 0.0
      %1786 = vmatpush1.msra.mxu0 0.0
      %1787 = vmatprep.subr.mxu0 0.0
      %1788 = vmatpush1.msra.mxu0 0.0
      %1789 = vmatprep.subr.mxu0 0.0
      %1790 = vmatpush1.msra.mxu0 0.0
      %1791 = vmatprep.subr.mxu0 0.0
      %1792 = vmatpush1.msra.mxu0 0.0
      %1793 = vmatprep.subr.mxu0 0.0
      %1794 = vmatpush1.msra.mxu0 0.0
      %1795 = vmatprep.subr.mxu0 0.0
      %1796 = vmatpush1.msra.mxu0 0.0
      %1797 = vmatprep.subr.mxu0 0.0
      %1798 = vmatpush1.msra.mxu0 0.0
      %1799 = vmatprep.subr.mxu0 0.0
      %1800 = vmatpush1.msra.mxu0 0.0
      %1801 = vmatprep.subr.mxu0 0.0
      %1802 = vmatpush1.msra.mxu0 0.0
      %1803 = vmatprep.subr.mxu0 0.0
      %1804 = vmatpush1.msra.mxu0 0.0
      %1805 = vmatprep.subr.mxu0 0.0
      %1806 = vmatpush1.msra.mxu0 0.0
      %1807 = vmatprep.subr.mxu0 0.0
      %1808 = vmatpush1.msra.mxu0 0.0
      %1809 = vmatprep.subr.mxu0 0.0
      %1810 = vmatpush1.msra.mxu0 0.0
      %1811 = vmatprep.subr.mxu0 0.0
      %1812 = vmatpush1.msra.mxu0 0.0
      %1813 = vmatprep.subr.mxu0 0.0
      %1814 = vmatpush1.msra.mxu0 0.0
      %1815 = vmatprep.subr.mxu0 0.0
      %1816 = vmatpush1.msra.mxu0 0.0
      %1817 = vmatprep.subr.mxu0 0.0
      %1818 = vmatpush1.msra.mxu0 0.0
      %1819 = vmatprep.subr.mxu0 0.0
      %1820 = vmatpush1.msra.mxu0 0.0
      %1821 = vmatprep.subr.mxu0 0.0
      %1822 = vmatpush1.msra.mxu0 0.0
      %1823 = vmatprep.subr.mxu0 0.0
      %1824 = vmatpush1.msra.mxu0 0.0
      %1825 = vmatprep.subr.mxu0 0.0
      %1826 = vmatpush1.msra.mxu0 0.0
      %1827 = vmatprep.subr.mxu0 0.0
      %1828 = vmatpush1.msra.mxu0 0.0
      %1829 = vmatprep.subr.mxu0 0.0
      %1830 = vmatpush1.msra.mxu0 0.0
      %1831 = vmatprep.subr.mxu0 0.0
      %1832 = vmatpush1.msra.mxu0 0.0
      %1833 = vmatprep.subr.mxu0 0.0
      %1834 = vmatpush1.msra.mxu0 0.0
      %1835 = vmatprep.subr.mxu0 0.0
      %1836 = vmatpush1.msra.mxu0 0.0
      %1837 = vmatprep.subr.mxu0 0.0
      %1838 = vmatpush1.msra.mxu0 0.0
      %1839 = vmatprep.subr.mxu0 0.0
      %1840 = vmatpush1.msra.mxu0 0.0
      %1841 = vmatprep.subr.mxu0 0.0
      %1842 = vmatpush1.msra.mxu0 0.0
      %1843 = vmatprep.mubr.f32.mxu0 0.0
      %1844 = vmatmul.mubr.f32.gmra.mrb[0].mxu0 %v1774
      %v1845 = vpop.f32.mrb[0].mxu0
      %v1846 = vadd.f32 0.0, %v1845
      %v1847 = vpop.f32.mrb[0].mxu0
      %1848 = vmatprep.mubr.f32.mxu0 0.0
      %1849 = vmatmul.mubr.f32.gmra.mrb[0].mxu0 %v1777
      %v1850 = vpop.f32.mrb[0].mxu0
      %v1851 = vadd.f32 0.0, %v1850
      %v1852 = vpop.f32.mrb[0].mxu0
      %1853 = vdwg.mxu0
      %1856 = vrot.lane.b32.xlu0 %v1446, 8
      %v1857 = vpop.permute.xlu0 %1856
      %1858 = vrot.lane.b32.xlu0 %v1451, 8
      %v1859 = vpop.permute.xlu0 %1858
      %1864 = vrot.lane.b32.xlu0 %v1646, 16
      %v1865 = vpop.permute.xlu0 %1864
      %1866 = vrot.lane.b32.xlu0 %v1651, 16
      %v1867 = vpop.permute.xlu0 %1866
      %1872 = vrot.lane.b32.xlu0 %v1846, 24
      %v1873 = vpop.permute.xlu0 %1872
      %1874 = vrot.lane.b32.xlu0 %v1851, 24
      %v1875 = vpop.permute.xlu0 %1874
      %v1878 = vsel %vm1060, %v1246, %v1857
      %v1879 = vsel %vm1060, %v1251, %v1859
      %v1880 = vsel %vm1144, %v1878, %v1865
      %v1881 = vsel %vm1144, %v1879, %v1867
      %vm1882 = vcmask 195584
      %v1883 = vsel %vm1882, %v1880, %v1873
      %v1884 = vsel %vm1882, %v1881, %v1875
      %v1885 = vld [vmem:[%s569] sm:$0xff]
      %v1886 = vld [vmem:[%s569 + $0x8] sm:$0xff]
      %v1887 = vld [vmem:[%s569 + $0x10] sm:$0xff]
      %v1888 = vld [vmem:[%s569 + $0x18] sm:$0xff]
      %v1889 = vld [vmem:[%s573] sm:$0x1]
      %v1890 = vlaneseq
      %v1891 = vshrl.u32 %v1890, 7
      %v1892 = vsub.s32 0, %v1891
      %v1893 = vrot.slane %v1889, %v1892
      %v1895 = vsel %vm972, %v1883, 0
      %v1898 = vsel %vm972, %v1884, 0
      %1900 = vmatprep.subr.mxu0 0.0
      %1901 = vmatpush1.msra.mxu0 %v1885
      %1902 = vmatprep.subr.mxu0 0.0
      %1903 = vmatpush1.msra.mxu0 %v1886
      %1904 = vmatprep.subr.mxu0 0.0
      %1905 = vmatpush1.msra.mxu0 %v1887
      %1906 = vmatprep.subr.mxu0 0.0
      %1907 = vmatpush1.msra.mxu0 %v1888
      %1908 = vmatprep.subr.mxu0 0.0
      %1909 = vmatpush1.msra.mxu0 0.0
      %1910 = vmatprep.subr.mxu0 0.0
      %1911 = vmatpush1.msra.mxu0 0.0
      %1912 = vmatprep.subr.mxu0 0.0
      %1913 = vmatpush1.msra.mxu0 0.0
      %1914 = vmatprep.subr.mxu0 0.0
      %1915 = vmatpush1.msra.mxu0 0.0
      %1916 = vmatprep.subr.mxu0 0.0
      %1917 = vmatpush1.msra.mxu0 0.0
      %1918 = vmatprep.subr.mxu0 0.0
      %1919 = vmatpush1.msra.mxu0 0.0
      %1920 = vmatprep.subr.mxu0 0.0
      %1921 = vmatpush1.msra.mxu0 0.0
      %1922 = vmatprep.subr.mxu0 0.0
      %1923 = vmatpush1.msra.mxu0 0.0
      %1924 = vmatprep.subr.mxu0 0.0
      %1925 = vmatpush1.msra.mxu0 0.0
      %1926 = vmatprep.subr.mxu0 0.0
      %1927 = vmatpush1.msra.mxu0 0.0
      %1928 = vmatprep.subr.mxu0 0.0
      %1929 = vmatpush1.msra.mxu0 0.0
      %1930 = vmatprep.subr.mxu0 0.0
      %1931 = vmatpush1.msra.mxu0 0.0
      %1932 = vmatprep.subr.mxu0 0.0
      %1933 = vmatpush1.msra.mxu0 0.0
      %1934 = vmatprep.subr.mxu0 0.0
      %1935 = vmatpush1.msra.mxu0 0.0
      %1936 = vmatprep.subr.mxu0 0.0
      %1937 = vmatpush1.msra.mxu0 0.0
      %1938 = vmatprep.subr.mxu0 0.0
      %1939 = vmatpush1.msra.mxu0 0.0
      %1940 = vmatprep.subr.mxu0 0.0
      %1941 = vmatpush1.msra.mxu0 0.0
      %1942 = vmatprep.subr.mxu0 0.0
      %1943 = vmatpush1.msra.mxu0 0.0
      %1944 = vmatprep.subr.mxu0 0.0
      %1945 = vmatpush1.msra.mxu0 0.0
      %1946 = vmatprep.subr.mxu0 0.0
      %1947 = vmatpush1.msra.mxu0 0.0
      %1948 = vmatprep.subr.mxu0 0.0
      %1949 = vmatpush1.msra.mxu0 0.0
      %1950 = vmatprep.subr.mxu0 0.0
      %1951 = vmatpush1.msra.mxu0 0.0
      %1952 = vmatprep.subr.mxu0 0.0
      %1953 = vmatpush1.msra.mxu0 0.0
      %1954 = vmatprep.subr.mxu0 0.0
      %1955 = vmatpush1.msra.mxu0 0.0
      %1956 = vmatprep.subr.mxu0 0.0
      %1957 = vmatpush1.msra.mxu0 0.0
      %1958 = vmatprep.subr.mxu0 0.0
      %1959 = vmatpush1.msra.mxu0 0.0
      %1960 = vmatprep.subr.mxu0 0.0
      %1961 = vmatpush1.msra.mxu0 0.0
      %1962 = vmatprep.subr.mxu0 0.0
      %1963 = vmatpush1.msra.mxu0 0.0
      %1964 = vmatprep.mubr.f32.mxu0 0.0
      %1965 = vmatmul.mubr.f32.gmra.mrb[0].mxu0 %v1895
      %v1966 = vpop.f32.mrb[0].mxu0
      %v1967 = vadd.f32 %v1893, %v1966
      %v1968 = vpop.f32.mrb[0].mxu0
      %1969 = vmatprep.mubr.f32.mxu0 0.0
      %1970 = vmatmul.mubr.f32.gmra.mrb[0].mxu0 %v1898
      %v1971 = vpop.f32.mrb[0].mxu0
      %v1972 = vadd.f32 %v1893, %v1971
      %v1973 = vpop.f32.mrb[0].mxu0
      %1974 = vdwg.mxu0
      %v1975 = vadd.f32 %v959, %v1967
      %v1976 = vadd.f32 %v960, %v1972
      %v1977 = vld [vmem:[%s573 + $0x1] sm:$0x1]
      %v1978 = vld [vmem:[%s573 + $0x2] sm:$0x1]
      %v1979 = vsel %vm972, %v1975, 0.0
      %1980 = vadd.xlane.f32.xlu0 %v1979
      %v1981 = vpop.xlane.xlu0 %1980
      %v1982 = vsel %vm972, %v1976, 0.0
      %1983 = vadd.xlane.f32.xlu0 %v1982
      %v1984 = vpop.xlane.xlu0 %1983
      %v1985 = vrcp.pop 32.0
      %v1986 = vmul.f32 %v1981, %v1985
      %v1987 = vmul.f32 %v1984, %v1985
      %v1988 = vmul.f32 %v1975, %v1975
      %v1989 = vmul.f32 %v1976, %v1976
      %v1990 = vsel %vm972, %v1988, 0.0
      %1991 = vadd.xlane.f32.xlu0 %v1990
      %v1992 = vpop.xlane.xlu0 %1991
      %v1993 = vsel %vm972, %v1989, 0.0
      %1994 = vadd.xlane.f32.xlu0 %v1993
      %v1995 = vpop.xlane.xlu0 %1994
      %v1996 = vmul.f32 %v1992, %v1985
      %v1997 = vmul.f32 %v1995, %v1985
      %v1998 = vmul.f32 %v1986, %v1986
      %v1999 = vmul.f32 %v1987, %v1987
      %v2000 = vsub.f32 %v1996, %v1998
      %v2001 = vsub.f32 %v1997, %v1999
      %v2002 = vmax.f32 %v2000, 0.0
      %v2003 = vmax.f32 %v2001, 0.0
      %v2004 = vsub.f32 %v1975, %v1986
      %v2005 = vsub.f32 %v1976, %v1987
      %v2006 = vadd.f32 %v2002, 1e-05
      %v2007 = vadd.f32 %v2003, 1e-05
      %v2008 = vrsqrt.pop %v2006
      %v2009 = vrsqrt.pop %v2007
      %v2010 = vmul.f32 %v2004, %v2008
      %v2011 = vmul.f32 %v2005, %v2009
      %v2012 = vlaneseq
      %v2013 = vshrl.u32 %v2012, 7
      %v2014 = vsub.s32 0, %v2013
      %v2015 = vrot.slane %v1977, %v2014
      %v2016 = vmul.f32 %v2010, %v2015
      %v2017 = vmul.f32 %v2011, %v2015
      %v2018 = vlaneseq
      %v2019 = vshrl.u32 %v2018, 7
      %v2020 = vsub.s32 0, %v2019
      %v2021 = vrot.slane %v1978, %v2020
      %v2022 = vadd.f32 %v2016, %v2021
      %v2023 = vadd.f32 %v2017, %v2021
      %v2024 = vpack.c.bf16 %v2023, %v2022
      %v2025 = vld [vmem:[%s578] sm:$0xff]
      %v2026 = vld [vmem:[%s578 + $0x8] sm:$0xff]
      %v2027 = vld [vmem:[%s578 + $0x40] sm:$0xff]
      %v2028 = vld [vmem:[%s578 + $0x48] sm:$0xff]
      %v2029 = vld [vmem:[%s578 + $0x80] sm:$0xff]
      %v2030 = vld [vmem:[%s578 + $0x88] sm:$0xff]
      %v2031 = vld [vmem:[%s578 + $0xc0] sm:$0xff]
      %v2032 = vld [vmem:[%s578 + $0xc8] sm:$0xff]
      %v2033 = vld [vmem:[%s582] sm:$0xf]
      %v2035 = vlaneseq
      %v2036 = vshrl.u32 %v2035, 7
      %v2037 = vsub.s32 0, %v2036
      %v2038 = vrot.slane %v2033, %v2037
      %v2039 = vlaneseq
      %v2040 = vshrl.u32 %v2039, 7
      %v2041 = vsub.s32 1, %v2040
      %v2042 = vrot.slane %v2033, %v2041
      %v2043 = vlaneseq
      %v2044 = vshrl.u32 %v2043, 7
      %v2045 = vsub.s32 2, %v2044
      %v2046 = vrot.slane %v2033, %v2045
      %v2047 = vlaneseq
      %v2048 = vshrl.u32 %v2047, 7
      %v2049 = vsub.s32 3, %v2048
      %v2050 = vrot.slane %v2033, %v2049
      %v2063 = vunpack.c.l.b16 %v2025
      %v2064 = vunpack.c.h.b16 %v2025
      %v2065 = vunpack.c.l.b16 %v2026
      %v2066 = vunpack.c.h.b16 %v2026
      %v2067 = vunpack.c.l.b16 %v2027
      %v2068 = vunpack.c.h.b16 %v2027
      %v2069 = vunpack.c.l.b16 %v2028
      %v2070 = vunpack.c.h.b16 %v2028
      %v2071 = vunpack.c.l.b16 %v2029
      %v2072 = vunpack.c.h.b16 %v2029
      %v2073 = vunpack.c.l.b16 %v2030
      %v2074 = vunpack.c.h.b16 %v2030
      %v2075 = vunpack.c.l.b16 %v2031
      %v2076 = vunpack.c.h.b16 %v2031
      %v2077 = vunpack.c.l.b16 %v2032
      %v2078 = vunpack.c.h.b16 %v2032
      %v2079 = vpack.c.b16 %v2067, %v2063
      %v2080 = vpack.c.b16 %v2068, %v2064
      %v2081 = vpack.c.b16 %v2069, %v2065
      %v2082 = vpack.c.b16 %v2070, %v2066
      %v2083 = vpack.c.b16 %v2075, %v2071
      %v2084 = vpack.c.b16 %v2076, %v2072
      %v2085 = vpack.c.b16 %v2077, %v2073
      %v2086 = vpack.c.b16 %v2078, %v2074
      %v2096 = vsel %vm972, %v2024, 0
      %2098 = vmatprep.subr.bf16.mxu0 %v2080
      %2099 = vmatpush1.bf16.msra.mxu0 %v2079
      %2100 = vmatprep.subr.bf16.mxu0 %v2084
      %2101 = vmatpush1.bf16.msra.mxu0 %v2083
      %2102 = vmatprep.subr.bf16.mxu0 0
      %2103 = vmatpush1.bf16.msra.mxu0 0
      %2104 = vmatprep.subr.bf16.mxu0 0
      %2105 = vmatpush1.bf16.msra.mxu0 0
      %2106 = vmatprep.subr.bf16.mxu0 0
      %2107 = vmatpush1.bf16.msra.mxu0 0
      %2108 = vmatprep.subr.bf16.mxu0 0
      %2109 = vmatpush1.bf16.msra.mxu0 0
      %2110 = vmatprep.subr.bf16.mxu0 0
      %2111 = vmatpush1.bf16.msra.mxu0 0
      %2112 = vmatprep.subr.bf16.mxu0 0
      %2113 = vmatpush1.bf16.msra.mxu0 0
      %2114 = vmatprep.subr.bf16.mxu0 0
      %2115 = vmatpush1.bf16.msra.mxu0 0
      %2116 = vmatprep.subr.bf16.mxu0 0
      %2117 = vmatpush1.bf16.msra.mxu0 0
      %2118 = vmatprep.subr.bf16.mxu0 0
      %2119 = vmatpush1.bf16.msra.mxu0 0
      %2120 = vmatprep.subr.bf16.mxu0 0
      %2121 = vmatpush1.bf16.msra.mxu0 0
      %2122 = vmatprep.subr.bf16.mxu0 0
      %2123 = vmatpush1.bf16.msra.mxu0 0
      %2124 = vmatprep.subr.bf16.mxu0 0
      %2125 = vmatpush1.bf16.msra.mxu0 0
      %2126 = vmatprep.subr.bf16.mxu0 0
      %2127 = vmatpush1.bf16.msra.mxu0 0
      %2128 = vmatprep.subr.bf16.mxu0 0
      %2129 = vmatpush1.bf16.msra.mxu0 0
      %2130 = vmatprep.mubr.bf16.mxu0 0
      %2131 = vmatmul.mubr.bf16.gmra.mrb[0].mxu0 %v2096
      %v2132 = vpop.f32.mrb[0].mxu0
      %v2133 = vadd.f32 %v2038, %v2132
      %v2134 = vpop.f32.mrb[0].mxu0
      %v2135 = vadd.f32 %v2042, %v2134
      %v2136 = vpop.f32.mrb[0].mxu0
      %v2137 = vadd.f32 %v2038, %v2136
      %v2138 = vpop.f32.mrb[0].mxu0
      %v2139 = vadd.f32 %v2042, %v2138
      %2140 = vdwg.mxu0
      %2141 = vmatprep.subr.bf16.mxu0 %v2082
      %2142 = vmatpush1.bf16.msra.mxu0 %v2081
      %2143 = vmatprep.subr.bf16.mxu0 %v2086
      %2144 = vmatpush1.bf16.msra.mxu0 %v2085
      %2145 = vmatprep.subr.bf16.mxu0 0
      %2146 = vmatpush1.bf16.msra.mxu0 0
      %2147 = vmatprep.subr.bf16.mxu0 0
      %2148 = vmatpush1.bf16.msra.mxu0 0
      %2149 = vmatprep.subr.bf16.mxu0 0
      %2150 = vmatpush1.bf16.msra.mxu0 0
      %2151 = vmatprep.subr.bf16.mxu0 0
      %2152 = vmatpush1.bf16.msra.mxu0 0
      %2153 = vmatprep.subr.bf16.mxu0 0
      %2154 = vmatpush1.bf16.msra.mxu0 0
      %2155 = vmatprep.subr.bf16.mxu0 0
      %2156 = vmatpush1.bf16.msra.mxu0 0
      %2157 = vmatprep.subr.bf16.mxu0 0
      %2158 = vmatpush1.bf16.msra.mxu0 0
      %2159 = vmatprep.subr.bf16.mxu0 0
      %2160 = vmatpush1.bf16.msra.mxu0 0
      %2161 = vmatprep.subr.bf16.mxu0 0
      %2162 = vmatpush1.bf16.msra.mxu0 0
      %2163 = vmatprep.subr.bf16.mxu0 0
      %2164 = vmatpush1.bf16.msra.mxu0 0
      %2165 = vmatprep.subr.bf16.mxu0 0
      %2166 = vmatpush1.bf16.msra.mxu0 0
      %2167 = vmatprep.subr.bf16.mxu0 0
      %2168 = vmatpush1.bf16.msra.mxu0 0
      %2169 = vmatprep.subr.bf16.mxu0 0
      %2170 = vmatpush1.bf16.msra.mxu0 0
      %2171 = vmatprep.subr.bf16.mxu0 0
      %2172 = vmatpush1.bf16.msra.mxu0 0
      %2173 = vmatprep.mubr.bf16.mxu0 0
      %2174 = vmatmul.mubr.bf16.gmra.mrb[0].mxu0 %v2096
      %v2175 = vpop.f32.mrb[0].mxu0
      %v2176 = vadd.f32 %v2046, %v2175
      %v2177 = vpop.f32.mrb[0].mxu0
      %v2178 = vadd.f32 %v2050, %v2177
      %v2179 = vpop.f32.mrb[0].mxu0
      %v2180 = vadd.f32 %v2046, %v2179
      %v2181 = vpop.f32.mrb[0].mxu0
      %v2182 = vadd.f32 %v2050, %v2181
      %2183 = vdwg.mxu0
      %v2184 = vmax.f32 %v2133, 0.0
      %v2185 = vmax.f32 %v2135, 0.0
      %v2186 = vmax.f32 %v2176, 0.0
      %v2187 = vmax.f32 %v2178, 0.0
      %v2188 = vmax.f32 %v2137, 0.0
      %v2189 = vmax.f32 %v2139, 0.0
      %v2190 = vmax.f32 %v2180, 0.0
      %v2191 = vmax.f32 %v2182, 0.0
      %v2192 = vpack.c.bf16 %v2188, %v2184
      %v2193 = vpack.c.bf16 %v2189, %v2185
      %v2194 = vpack.c.bf16 %v2190, %v2186
      %v2195 = vpack.c.bf16 %v2191, %v2187
      %v2196 = vld [vmem:[%s587] sm:$0xf]
      %v2197 = vld [vmem:[%s587 + $0x4] sm:$0xf]
      %v2198 = vld [vmem:[%s587 + $0x8] sm:$0xf]
      %v2199 = vld [vmem:[%s587 + $0xc] sm:$0xf]
      %v2200 = vld [vmem:[%s587 + $0x10] sm:$0xf]
      %v2201 = vld [vmem:[%s587 + $0x14] sm:$0xf]
      %v2202 = vld [vmem:[%s587 + $0x18] sm:$0xf]
      %v2203 = vld [vmem:[%s587 + $0x1c] sm:$0xf]
      %v2204 = vld [vmem:[%s587 + $0x20] sm:$0xf]
      %v2205 = vld [vmem:[%s587 + $0x24] sm:$0xf]
      %v2206 = vld [vmem:[%s587 + $0x28] sm:$0xf]
      %v2207 = vld [vmem:[%s587 + $0x2c] sm:$0xf]
      %v2208 = vld [vmem:[%s587 + $0x30] sm:$0xf]
      %v2209 = vld [vmem:[%s587 + $0x34] sm:$0xf]
      %v2210 = vld [vmem:[%s587 + $0x38] sm:$0xf]
      %v2211 = vld [vmem:[%s587 + $0x3c] sm:$0xf]
      %v2212 = vld [vmem:[%s587 + $0x40] sm:$0xf]
      %v2213 = vld [vmem:[%s587 + $0x44] sm:$0xf]
      %v2214 = vld [vmem:[%s587 + $0x48] sm:$0xf]
      %v2215 = vld [vmem:[%s587 + $0x4c] sm:$0xf]
      %v2216 = vld [vmem:[%s587 + $0x50] sm:$0xf]
      %v2217 = vld [vmem:[%s587 + $0x54] sm:$0xf]
      %v2218 = vld [vmem:[%s587 + $0x58] sm:$0xf]
      %v2219 = vld [vmem:[%s587 + $0x5c] sm:$0xf]
      %v2220 = vld [vmem:[%s587 + $0x60] sm:$0xf]
      %v2221 = vld [vmem:[%s587 + $0x64] sm:$0xf]
      %v2222 = vld [vmem:[%s587 + $0x68] sm:$0xf]
      %v2223 = vld [vmem:[%s587 + $0x6c] sm:$0xf]
      %v2224 = vld [vmem:[%s587 + $0x70] sm:$0xf]
      %v2225 = vld [vmem:[%s587 + $0x74] sm:$0xf]
      %v2226 = vld [vmem:[%s587 + $0x78] sm:$0xf]
      %v2227 = vld [vmem:[%s587 + $0x7c] sm:$0xf]
      %v2228 = vld [vmem:[%s587 + $0x80] sm:$0xf]
      %v2229 = vld [vmem:[%s587 + $0x84] sm:$0xf]
      %v2230 = vld [vmem:[%s587 + $0x88] sm:$0xf]
      %v2231 = vld [vmem:[%s587 + $0x8c] sm:$0xf]
      %v2232 = vld [vmem:[%s587 + $0x90] sm:$0xf]
      %v2233 = vld [vmem:[%s587 + $0x94] sm:$0xf]
      %v2234 = vld [vmem:[%s587 + $0x98] sm:$0xf]
      %v2235 = vld [vmem:[%s587 + $0x9c] sm:$0xf]
      %v2236 = vld [vmem:[%s587 + $0xa0] sm:$0xf]
      %v2237 = vld [vmem:[%s587 + $0xa4] sm:$0xf]
      %v2238 = vld [vmem:[%s587 + $0xa8] sm:$0xf]
      %v2239 = vld [vmem:[%s587 + $0xac] sm:$0xf]
      %v2240 = vld [vmem:[%s587 + $0xb0] sm:$0xf]
      %v2241 = vld [vmem:[%s587 + $0xb4] sm:$0xf]
      %v2242 = vld [vmem:[%s587 + $0xb8] sm:$0xf]
      %v2243 = vld [vmem:[%s587 + $0xbc] sm:$0xf]
      %v2244 = vld [vmem:[%s587 + $0xc0] sm:$0xf]
      %v2245 = vld [vmem:[%s587 + $0xc4] sm:$0xf]
      %v2246 = vld [vmem:[%s587 + $0xc8] sm:$0xf]
      %v2247 = vld [vmem:[%s587 + $0xcc] sm:$0xf]
      %v2248 = vld [vmem:[%s587 + $0xd0] sm:$0xf]
      %v2249 = vld [vmem:[%s587 + $0xd4] sm:$0xf]
      %v2250 = vld [vmem:[%s587 + $0xd8] sm:$0xf]
      %v2251 = vld [vmem:[%s587 + $0xdc] sm:$0xf]
      %v2252 = vld [vmem:[%s587 + $0xe0] sm:$0xf]
      %v2253 = vld [vmem:[%s587 + $0xe4] sm:$0xf]
      %v2254 = vld [vmem:[%s587 + $0xe8] sm:$0xf]
      %v2255 = vld [vmem:[%s587 + $0xec] sm:$0xf]
      %v2256 = vld [vmem:[%s587 + $0xf0] sm:$0xf]
      %v2257 = vld [vmem:[%s587 + $0xf4] sm:$0xf]
      %v2258 = vld [vmem:[%s587 + $0xf8] sm:$0xf]
      %v2259 = vld [vmem:[%s587 + $0xfc] sm:$0xf]
      %v2260 = vld [vmem:[%s578 + $0x10] sm:$0xff]
      %v2261 = vld [vmem:[%s578 + $0x18] sm:$0xff]
      %v2262 = vld [vmem:[%s578 + $0x50] sm:$0xff]
      %v2263 = vld [vmem:[%s578 + $0x58] sm:$0xff]
      %v2264 = vld [vmem:[%s578 + $0x90] sm:$0xff]
      %v2265 = vld [vmem:[%s578 + $0x98] sm:$0xff]
      %v2266 = vld [vmem:[%s578 + $0xd0] sm:$0xff]
      %v2267 = vld [vmem:[%s578 + $0xd8] sm:$0xff]
      %v2268 = vld [vmem:[%s582 + $0x4] sm:$0xf]
      %v2270 = vlaneseq
      %v2271 = vshrl.u32 %v2270, 7
      %v2272 = vsub.s32 0, %v2271
      %v2273 = vrot.slane %v2268, %v2272
      %v2274 = vlaneseq
      %v2275 = vshrl.u32 %v2274, 7
      %v2276 = vsub.s32 1, %v2275
      %v2277 = vrot.slane %v2268, %v2276
      %v2278 = vlaneseq
      %v2279 = vshrl.u32 %v2278, 7
      %v2280 = vsub.s32 2, %v2279
      %v2281 = vrot.slane %v2268, %v2280
      %v2282 = vlaneseq
      %v2283 = vshrl.u32 %v2282, 7
      %v2284 = vsub.s32 3, %v2283
      %v2285 = vrot.slane %v2268, %v2284
      %v2298 = vunpack.c.l.b16 %v2260
      %v2299 = vunpack.c.h.b16 %v2260
      %v2300 = vunpack.c.l.b16 %v2261
      %v2301 = vunpack.c.h.b16 %v2261
      %v2302 = vunpack.c.l.b16 %v2262
      %v2303 = vunpack.c.h.b16 %v2262
      %v2304 = vunpack.c.l.b16 %v2263
      %v2305 = vunpack.c.h.b16 %v2263
      %v2306 = vunpack.c.l.b16 %v2264
      %v2307 = vunpack.c.h.b16 %v2264
      %v2308 = vunpack.c.l.b16 %v2265
      %v2309 = vunpack.c.h.b16 %v2265
      %v2310 = vunpack.c.l.b16 %v2266
      %v2311 = vunpack.c.h.b16 %v2266
      %v2312 = vunpack.c.l.b16 %v2267
      %v2313 = vunpack.c.h.b16 %v2267
      %v2314 = vpack.c.b16 %v2302, %v2298
      %v2315 = vpack.c.b16 %v2303, %v2299
      %v2316 = vpack.c.b16 %v2304, %v2300
      %v2317 = vpack.c.b16 %v2305, %v2301
      %v2318 = vpack.c.b16 %v2310, %v2306
      %v2319 = vpack.c.b16 %v2311, %v2307
      %v2320 = vpack.c.b16 %v2312, %v2308
      %v2321 = vpack.c.b16 %v2313, %v2309
      %2330 = vmatprep.subr.bf16.mxu0 %v2315
      %2331 = vmatpush1.bf16.msra.mxu0 %v2314
      %2332 = vmatprep.subr.bf16.mxu0 %v2319
      %2333 = vmatpush1.bf16.msra.mxu0 %v2318
      %2334 = vmatprep.subr.bf16.mxu0 0
      %2335 = vmatpush1.bf16.msra.mxu0 0
      %2336 = vmatprep.subr.bf16.mxu0 0
      %2337 = vmatpush1.bf16.msra.mxu0 0
      %2338 = vmatprep.subr.bf16.mxu0 0
      %2339 = vmatpush1.bf16.msra.mxu0 0
      %2340 = vmatprep.subr.bf16.mxu0 0
      %2341 = vmatpush1.bf16.msra.mxu0 0
      %2342 = vmatprep.subr.bf16.mxu0 0
      %2343 = vmatpush1.bf16.msra.mxu0 0
      %2344 = vmatprep.subr.bf16.mxu0 0
      %2345 = vmatpush1.bf16.msra.mxu0 0
      %2346 = vmatprep.subr.bf16.mxu0 0
      %2347 = vmatpush1.bf16.msra.mxu0 0
      %2348 = vmatprep.subr.bf16.mxu0 0
      %2349 = vmatpush1.bf16.msra.mxu0 0
      %2350 = vmatprep.subr.bf16.mxu0 0
      %2351 = vmatpush1.bf16.msra.mxu0 0
      %2352 = vmatprep.subr.bf16.mxu0 0
      %2353 = vmatpush1.bf16.msra.mxu0 0
      %2354 = vmatprep.subr.bf16.mxu0 0
      %2355 = vmatpush1.bf16.msra.mxu0 0
      %2356 = vmatprep.subr.bf16.mxu0 0
      %2357 = vmatpush1.bf16.msra.mxu0 0
      %2358 = vmatprep.subr.bf16.mxu0 0
      %2359 = vmatpush1.bf16.msra.mxu0 0
      %2360 = vmatprep.subr.bf16.mxu0 0
      %2361 = vmatpush1.bf16.msra.mxu0 0
      %2362 = vmatprep.mubr.bf16.mxu0 0
      %2363 = vmatmul.mubr.bf16.gmra.mrb[0].mxu0 %v2096
      %v2364 = vpop.f32.mrb[0].mxu0
      %v2365 = vadd.f32 %v2273, %v2364
      %v2366 = vpop.f32.mrb[0].mxu0
      %v2367 = vadd.f32 %v2277, %v2366
      %v2368 = vpop.f32.mrb[0].mxu0
      %v2369 = vadd.f32 %v2273, %v2368
      %v2370 = vpop.f32.mrb[0].mxu0
      %v2371 = vadd.f32 %v2277, %v2370
      %2372 = vdwg.mxu0
      %2373 = vmatprep.subr.bf16.mxu0 %v2317
      %2374 = vmatpush1.bf16.msra.mxu0 %v2316
      %2375 = vmatprep.subr.bf16.mxu0 %v2321
      %2376 = vmatpush1.bf16.msra.mxu0 %v2320
      %2377 = vmatprep.subr.bf16.mxu0 0
      %2378 = vmatpush1.bf16.msra.mxu0 0
      %2379 = vmatprep.subr.bf16.mxu0 0
      %2380 = vmatpush1.bf16.msra.mxu0 0
      %2381 = vmatprep.subr.bf16.mxu0 0
      %2382 = vmatpush1.bf16.msra.mxu0 0
      %2383 = vmatprep.subr.bf16.mxu0 0
      %2384 = vmatpush1.bf16.msra.mxu0 0
      %2385 = vmatprep.subr.bf16.mxu0 0
      %2386 = vmatpush1.bf16.msra.mxu0 0
      %2387 = vmatprep.subr.bf16.mxu0 0
      %2388 = vmatpush1.bf16.msra.mxu0 0
      %2389 = vmatprep.subr.bf16.mxu0 0
      %2390 = vmatpush1.bf16.msra.mxu0 0
      %2391 = vmatprep.subr.bf16.mxu0 0
      %2392 = vmatpush1.bf16.msra.mxu0 0
      %2393 = vmatprep.subr.bf16.mxu0 0
      %2394 = vmatpush1.bf16.msra.mxu0 0
      %2395 = vmatprep.subr.bf16.mxu0 0
      %2396 = vmatpush1.bf16.msra.mxu0 0
      %2397 = vmatprep.subr.bf16.mxu0 0
      %2398 = vmatpush1.bf16.msra.mxu0 0
      %2399 = vmatprep.subr.bf16.mxu0 0
      %2400 = vmatpush1.bf16.msra.mxu0 0
      %2401 = vmatprep.subr.bf16.mxu0 0
      %2402 = vmatpush1.bf16.msra.mxu0 0
      %2403 = vmatprep.subr.bf16.mxu0 0
      %2404 = vmatpush1.bf16.msra.mxu0 0
      %2405 = vmatprep.mubr.bf16.mxu0 0
      %2406 = vmatmul.mubr.bf16.gmra.mrb[0].mxu0 %v2096
      %v2407 = vpop.f32.mrb[0].mxu0
      %v2408 = vadd.f32 %v2281, %v2407
      %v2409 = vpop.f32.mrb[0].mxu0
      %v2410 = vadd.f32 %v2285, %v2409
      %v2411 = vpop.f32.mrb[0].mxu0
      %v2412 = vadd.f32 %v2281, %v2411
      %v2413 = vpop.f32.mrb[0].mxu0
      %v2414 = vadd.f32 %v2285, %v2413
      %2415 = vdwg.mxu0
      %v2416 = vmax.f32 %v2365, 0.0
      %v2417 = vmax.f32 %v2367, 0.0
      %v2418 = vmax.f32 %v2408, 0.0
      %v2419 = vmax.f32 %v2410, 0.0
      %v2420 = vmax.f32 %v2369, 0.0
      %v2421 = vmax.f32 %v2371, 0.0
      %v2422 = vmax.f32 %v2412, 0.0
      %v2423 = vmax.f32 %v2414, 0.0
      %v2424 = vpack.c.bf16 %v2420, %v2416
      %v2425 = vpack.c.bf16 %v2421, %v2417
      %v2426 = vpack.c.bf16 %v2422, %v2418
      %v2427 = vpack.c.bf16 %v2423, %v2419
      %v2428 = vld [vmem:[%s587 + $0x100] sm:$0xf]
      %v2429 = vld [vmem:[%s587 + $0x104] sm:$0xf]
      %v2430 = vld [vmem:[%s587 + $0x108] sm:$0xf]
      %v2431 = vld [vmem:[%s587 + $0x10c] sm:$0xf]
      %v2432 = vld [vmem:[%s587 + $0x110] sm:$0xf]
      %v2433 = vld [vmem:[%s587 + $0x114] sm:$0xf]
      %v2434 = vld [vmem:[%s587 + $0x118] sm:$0xf]
      %v2435 = vld [vmem:[%s587 + $0x11c] sm:$0xf]
      %v2436 = vld [vmem:[%s587 + $0x120] sm:$0xf]
      %v2437 = vld [vmem:[%s587 + $0x124] sm:$0xf]
      %v2438 = vld [vmem:[%s587 + $0x128] sm:$0xf]
      %v2439 = vld [vmem:[%s587 + $0x12c] sm:$0xf]
      %v2440 = vld [vmem:[%s587 + $0x130] sm:$0xf]
      %v2441 = vld [vmem:[%s587 + $0x134] sm:$0xf]
      %v2442 = vld [vmem:[%s587 + $0x138] sm:$0xf]
      %v2443 = vld [vmem:[%s587 + $0x13c] sm:$0xf]
      %v2444 = vld [vmem:[%s587 + $0x140] sm:$0xf]
      %v2445 = vld [vmem:[%s587 + $0x144] sm:$0xf]
      %v2446 = vld [vmem:[%s587 + $0x148] sm:$0xf]
      %v2447 = vld [vmem:[%s587 + $0x14c] sm:$0xf]
      %v2448 = vld [vmem:[%s587 + $0x150] sm:$0xf]
      %v2449 = vld [vmem:[%s587 + $0x154] sm:$0xf]
      %v2450 = vld [vmem:[%s587 + $0x158] sm:$0xf]
      %v2451 = vld [vmem:[%s587 + $0x15c] sm:$0xf]
      %v2452 = vld [vmem:[%s587 + $0x160] sm:$0xf]
      %v2453 = vld [vmem:[%s587 + $0x164] sm:$0xf]
      %v2454 = vld [vmem:[%s587 + $0x168] sm:$0xf]
      %v2455 = vld [vmem:[%s587 + $0x16c] sm:$0xf]
      %v2456 = vld [vmem:[%s587 + $0x170] sm:$0xf]
      %v2457 = vld [vmem:[%s587 + $0x174] sm:$0xf]
      %v2458 = vld [vmem:[%s587 + $0x178] sm:$0xf]
      %v2459 = vld [vmem:[%s587 + $0x17c] sm:$0xf]
      %v2460 = vld [vmem:[%s587 + $0x180] sm:$0xf]
      %v2461 = vld [vmem:[%s587 + $0x184] sm:$0xf]
      %v2462 = vld [vmem:[%s587 + $0x188] sm:$0xf]
      %v2463 = vld [vmem:[%s587 + $0x18c] sm:$0xf]
      %v2464 = vld [vmem:[%s587 + $0x190] sm:$0xf]
      %v2465 = vld [vmem:[%s587 + $0x194] sm:$0xf]
      %v2466 = vld [vmem:[%s587 + $0x198] sm:$0xf]
      %v2467 = vld [vmem:[%s587 + $0x19c] sm:$0xf]
      %v2468 = vld [vmem:[%s587 + $0x1a0] sm:$0xf]
      %v2469 = vld [vmem:[%s587 + $0x1a4] sm:$0xf]
      %v2470 = vld [vmem:[%s587 + $0x1a8] sm:$0xf]
      %v2471 = vld [vmem:[%s587 + $0x1ac] sm:$0xf]
      %v2472 = vld [vmem:[%s587 + $0x1b0] sm:$0xf]
      %v2473 = vld [vmem:[%s587 + $0x1b4] sm:$0xf]
      %v2474 = vld [vmem:[%s587 + $0x1b8] sm:$0xf]
      %v2475 = vld [vmem:[%s587 + $0x1bc] sm:$0xf]
      %v2476 = vld [vmem:[%s587 + $0x1c0] sm:$0xf]
      %v2477 = vld [vmem:[%s587 + $0x1c4] sm:$0xf]
      %v2478 = vld [vmem:[%s587 + $0x1c8] sm:$0xf]
      %v2479 = vld [vmem:[%s587 + $0x1cc] sm:$0xf]
      %v2480 = vld [vmem:[%s587 + $0x1d0] sm:$0xf]
      %v2481 = vld [vmem:[%s587 + $0x1d4] sm:$0xf]
      %v2482 = vld [vmem:[%s587 + $0x1d8] sm:$0xf]
      %v2483 = vld [vmem:[%s587 + $0x1dc] sm:$0xf]
      %v2484 = vld [vmem:[%s587 + $0x1e0] sm:$0xf]
      %v2485 = vld [vmem:[%s587 + $0x1e4] sm:$0xf]
      %v2486 = vld [vmem:[%s587 + $0x1e8] sm:$0xf]
      %v2487 = vld [vmem:[%s587 + $0x1ec] sm:$0xf]
      %v2488 = vld [vmem:[%s587 + $0x1f0] sm:$0xf]
      %v2489 = vld [vmem:[%s587 + $0x1f4] sm:$0xf]
      %v2490 = vld [vmem:[%s587 + $0x1f8] sm:$0xf]
      %v2491 = vld [vmem:[%s587 + $0x1fc] sm:$0xf]
      %v2556 = vunpack.c.l.b16 %v2428
      %v2557 = vunpack.c.l.b16 %v2429
      %v2558 = vunpack.c.l.b16 %v2430
      %v2559 = vunpack.c.l.b16 %v2431
      %v2560 = vunpack.c.l.b16 %v2432
      %v2561 = vunpack.c.l.b16 %v2433
      %v2562 = vunpack.c.l.b16 %v2434
      %v2563 = vunpack.c.l.b16 %v2435
      %v2564 = vunpack.c.l.b16 %v2436
      %v2565 = vunpack.c.l.b16 %v2437
      %v2566 = vunpack.c.l.b16 %v2438
      %v2567 = vunpack.c.l.b16 %v2439
      %v2568 = vunpack.c.l.b16 %v2440
      %v2569 = vunpack.c.l.b16 %v2441
      %v2570 = vunpack.c.l.b16 %v2442
      %v2571 = vunpack.c.l.b16 %v2443
      %v2572 = vunpack.c.l.b16 %v2444
      %v2573 = vunpack.c.l.b16 %v2445
      %v2574 = vunpack.c.l.b16 %v2446
      %v2575 = vunpack.c.l.b16 %v2447
      %v2576 = vunpack.c.l.b16 %v2448
      %v2577 = vunpack.c.l.b16 %v2449
      %v2578 = vunpack.c.l.b16 %v2450
      %v2579 = vunpack.c.l.b16 %v2451
      %v2580 = vunpack.c.l.b16 %v2452
      %v2581 = vunpack.c.l.b16 %v2453
      %v2582 = vunpack.c.l.b16 %v2454
      %v2583 = vunpack.c.l.b16 %v2455
      %v2584 = vunpack.c.l.b16 %v2456
      %v2585 = vunpack.c.l.b16 %v2457
      %v2586 = vunpack.c.l.b16 %v2458
      %v2587 = vunpack.c.l.b16 %v2459
      %v2588 = vunpack.c.l.b16 %v2460
      %v2589 = vunpack.c.l.b16 %v2461
      %v2590 = vunpack.c.l.b16 %v2462
      %v2591 = vunpack.c.l.b16 %v2463
      %v2592 = vunpack.c.l.b16 %v2464
      %v2593 = vunpack.c.l.b16 %v2465
      %v2594 = vunpack.c.l.b16 %v2466
      %v2595 = vunpack.c.l.b16 %v2467
      %v2596 = vunpack.c.l.b16 %v2468
      %v2597 = vunpack.c.l.b16 %v2469
      %v2598 = vunpack.c.l.b16 %v2470
      %v2599 = vunpack.c.l.b16 %v2471
      %v2600 = vunpack.c.l.b16 %v2472
      %v2601 = vunpack.c.l.b16 %v2473
      %v2602 = vunpack.c.l.b16 %v2474
      %v2603 = vunpack.c.l.b16 %v2475
      %v2604 = vunpack.c.l.b16 %v2476
      %v2605 = vunpack.c.l.b16 %v2477
      %v2606 = vunpack.c.l.b16 %v2478
      %v2607 = vunpack.c.l.b16 %v2479
      %v2608 = vunpack.c.l.b16 %v2480
      %v2609 = vunpack.c.l.b16 %v2481
      %v2610 = vunpack.c.l.b16 %v2482
      %v2611 = vunpack.c.l.b16 %v2483
      %v2612 = vunpack.c.l.b16 %v2484
      %v2613 = vunpack.c.l.b16 %v2485
      %v2614 = vunpack.c.l.b16 %v2486
      %v2615 = vunpack.c.l.b16 %v2487
      %v2616 = vunpack.c.l.b16 %v2488
      %v2617 = vunpack.c.l.b16 %v2489
      %v2618 = vunpack.c.l.b16 %v2490
      %v2619 = vunpack.c.l.b16 %v2491
      %v2620 = vpack.c.b16 %v2557, %v2556
      %v2621 = vpack.c.b16 %v2559, %v2558
      %v2622 = vpack.c.b16 %v2561, %v2560
      %v2623 = vpack.c.b16 %v2563, %v2562
      %v2624 = vpack.c.b16 %v2565, %v2564
      %v2625 = vpack.c.b16 %v2567, %v2566
      %v2626 = vpack.c.b16 %v2569, %v2568
      %v2627 = vpack.c.b16 %v2571, %v2570
      %v2628 = vpack.c.b16 %v2573, %v2572
      %v2629 = vpack.c.b16 %v2575, %v2574
      %v2630 = vpack.c.b16 %v2577, %v2576
      %v2631 = vpack.c.b16 %v2579, %v2578
      %v2632 = vpack.c.b16 %v2581, %v2580
      %v2633 = vpack.c.b16 %v2583, %v2582
      %v2634 = vpack.c.b16 %v2585, %v2584
      %v2635 = vpack.c.b16 %v2587, %v2586
      %v2636 = vpack.c.b16 %v2589, %v2588
      %v2637 = vpack.c.b16 %v2591, %v2590
      %v2638 = vpack.c.b16 %v2593, %v2592
      %v2639 = vpack.c.b16 %v2595, %v2594
      %v2640 = vpack.c.b16 %v2597, %v2596
      %v2641 = vpack.c.b16 %v2599, %v2598
      %v2642 = vpack.c.b16 %v2601, %v2600
      %v2643 = vpack.c.b16 %v2603, %v2602
      %v2644 = vpack.c.b16 %v2605, %v2604
      %v2645 = vpack.c.b16 %v2607, %v2606
      %v2646 = vpack.c.b16 %v2609, %v2608
      %v2647 = vpack.c.b16 %v2611, %v2610
      %v2648 = vpack.c.b16 %v2613, %v2612
      %v2649 = vpack.c.b16 %v2615, %v2614
      %v2650 = vpack.c.b16 %v2617, %v2616
      %v2651 = vpack.c.b16 %v2619, %v2618
      %2684 = vmatprep.subr.bf16.mxu0 0
      %2685 = vmatpush1.bf16.msra.mxu0 %v2620
      %2686 = vmatprep.subr.bf16.mxu0 0
      %2687 = vmatpush1.bf16.msra.mxu0 %v2621
      %2688 = vmatprep.subr.bf16.mxu0 0
      %2689 = vmatpush1.bf16.msra.mxu0 %v2622
      %2690 = vmatprep.subr.bf16.mxu0 0
      %2691 = vmatpush1.bf16.msra.mxu0 %v2623
      %2692 = vmatprep.subr.bf16.mxu0 0
      %2693 = vmatpush1.bf16.msra.mxu0 %v2624
      %2694 = vmatprep.subr.bf16.mxu0 0
      %2695 = vmatpush1.bf16.msra.mxu0 %v2625
      %2696 = vmatprep.subr.bf16.mxu0 0
      %2697 = vmatpush1.bf16.msra.mxu0 %v2626
      %2698 = vmatprep.subr.bf16.mxu0 0
      %2699 = vmatpush1.bf16.msra.mxu0 %v2627
      %2700 = vmatprep.subr.bf16.mxu0 0
      %2701 = vmatpush1.bf16.msra.mxu0 %v2628
      %2702 = vmatprep.subr.bf16.mxu0 0
      %2703 = vmatpush1.bf16.msra.mxu0 %v2629
      %2704 = vmatprep.subr.bf16.mxu0 0
      %2705 = vmatpush1.bf16.msra.mxu0 %v2630
      %2706 = vmatprep.subr.bf16.mxu0 0
      %2707 = vmatpush1.bf16.msra.mxu0 %v2631
      %2708 = vmatprep.subr.bf16.mxu0 0
      %2709 = vmatpush1.bf16.msra.mxu0 %v2632
      %2710 = vmatprep.subr.bf16.mxu0 0
      %2711 = vmatpush1.bf16.msra.mxu0 %v2633
      %2712 = vmatprep.subr.bf16.mxu0 0
      %2713 = vmatpush1.bf16.msra.mxu0 %v2634
      %2714 = vmatprep.subr.bf16.mxu0 0
      %2715 = vmatpush1.bf16.msra.mxu0 %v2635
      %2716 = vmatprep.mubr.bf16.mxu0 %v2425
      %2717 = vmatmul.mubr.bf16.gmra.mrb[0].mxu0 %v2424
      %v2718 = vpop.f32.mrb[0].mxu0
      %v2719 = vadd.f32 0.0, %v2718
      %v2720 = vpop.f32.mrb[0].mxu0
      %v2721 = vpop.f32.mrb[0].mxu0
      %v2722 = vadd.f32 0.0, %v2721
      %v2723 = vpop.f32.mrb[0].mxu0
      %2724 = vdwg.mxu0
      %2725 = vmatprep.subr.bf16.mxu0 0
      %2726 = vmatpush1.bf16.msra.mxu0 %v2636
      %2727 = vmatprep.subr.bf16.mxu0 0
      %2728 = vmatpush1.bf16.msra.mxu0 %v2637
      %2729 = vmatprep.subr.bf16.mxu0 0
      %2730 = vmatpush1.bf16.msra.mxu0 %v2638
      %2731 = vmatprep.subr.bf16.mxu0 0
      %2732 = vmatpush1.bf16.msra.mxu0 %v2639
      %2733 = vmatprep.subr.bf16.mxu0 0
      %2734 = vmatpush1.bf16.msra.mxu0 %v2640
      %2735 = vmatprep.subr.bf16.mxu0 0
      %2736 = vmatpush1.bf16.msra.mxu0 %v2641
      %2737 = vmatprep.subr.bf16.mxu0 0
      %2738 = vmatpush1.bf16.msra.mxu0 %v2642
      %2739 = vmatprep.subr.bf16.mxu0 0
      %2740 = vmatpush1.bf16.msra.mxu0 %v2643
      %2741 = vmatprep.subr.bf16.mxu0 0
      %2742 = vmatpush1.bf16.msra.mxu0 %v2644
      %2743 = vmatprep.subr.bf16.mxu0 0
      %2744 = vmatpush1.bf16.msra.mxu0 %v2645
      %2745 = vmatprep.subr.bf16.mxu0 0
      %2746 = vmatpush1.bf16.msra.mxu0 %v2646
      %2747 = vmatprep.subr.bf16.mxu0 0
      %2748 = vmatpush1.bf16.msra.mxu0 %v2647
      %2749 = vmatprep.subr.bf16.mxu0 0
      %2750 = vmatpush1.bf16.msra.mxu0 %v2648
      %2751 = vmatprep.subr.bf16.mxu0 0
      %2752 = vmatpush1.bf16.msra.mxu0 %v2649
      %2753 = vmatprep.subr.bf16.mxu0 0
      %2754 = vmatpush1.bf16.msra.mxu0 %v2650
      %2755 = vmatprep.subr.bf16.mxu0 0
      %2756 = vmatpush1.bf16.msra.mxu0 %v2651
      %2757 = vmatprep.mubr.bf16.mxu0 %v2427
      %2758 = vmatmul.mubr.bf16.gmra.mrb[0].mxu0 %v2426
      %v2759 = vpop.f32.mrb[0].mxu0
      %v2760 = vadd.f32 %v2719, %v2759
      %v2761 = vpop.f32.mrb[0].mxu0
      %v2762 = vpop.f32.mrb[0].mxu0
      %v2763 = vadd.f32 %v2722, %v2762
      %v2764 = vpop.f32.mrb[0].mxu0
      %2765 = vdwg.mxu0
      %v2830 = vunpack.c.l.b16 %v2196
      %v2831 = vunpack.c.l.b16 %v2197
      %v2832 = vunpack.c.l.b16 %v2198
      %v2833 = vunpack.c.l.b16 %v2199
      %v2834 = vunpack.c.l.b16 %v2200
      %v2835 = vunpack.c.l.b16 %v2201
      %v2836 = vunpack.c.l.b16 %v2202
      %v2837 = vunpack.c.l.b16 %v2203
      %v2838 = vunpack.c.l.b16 %v2204
      %v2839 = vunpack.c.l.b16 %v2205
      %v2840 = vunpack.c.l.b16 %v2206
      %v2841 = vunpack.c.l.b16 %v2207
      %v2842 = vunpack.c.l.b16 %v2208
      %v2843 = vunpack.c.l.b16 %v2209
      %v2844 = vunpack.c.l.b16 %v2210
      %v2845 = vunpack.c.l.b16 %v2211
      %v2846 = vunpack.c.l.b16 %v2212
      %v2847 = vunpack.c.l.b16 %v2213
      %v2848 = vunpack.c.l.b16 %v2214
      %v2849 = vunpack.c.l.b16 %v2215
      %v2850 = vunpack.c.l.b16 %v2216
      %v2851 = vunpack.c.l.b16 %v2217
      %v2852 = vunpack.c.l.b16 %v2218
      %v2853 = vunpack.c.l.b16 %v2219
      %v2854 = vunpack.c.l.b16 %v2220
      %v2855 = vunpack.c.l.b16 %v2221
      %v2856 = vunpack.c.l.b16 %v2222
      %v2857 = vunpack.c.l.b16 %v2223
      %v2858 = vunpack.c.l.b16 %v2224
      %v2859 = vunpack.c.l.b16 %v2225
      %v2860 = vunpack.c.l.b16 %v2226
      %v2861 = vunpack.c.l.b16 %v2227
      %v2862 = vunpack.c.l.b16 %v2228
      %v2863 = vunpack.c.l.b16 %v2229
      %v2864 = vunpack.c.l.b16 %v2230
      %v2865 = vunpack.c.l.b16 %v2231
      %v2866 = vunpack.c.l.b16 %v2232
      %v2867 = vunpack.c.l.b16 %v2233
      %v2868 = vunpack.c.l.b16 %v2234
      %v2869 = vunpack.c.l.b16 %v2235
      %v2870 = vunpack.c.l.b16 %v2236
      %v2871 = vunpack.c.l.b16 %v2237
      %v2872 = vunpack.c.l.b16 %v2238
      %v2873 = vunpack.c.l.b16 %v2239
      %v2874 = vunpack.c.l.b16 %v2240
      %v2875 = vunpack.c.l.b16 %v2241
      %v2876 = vunpack.c.l.b16 %v2242
      %v2877 = vunpack.c.l.b16 %v2243
      %v2878 = vunpack.c.l.b16 %v2244
      %v2879 = vunpack.c.l.b16 %v2245
      %v2880 = vunpack.c.l.b16 %v2246
      %v2881 = vunpack.c.l.b16 %v2247
      %v2882 = vunpack.c.l.b16 %v2248
      %v2883 = vunpack.c.l.b16 %v2249
      %v2884 = vunpack.c.l.b16 %v2250
      %v2885 = vunpack.c.l.b16 %v2251
      %v2886 = vunpack.c.l.b16 %v2252
      %v2887 = vunpack.c.l.b16 %v2253
      %v2888 = vunpack.c.l.b16 %v2254
      %v2889 = vunpack.c.l.b16 %v2255
      %v2890 = vunpack.c.l.b16 %v2256
      %v2891 = vunpack.c.l.b16 %v2257
      %v2892 = vunpack.c.l.b16 %v2258
      %v2893 = vunpack.c.l.b16 %v2259
      %v2894 = vpack.c.b16 %v2831, %v2830
      %v2895 = vpack.c.b16 %v2833, %v2832
      %v2896 = vpack.c.b16 %v2835, %v2834
      %v2897 = vpack.c.b16 %v2837, %v2836
      %v2898 = vpack.c.b16 %v2839, %v2838
      %v2899 = vpack.c.b16 %v2841, %v2840
      %v2900 = vpack.c.b16 %v2843, %v2842
      %v2901 = vpack.c.b16 %v2845, %v2844
      %v2902 = vpack.c.b16 %v2847, %v2846
      %v2903 = vpack.c.b16 %v2849, %v2848
      %v2904 = vpack.c.b16 %v2851, %v2850
      %v2905 = vpack.c.b16 %v2853, %v2852
      %v2906 = vpack.c.b16 %v2855, %v2854
      %v2907 = vpack.c.b16 %v2857, %v2856
      %v2908 = vpack.c.b16 %v2859, %v2858
      %v2909 = vpack.c.b16 %v2861, %v2860
      %v2910 = vpack.c.b16 %v2863, %v2862
      %v2911 = vpack.c.b16 %v2865, %v2864
      %v2912 = vpack.c.b16 %v2867, %v2866
      %v2913 = vpack.c.b16 %v2869, %v2868
      %v2914 = vpack.c.b16 %v2871, %v2870
      %v2915 = vpack.c.b16 %v2873, %v2872
      %v2916 = vpack.c.b16 %v2875, %v2874
      %v2917 = vpack.c.b16 %v2877, %v2876
      %v2918 = vpack.c.b16 %v2879, %v2878
      %v2919 = vpack.c.b16 %v2881, %v2880
      %v2920 = vpack.c.b16 %v2883, %v2882
      %v2921 = vpack.c.b16 %v2885, %v2884
      %v2922 = vpack.c.b16 %v2887, %v2886
      %v2923 = vpack.c.b16 %v2889, %v2888
      %v2924 = vpack.c.b16 %v2891, %v2890
      %v2925 = vpack.c.b16 %v2893, %v2892
      %2958 = vmatprep.subr.bf16.mxu0 0
      %2959 = vmatpush1.bf16.msra.mxu0 %v2894
      %2960 = vmatprep.subr.bf16.mxu0 0
      %2961 = vmatpush1.bf16.msra.mxu0 %v2895
      %2962 = vmatprep.subr.bf16.mxu0 0
      %2963 = vmatpush1.bf16.msra.mxu0 %v2896
      %2964 = vmatprep.subr.bf16.mxu0 0
      %2965 = vmatpush1.bf16.msra.mxu0 %v2897
      %2966 = vmatprep.subr.bf16.mxu0 0
      %2967 = vmatpush1.bf16.msra.mxu0 %v2898
      %2968 = vmatprep.subr.bf16.mxu0 0
      %2969 = vmatpush1.bf16.msra.mxu0 %v2899
      %2970 = vmatprep.subr.bf16.mxu0 0
      %2971 = vmatpush1.bf16.msra.mxu0 %v2900
      %2972 = vmatprep.subr.bf16.mxu0 0
      %2973 = vmatpush1.bf16.msra.mxu0 %v2901
      %2974 = vmatprep.subr.bf16.mxu0 0
      %2975 = vmatpush1.bf16.msra.mxu0 %v2902
      %2976 = vmatprep.subr.bf16.mxu0 0
      %2977 = vmatpush1.bf16.msra.mxu0 %v2903
      %2978 = vmatprep.subr.bf16.mxu0 0
      %2979 = vmatpush1.bf16.msra.mxu0 %v2904
      %2980 = vmatprep.subr.bf16.mxu0 0
      %2981 = vmatpush1.bf16.msra.mxu0 %v2905
      %2982 = vmatprep.subr.bf16.mxu0 0
      %2983 = vmatpush1.bf16.msra.mxu0 %v2906
      %2984 = vmatprep.subr.bf16.mxu0 0
      %2985 = vmatpush1.bf16.msra.mxu0 %v2907
      %2986 = vmatprep.subr.bf16.mxu0 0
      %2987 = vmatpush1.bf16.msra.mxu0 %v2908
      %2988 = vmatprep.subr.bf16.mxu0 0
      %2989 = vmatpush1.bf16.msra.mxu0 %v2909
      %2990 = vmatprep.mubr.bf16.mxu0 %v2193
      %2991 = vmatmul.mubr.bf16.gmra.mrb[0].mxu0 %v2192
      %v2992 = vpop.f32.mrb[0].mxu0
      %v2993 = vadd.f32 %v2760, %v2992
      %v2994 = vpop.f32.mrb[0].mxu0
      %v2995 = vpop.f32.mrb[0].mxu0
      %v2996 = vadd.f32 %v2763, %v2995
      %v2997 = vpop.f32.mrb[0].mxu0
      %2998 = vdwg.mxu0
      %2999 = vmatprep.subr.bf16.mxu0 0
      %3000 = vmatpush1.bf16.msra.mxu0 %v2910
      %3001 = vmatprep.subr.bf16.mxu0 0
      %3002 = vmatpush1.bf16.msra.mxu0 %v2911
      %3003 = vmatprep.subr.bf16.mxu0 0
      %3004 = vmatpush1.bf16.msra.mxu0 %v2912
      %3005 = vmatprep.subr.bf16.mxu0 0
      %3006 = vmatpush1.bf16.msra.mxu0 %v2913
      %3007 = vmatprep.subr.bf16.mxu0 0
      %3008 = vmatpush1.bf16.msra.mxu0 %v2914
      %3009 = vmatprep.subr.bf16.mxu0 0
      %3010 = vmatpush1.bf16.msra.mxu0 %v2915
      %3011 = vmatprep.subr.bf16.mxu0 0
      %3012 = vmatpush1.bf16.msra.mxu0 %v2916
      %3013 = vmatprep.subr.bf16.mxu0 0
      %3014 = vmatpush1.bf16.msra.mxu0 %v2917
      %3015 = vmatprep.subr.bf16.mxu0 0
      %3016 = vmatpush1.bf16.msra.mxu0 %v2918
      %3017 = vmatprep.subr.bf16.mxu0 0
      %3018 = vmatpush1.bf16.msra.mxu0 %v2919
      %3019 = vmatprep.subr.bf16.mxu0 0
      %3020 = vmatpush1.bf16.msra.mxu0 %v2920
      %3021 = vmatprep.subr.bf16.mxu0 0
      %3022 = vmatpush1.bf16.msra.mxu0 %v2921
      %3023 = vmatprep.subr.bf16.mxu0 0
      %3024 = vmatpush1.bf16.msra.mxu0 %v2922
      %3025 = vmatprep.subr.bf16.mxu0 0
      %3026 = vmatpush1.bf16.msra.mxu0 %v2923
      %3027 = vmatprep.subr.bf16.mxu0 0
      %3028 = vmatpush1.bf16.msra.mxu0 %v2924
      %3029 = vmatprep.subr.bf16.mxu0 0
      %3030 = vmatpush1.bf16.msra.mxu0 %v2925
      %3031 = vmatprep.mubr.bf16.mxu0 %v2195
      %3032 = vmatmul.mubr.bf16.gmra.mrb[0].mxu0 %v2194
      %v3033 = vpop.f32.mrb[0].mxu0
      %v3034 = vadd.f32 %v2993, %v3033
      %v3035 = vpop.f32.mrb[0].mxu0
      %v3036 = vpop.f32.mrb[0].mxu0
      %v3037 = vadd.f32 %v2996, %v3036
      %v3038 = vpop.f32.mrb[0].mxu0
      %3039 = vdwg.mxu0
      %v3040 = vld [vmem:[%s578 + $0x20] sm:$0xff]
      %v3041 = vld [vmem:[%s578 + $0x28] sm:$0xff]
      %v3042 = vld [vmem:[%s578 + $0x60] sm:$0xff]
      %v3043 = vld [vmem:[%s578 + $0x68] sm:$0xff]
      %v3044 = vld [vmem:[%s578 + $0xa0] sm:$0xff]
      %v3045 = vld [vmem:[%s578 + $0xa8] sm:$0xff]
      %v3046 = vld [vmem:[%s578 + $0xe0] sm:$0xff]
      %v3047 = vld [vmem:[%s578 + $0xe8] sm:$0xff]
      %v3048 = vld [vmem:[%s582 + $0x8] sm:$0xf]
      %v3050 = vlaneseq
      %v3051 = vshrl.u32 %v3050, 7
      %v3052 = vsub.s32 0, %v3051
      %v3053 = vrot.slane %v3048, %v3052
      %v3054 = vlaneseq
      %v3055 = vshrl.u32 %v3054, 7
      %v3056 = vsub.s32 1, %v3055
      %v3057 = vrot.slane %v3048, %v3056
      %v3058 = vlaneseq
      %v3059 = vshrl.u32 %v3058, 7
      %v3060 = vsub.s32 2, %v3059
      %v3061 = vrot.slane %v3048, %v3060
      %v3062 = vlaneseq
      %v3063 = vshrl.u32 %v3062, 7
      %v3064 = vsub.s32 3, %v3063
      %v3065 = vrot.slane %v3048, %v3064
      %v3078 = vunpack.c.l.b16 %v3040
      %v3079 = vunpack.c.h.b16 %v3040
      %v3080 = vunpack.c.l.b16 %v3041
      %v3081 = vunpack.c.h.b16 %v3041
      %v3082 = vunpack.c.l.b16 %v3042
      %v3083 = vunpack.c.h.b16 %v3042
      %v3084 = vunpack.c.l.b16 %v3043
      %v3085 = vunpack.c.h.b16 %v3043
      %v3086 = vunpack.c.l.b16 %v3044
      %v3087 = vunpack.c.h.b16 %v3044
      %v3088 = vunpack.c.l.b16 %v3045
      %v3089 = vunpack.c.h.b16 %v3045
      %v3090 = vunpack.c.l.b16 %v3046
      %v3091 = vunpack.c.h.b16 %v3046
      %v3092 = vunpack.c.l.b16 %v3047
      %v3093 = vunpack.c.h.b16 %v3047
      %v3094 = vpack.c.b16 %v3082, %v3078
      %v3095 = vpack.c.b16 %v3083, %v3079
      %v3096 = vpack.c.b16 %v3084, %v3080
      %v3097 = vpack.c.b16 %v3085, %v3081
      %v3098 = vpack.c.b16 %v3090, %v3086
      %v3099 = vpack.c.b16 %v3091, %v3087
      %v3100 = vpack.c.b16 %v3092, %v3088
      %v3101 = vpack.c.b16 %v3093, %v3089
      %3110 = vmatprep.subr.bf16.mxu0 %v3095
      %3111 = vmatpush1.bf16.msra.mxu0 %v3094
      %3112 = vmatprep.subr.bf16.mxu0 %v3099
      %3113 = vmatpush1.bf16.msra.mxu0 %v3098
      %3114 = vmatprep.subr.bf16.mxu0 0
      %3115 = vmatpush1.bf16.msra.mxu0 0
      %3116 = vmatprep.subr.bf16.mxu0 0
      %3117 = vmatpush1.bf16.msra.mxu0 0
      %3118 = vmatprep.subr.bf16.mxu0 0
      %3119 = vmatpush1.bf16.msra.mxu0 0
      %3120 = vmatprep.subr.bf16.mxu0 0
      %3121 = vmatpush1.bf16.msra.mxu0 0
      %3122 = vmatprep.subr.bf16.mxu0 0
      %3123 = vmatpush1.bf16.msra.mxu0 0
      %3124 = vmatprep.subr.bf16.mxu0 0
      %3125 = vmatpush1.bf16.msra.mxu0 0
      %3126 = vmatprep.subr.bf16.mxu0 0
      %3127 = vmatpush1.bf16.msra.mxu0 0
      %3128 = vmatprep.subr.bf16.mxu0 0
      %3129 = vmatpush1.bf16.msra.mxu0 0
      %3130 = vmatprep.subr.bf16.mxu0 0
      %3131 = vmatpush1.bf16.msra.mxu0 0
      %3132 = vmatprep.subr.bf16.mxu0 0
      %3133 = vmatpush1.bf16.msra.mxu0 0
      %3134 = vmatprep.subr.bf16.mxu0 0
      %3135 = vmatpush1.bf16.msra.mxu0 0
      %3136 = vmatprep.subr.bf16.mxu0 0
      %3137 = vmatpush1.bf16.msra.mxu0 0
      %3138 = vmatprep.subr.bf16.mxu0 0
      %3139 = vmatpush1.bf16.msra.mxu0 0
      %3140 = vmatprep.subr.bf16.mxu0 0
      %3141 = vmatpush1.bf16.msra.mxu0 0
      %3142 = vmatprep.mubr.bf16.mxu0 0
      %3143 = vmatmul.mubr.bf16.gmra.mrb[0].mxu0 %v2096
      %v3144 = vpop.f32.mrb[0].mxu0
      %v3145 = vadd.f32 %v3053, %v3144
      %v3146 = vpop.f32.mrb[0].mxu0
      %v3147 = vadd.f32 %v3057, %v3146
      %v3148 = vpop.f32.mrb[0].mxu0
      %v3149 = vadd.f32 %v3053, %v3148
      %v3150 = vpop.f32.mrb[0].mxu0
      %v3151 = vadd.f32 %v3057, %v3150
      %3152 = vdwg.mxu0
      %3153 = vmatprep.subr.bf16.mxu0 %v3097
      %3154 = vmatpush1.bf16.msra.mxu0 %v3096
      %3155 = vmatprep.subr.bf16.mxu0 %v3101
      %3156 = vmatpush1.bf16.msra.mxu0 %v3100
      %3157 = vmatprep.subr.bf16.mxu0 0
      %3158 = vmatpush1.bf16.msra.mxu0 0
      %3159 = vmatprep.subr.bf16.mxu0 0
      %3160 = vmatpush1.bf16.msra.mxu0 0
      %3161 = vmatprep.subr.bf16.mxu0 0
      %3162 = vmatpush1.bf16.msra.mxu0 0
      %3163 = vmatprep.subr.bf16.mxu0 0
      %3164 = vmatpush1.bf16.msra.mxu0 0
      %3165 = vmatprep.subr.bf16.mxu0 0
      %3166 = vmatpush1.bf16.msra.mxu0 0
      %3167 = vmatprep.subr.bf16.mxu0 0
      %3168 = vmatpush1.bf16.msra.mxu0 0
      %3169 = vmatprep.subr.bf16.mxu0 0
      %3170 = vmatpush1.bf16.msra.mxu0 0
      %3171 = vmatprep.subr.bf16.mxu0 0
      %3172 = vmatpush1.bf16.msra.mxu0 0
      %3173 = vmatprep.subr.bf16.mxu0 0
      %3174 = vmatpush1.bf16.msra.mxu0 0
      %3175 = vmatprep.subr.bf16.mxu0 0
      %3176 = vmatpush1.bf16.msra.mxu0 0
      %3177 = vmatprep.subr.bf16.mxu0 0
      %3178 = vmatpush1.bf16.msra.mxu0 0
      %3179 = vmatprep.subr.bf16.mxu0 0
      %3180 = vmatpush1.bf16.msra.mxu0 0
      %3181 = vmatprep.subr.bf16.mxu0 0
      %3182 = vmatpush1.bf16.msra.mxu0 0
      %3183 = vmatprep.subr.bf16.mxu0 0
      %3184 = vmatpush1.bf16.msra.mxu0 0
      %3185 = vmatprep.mubr.bf16.mxu0 0
      %3186 = vmatmul.mubr.bf16.gmra.mrb[0].mxu0 %v2096
      %v3187 = vpop.f32.mrb[0].mxu0
      %v3188 = vadd.f32 %v3061, %v3187
      %v3189 = vpop.f32.mrb[0].mxu0
      %v3190 = vadd.f32 %v3065, %v3189
      %v3191 = vpop.f32.mrb[0].mxu0
      %v3192 = vadd.f32 %v3061, %v3191
      %v3193 = vpop.f32.mrb[0].mxu0
      %v3194 = vadd.f32 %v3065, %v3193
      %3195 = vdwg.mxu0
      %v3196 = vmax.f32 %v3145, 0.0
      %v3197 = vmax.f32 %v3147, 0.0
      %v3198 = vmax.f32 %v3188, 0.0
      %v3199 = vmax.f32 %v3190, 0.0
      %v3200 = vmax.f32 %v3149, 0.0
      %v3201 = vmax.f32 %v3151, 0.0
      %v3202 = vmax.f32 %v3192, 0.0
      %v3203 = vmax.f32 %v3194, 0.0
      %v3204 = vpack.c.bf16 %v3200, %v3196
      %v3205 = vpack.c.bf16 %v3201, %v3197
      %v3206 = vpack.c.bf16 %v3202, %v3198
      %v3207 = vpack.c.bf16 %v3203, %v3199
      %v3208 = vld [vmem:[%s587 + $0x200] sm:$0xf]
      %v3209 = vld [vmem:[%s587 + $0x204] sm:$0xf]
      %v3210 = vld [vmem:[%s587 + $0x208] sm:$0xf]
      %v3211 = vld [vmem:[%s587 + $0x20c] sm:$0xf]
      %v3212 = vld [vmem:[%s587 + $0x210] sm:$0xf]
      %v3213 = vld [vmem:[%s587 + $0x214] sm:$0xf]
      %v3214 = vld [vmem:[%s587 + $0x218] sm:$0xf]
      %v3215 = vld [vmem:[%s587 + $0x21c] sm:$0xf]
      %v3216 = vld [vmem:[%s587 + $0x220] sm:$0xf]
      %v3217 = vld [vmem:[%s587 + $0x224] sm:$0xf]
      %v3218 = vld [vmem:[%s587 + $0x228] sm:$0xf]
      %v3219 = vld [vmem:[%s587 + $0x22c] sm:$0xf]
      %v3220 = vld [vmem:[%s587 + $0x230] sm:$0xf]
      %v3221 = vld [vmem:[%s587 + $0x234] sm:$0xf]
      %v3222 = vld [vmem:[%s587 + $0x238] sm:$0xf]
      %v3223 = vld [vmem:[%s587 + $0x23c] sm:$0xf]
      %v3224 = vld [vmem:[%s587 + $0x240] sm:$0xf]
      %v3225 = vld [vmem:[%s587 + $0x244] sm:$0xf]
      %v3226 = vld [vmem:[%s587 + $0x248] sm:$0xf]
      %v3227 = vld [vmem:[%s587 + $0x24c] sm:$0xf]
      %v3228 = vld [vmem:[%s587 + $0x250] sm:$0xf]
      %v3229 = vld [vmem:[%s587 + $0x254] sm:$0xf]
      %v3230 = vld [vmem:[%s587 + $0x258] sm:$0xf]
      %v3231 = vld [vmem:[%s587 + $0x25c] sm:$0xf]
      %v3232 = vld [vmem:[%s587 + $0x260] sm:$0xf]
      %v3233 = vld [vmem:[%s587 + $0x264] sm:$0xf]
      %v3234 = vld [vmem:[%s587 + $0x268] sm:$0xf]
      %v3235 = vld [vmem:[%s587 + $0x26c] sm:$0xf]
      %v3236 = vld [vmem:[%s587 + $0x270] sm:$0xf]
      %v3237 = vld [vmem:[%s587 + $0x274] sm:$0xf]
      %v3238 = vld [vmem:[%s587 + $0x278] sm:$0xf]
      %v3239 = vld [vmem:[%s587 + $0x27c] sm:$0xf]
      %v3240 = vld [vmem:[%s587 + $0x280] sm:$0xf]
      %v3241 = vld [vmem:[%s587 + $0x284] sm:$0xf]
      %v3242 = vld [vmem:[%s587 + $0x288] sm:$0xf]
      %v3243 = vld [vmem:[%s587 + $0x28c] sm:$0xf]
      %v3244 = vld [vmem:[%s587 + $0x290] sm:$0xf]
      %v3245 = vld [vmem:[%s587 + $0x294] sm:$0xf]
      %v3246 = vld [vmem:[%s587 + $0x298] sm:$0xf]
      %v3247 = vld [vmem:[%s587 + $0x29c] sm:$0xf]
      %v3248 = vld [vmem:[%s587 + $0x2a0] sm:$0xf]
      %v3249 = vld [vmem:[%s587 + $0x2a4] sm:$0xf]
      %v3250 = vld [vmem:[%s587 + $0x2a8] sm:$0xf]
      %v3251 = vld [vmem:[%s587 + $0x2ac] sm:$0xf]
      %v3252 = vld [vmem:[%s587 + $0x2b0] sm:$0xf]
      %v3253 = vld [vmem:[%s587 + $0x2b4] sm:$0xf]
      %v3254 = vld [vmem:[%s587 + $0x2b8] sm:$0xf]
      %v3255 = vld [vmem:[%s587 + $0x2bc] sm:$0xf]
      %v3256 = vld [vmem:[%s587 + $0x2c0] sm:$0xf]
      %v3257 = vld [vmem:[%s587 + $0x2c4] sm:$0xf]
      %v3258 = vld [vmem:[%s587 + $0x2c8] sm:$0xf]
      %v3259 = vld [vmem:[%s587 + $0x2cc] sm:$0xf]
      %v3260 = vld [vmem:[%s587 + $0x2d0] sm:$0xf]
      %v3261 = vld [vmem:[%s587 + $0x2d4] sm:$0xf]
      %v3262 = vld [vmem:[%s587 + $0x2d8] sm:$0xf]
      %v3263 = vld [vmem:[%s587 + $0x2dc] sm:$0xf]
      %v3264 = vld [vmem:[%s587 + $0x2e0] sm:$0xf]
      %v3265 = vld [vmem:[%s587 + $0x2e4] sm:$0xf]
      %v3266 = vld [vmem:[%s587 + $0x2e8] sm:$0xf]
      %v3267 = vld [vmem:[%s587 + $0x2ec] sm:$0xf]
      %v3268 = vld [vmem:[%s587 + $0x2f0] sm:$0xf]
      %v3269 = vld [vmem:[%s587 + $0x2f4] sm:$0xf]
      %v3270 = vld [vmem:[%s587 + $0x2f8] sm:$0xf]
      %v3271 = vld [vmem:[%s587 + $0x2fc] sm:$0xf]
      %v3336 = vunpack.c.l.b16 %v3208
      %v3337 = vunpack.c.l.b16 %v3209
      %v3338 = vunpack.c.l.b16 %v3210
      %v3339 = vunpack.c.l.b16 %v3211
      %v3340 = vunpack.c.l.b16 %v3212
      %v3341 = vunpack.c.l.b16 %v3213
      %v3342 = vunpack.c.l.b16 %v3214
      %v3343 = vunpack.c.l.b16 %v3215
      %v3344 = vunpack.c.l.b16 %v3216
      %v3345 = vunpack.c.l.b16 %v3217
      %v3346 = vunpack.c.l.b16 %v3218
      %v3347 = vunpack.c.l.b16 %v3219
      %v3348 = vunpack.c.l.b16 %v3220
      %v3349 = vunpack.c.l.b16 %v3221
      %v3350 = vunpack.c.l.b16 %v3222
      %v3351 = vunpack.c.l.b16 %v3223
      %v3352 = vunpack.c.l.b16 %v3224
      %v3353 = vunpack.c.l.b16 %v3225
      %v3354 = vunpack.c.l.b16 %v3226
      %v3355 = vunpack.c.l.b16 %v3227
      %v3356 = vunpack.c.l.b16 %v3228
      %v3357 = vunpack.c.l.b16 %v3229
      %v3358 = vunpack.c.l.b16 %v3230
      %v3359 = vunpack.c.l.b16 %v3231
      %v3360 = vunpack.c.l.b16 %v3232
      %v3361 = vunpack.c.l.b16 %v3233
      %v3362 = vunpack.c.l.b16 %v3234
      %v3363 = vunpack.c.l.b16 %v3235
      %v3364 = vunpack.c.l.b16 %v3236
      %v3365 = vunpack.c.l.b16 %v3237
      %v3366 = vunpack.c.l.b16 %v3238
      %v3367 = vunpack.c.l.b16 %v3239
      %v3368 = vunpack.c.l.b16 %v3240
      %v3369 = vunpack.c.l.b16 %v3241
      %v3370 = vunpack.c.l.b16 %v3242
      %v3371 = vunpack.c.l.b16 %v3243
      %v3372 = vunpack.c.l.b16 %v3244
      %v3373 = vunpack.c.l.b16 %v3245
      %v3374 = vunpack.c.l.b16 %v3246
      %v3375 = vunpack.c.l.b16 %v3247
      %v3376 = vunpack.c.l.b16 %v3248
      %v3377 = vunpack.c.l.b16 %v3249
      %v3378 = vunpack.c.l.b16 %v3250
      %v3379 = vunpack.c.l.b16 %v3251
      %v3380 = vunpack.c.l.b16 %v3252
      %v3381 = vunpack.c.l.b16 %v3253
      %v3382 = vunpack.c.l.b16 %v3254
      %v3383 = vunpack.c.l.b16 %v3255
      %v3384 = vunpack.c.l.b16 %v3256
      %v3385 = vunpack.c.l.b16 %v3257
      %v3386 = vunpack.c.l.b16 %v3258
      %v3387 = vunpack.c.l.b16 %v3259
      %v3388 = vunpack.c.l.b16 %v3260
      %v3389 = vunpack.c.l.b16 %v3261
      %v3390 = vunpack.c.l.b16 %v3262
      %v3391 = vunpack.c.l.b16 %v3263
      %v3392 = vunpack.c.l.b16 %v3264
      %v3393 = vunpack.c.l.b16 %v3265
      %v3394 = vunpack.c.l.b16 %v3266
      %v3395 = vunpack.c.l.b16 %v3267
      %v3396 = vunpack.c.l.b16 %v3268
      %v3397 = vunpack.c.l.b16 %v3269
      %v3398 = vunpack.c.l.b16 %v3270
      %v3399 = vunpack.c.l.b16 %v3271
      %v3400 = vpack.c.b16 %v3337, %v3336
      %v3401 = vpack.c.b16 %v3339, %v3338
      %v3402 = vpack.c.b16 %v3341, %v3340
      %v3403 = vpack.c.b16 %v3343, %v3342
      %v3404 = vpack.c.b16 %v3345, %v3344
      %v3405 = vpack.c.b16 %v3347, %v3346
      %v3406 = vpack.c.b16 %v3349, %v3348
      %v3407 = vpack.c.b16 %v3351, %v3350
      %v3408 = vpack.c.b16 %v3353, %v3352
      %v3409 = vpack.c.b16 %v3355, %v3354
      %v3410 = vpack.c.b16 %v3357, %v3356
      %v3411 = vpack.c.b16 %v3359, %v3358
      %v3412 = vpack.c.b16 %v3361, %v3360
      %v3413 = vpack.c.b16 %v3363, %v3362
      %v3414 = vpack.c.b16 %v3365, %v3364
      %v3415 = vpack.c.b16 %v3367, %v3366
      %v3416 = vpack.c.b16 %v3369, %v3368
      %v3417 = vpack.c.b16 %v3371, %v3370
      %v3418 = vpack.c.b16 %v3373, %v3372
      %v3419 = vpack.c.b16 %v3375, %v3374
      %v3420 = vpack.c.b16 %v3377, %v3376
      %v3421 = vpack.c.b16 %v3379, %v3378
      %v3422 = vpack.c.b16 %v3381, %v3380
      %v3423 = vpack.c.b16 %v3383, %v3382
      %v3424 = vpack.c.b16 %v3385, %v3384
      %v3425 = vpack.c.b16 %v3387, %v3386
      %v3426 = vpack.c.b16 %v3389, %v3388
      %v3427 = vpack.c.b16 %v3391, %v3390
      %v3428 = vpack.c.b16 %v3393, %v3392
      %v3429 = vpack.c.b16 %v3395, %v3394
      %v3430 = vpack.c.b16 %v3397, %v3396
      %v3431 = vpack.c.b16 %v3399, %v3398
      %3464 = vmatprep.subr.bf16.mxu0 0
      %3465 = vmatpush1.bf16.msra.mxu0 %v3400
      %3466 = vmatprep.subr.bf16.mxu0 0
      %3467 = vmatpush1.bf16.msra.mxu0 %v3401
      %3468 = vmatprep.subr.bf16.mxu0 0
      %3469 = vmatpush1.bf16.msra.mxu0 %v3402
      %3470 = vmatprep.subr.bf16.mxu0 0
      %3471 = vmatpush1.bf16.msra.mxu0 %v3403
      %3472 = vmatprep.subr.bf16.mxu0 0
      %3473 = vmatpush1.bf16.msra.mxu0 %v3404
      %3474 = vmatprep.subr.bf16.mxu0 0
      %3475 = vmatpush1.bf16.msra.mxu0 %v3405
      %3476 = vmatprep.subr.bf16.mxu0 0
      %3477 = vmatpush1.bf16.msra.mxu0 %v3406
      %3478 = vmatprep.subr.bf16.mxu0 0
      %3479 = vmatpush1.bf16.msra.mxu0 %v3407
      %3480 = vmatprep.subr.bf16.mxu0 0
      %3481 = vmatpush1.bf16.msra.mxu0 %v3408
      %3482 = vmatprep.subr.bf16.mxu0 0
      %3483 = vmatpush1.bf16.msra.mxu0 %v3409
      %3484 = vmatprep.subr.bf16.mxu0 0
      %3485 = vmatpush1.bf16.msra.mxu0 %v3410
      %3486 = vmatprep.subr.bf16.mxu0 0
      %3487 = vmatpush1.bf16.msra.mxu0 %v3411
      %3488 = vmatprep.subr.bf16.mxu0 0
      %3489 = vmatpush1.bf16.msra.mxu0 %v3412
      %3490 = vmatprep.subr.bf16.mxu0 0
      %3491 = vmatpush1.bf16.msra.mxu0 %v3413
      %3492 = vmatprep.subr.bf16.mxu0 0
      %3493 = vmatpush1.bf16.msra.mxu0 %v3414
      %3494 = vmatprep.subr.bf16.mxu0 0
      %3495 = vmatpush1.bf16.msra.mxu0 %v3415
      %3496 = vmatprep.mubr.bf16.mxu0 %v3205
      %3497 = vmatmul.mubr.bf16.gmra.mrb[0].mxu0 %v3204
      %v3498 = vpop.f32.mrb[0].mxu0
      %v3499 = vadd.f32 0.0, %v3498
      %v3500 = vpop.f32.mrb[0].mxu0
      %v3501 = vpop.f32.mrb[0].mxu0
      %v3502 = vadd.f32 0.0, %v3501
      %v3503 = vpop.f32.mrb[0].mxu0
      %3504 = vdwg.mxu0
      %3505 = vmatprep.subr.bf16.mxu0 0
      %3506 = vmatpush1.bf16.msra.mxu0 %v3416
      %3507 = vmatprep.subr.bf16.mxu0 0
      %3508 = vmatpush1.bf16.msra.mxu0 %v3417
      %3509 = vmatprep.subr.bf16.mxu0 0
      %3510 = vmatpush1.bf16.msra.mxu0 %v3418
      %3511 = vmatprep.subr.bf16.mxu0 0
      %3512 = vmatpush1.bf16.msra.mxu0 %v3419
      %3513 = vmatprep.subr.bf16.mxu0 0
      %3514 = vmatpush1.bf16.msra.mxu0 %v3420
      %3515 = vmatprep.subr.bf16.mxu0 0
      %3516 = vmatpush1.bf16.msra.mxu0 %v3421
      %3517 = vmatprep.subr.bf16.mxu0 0
      %3518 = vmatpush1.bf16.msra.mxu0 %v3422
      %3519 = vmatprep.subr.bf16.mxu0 0
      %3520 = vmatpush1.bf16.msra.mxu0 %v3423
      %3521 = vmatprep.subr.bf16.mxu0 0
      %3522 = vmatpush1.bf16.msra.mxu0 %v3424
      %3523 = vmatprep.subr.bf16.mxu0 0
      %3524 = vmatpush1.bf16.msra.mxu0 %v3425
      %3525 = vmatprep.subr.bf16.mxu0 0
      %3526 = vmatpush1.bf16.msra.mxu0 %v3426
      %3527 = vmatprep.subr.bf16.mxu0 0
      %3528 = vmatpush1.bf16.msra.mxu0 %v3427
      %3529 = vmatprep.subr.bf16.mxu0 0
      %3530 = vmatpush1.bf16.msra.mxu0 %v3428
      %3531 = vmatprep.subr.bf16.mxu0 0
      %3532 = vmatpush1.bf16.msra.mxu0 %v3429
      %3533 = vmatprep.subr.bf16.mxu0 0
      %3534 = vmatpush1.bf16.msra.mxu0 %v3430
      %3535 = vmatprep.subr.bf16.mxu0 0
      %3536 = vmatpush1.bf16.msra.mxu0 %v3431
      %3537 = vmatprep.mubr.bf16.mxu0 %v3207
      %3538 = vmatmul.mubr.bf16.gmra.mrb[0].mxu0 %v3206
      %v3539 = vpop.f32.mrb[0].mxu0
      %v3540 = vadd.f32 %v3499, %v3539
      %v3541 = vpop.f32.mrb[0].mxu0
      %v3542 = vpop.f32.mrb[0].mxu0
      %v3543 = vadd.f32 %v3502, %v3542
      %v3544 = vpop.f32.mrb[0].mxu0
      %3545 = vdwg.mxu0
      %v3546 = vadd.f32 %v3034, %v3540
      %v3547 = vadd.f32 %v3037, %v3543
      %v3548 = vld [vmem:[%s578 + $0x30] sm:$0xff]
      %v3549 = vld [vmem:[%s578 + $0x38] sm:$0xff]
      %v3550 = vld [vmem:[%s578 + $0x70] sm:$0xff]
      %v3551 = vld [vmem:[%s578 + $0x78] sm:$0xff]
      %v3552 = vld [vmem:[%s578 + $0xb0] sm:$0xff]
      %v3553 = vld [vmem:[%s578 + $0xb8] sm:$0xff]
      %v3554 = vld [vmem:[%s578 + $0xf0] sm:$0xff]
      %v3555 = vld [vmem:[%s578 + $0xf8] sm:$0xff]
      %v3556 = vld [vmem:[%s582 + $0xc] sm:$0xf]
      %v3558 = vlaneseq
      %v3559 = vshrl.u32 %v3558, 7
      %v3560 = vsub.s32 0, %v3559
      %v3561 = vrot.slane %v3556, %v3560
      %v3562 = vlaneseq
      %v3563 = vshrl.u32 %v3562, 7
      %v3564 = vsub.s32 1, %v3563
      %v3565 = vrot.slane %v3556, %v3564
      %v3566 = vlaneseq
      %v3567 = vshrl.u32 %v3566, 7
      %v3568 = vsub.s32 2, %v3567
      %v3569 = vrot.slane %v3556, %v3568
      %v3570 = vlaneseq
      %v3571 = vshrl.u32 %v3570, 7
      %v3572 = vsub.s32 3, %v3571
      %v3573 = vrot.slane %v3556, %v3572
      %v3586 = vunpack.c.l.b16 %v3548
      %v3587 = vunpack.c.h.b16 %v3548
      %v3588 = vunpack.c.l.b16 %v3549
      %v3589 = vunpack.c.h.b16 %v3549
      %v3590 = vunpack.c.l.b16 %v3550
      %v3591 = vunpack.c.h.b16 %v3550
      %v3592 = vunpack.c.l.b16 %v3551
      %v3593 = vunpack.c.h.b16 %v3551
      %v3594 = vunpack.c.l.b16 %v3552
      %v3595 = vunpack.c.h.b16 %v3552
      %v3596 = vunpack.c.l.b16 %v3553
      %v3597 = vunpack.c.h.b16 %v3553
      %v3598 = vunpack.c.l.b16 %v3554
      %v3599 = vunpack.c.h.b16 %v3554
      %v3600 = vunpack.c.l.b16 %v3555
      %v3601 = vunpack.c.h.b16 %v3555
      %v3602 = vpack.c.b16 %v3590, %v3586
      %v3603 = vpack.c.b16 %v3591, %v3587
      %v3604 = vpack.c.b16 %v3592, %v3588
      %v3605 = vpack.c.b16 %v3593, %v3589
      %v3606 = vpack.c.b16 %v3598, %v3594
      %v3607 = vpack.c.b16 %v3599, %v3595
      %v3608 = vpack.c.b16 %v3600, %v3596
      %v3609 = vpack.c.b16 %v3601, %v3597
      %3618 = vmatprep.subr.bf16.mxu0 %v3603
      %3619 = vmatpush1.bf16.msra.mxu0 %v3602
      %3620 = vmatprep.subr.bf16.mxu0 %v3607
      %3621 = vmatpush1.bf16.msra.mxu0 %v3606
      %3622 = vmatprep.subr.bf16.mxu0 0
      %3623 = vmatpush1.bf16.msra.mxu0 0
      %3624 = vmatprep.subr.bf16.mxu0 0
      %3625 = vmatpush1.bf16.msra.mxu0 0
      %3626 = vmatprep.subr.bf16.mxu0 0
      %3627 = vmatpush1.bf16.msra.mxu0 0
      %3628 = vmatprep.subr.bf16.mxu0 0
      %3629 = vmatpush1.bf16.msra.mxu0 0
      %3630 = vmatprep.subr.bf16.mxu0 0
      %3631 = vmatpush1.bf16.msra.mxu0 0
      %3632 = vmatprep.subr.bf16.mxu0 0
      %3633 = vmatpush1.bf16.msra.mxu0 0
      %3634 = vmatprep.subr.bf16.mxu0 0
      %3635 = vmatpush1.bf16.msra.mxu0 0
      %3636 = vmatprep.subr.bf16.mxu0 0
      %3637 = vmatpush1.bf16.msra.mxu0 0
      %3638 = vmatprep.subr.bf16.mxu0 0
      %3639 = vmatpush1.bf16.msra.mxu0 0
      %3640 = vmatprep.subr.bf16.mxu0 0
      %3641 = vmatpush1.bf16.msra.mxu0 0
      %3642 = vmatprep.subr.bf16.mxu0 0
      %3643 = vmatpush1.bf16.msra.mxu0 0
      %3644 = vmatprep.subr.bf16.mxu0 0
      %3645 = vmatpush1.bf16.msra.mxu0 0
      %3646 = vmatprep.subr.bf16.mxu0 0
      %3647 = vmatpush1.bf16.msra.mxu0 0
      %3648 = vmatprep.subr.bf16.mxu0 0
      %3649 = vmatpush1.bf16.msra.mxu0 0
      %3650 = vmatprep.mubr.bf16.mxu0 0
      %3651 = vmatmul.mubr.bf16.gmra.mrb[0].mxu0 %v2096
      %v3652 = vpop.f32.mrb[0].mxu0
      %v3653 = vadd.f32 %v3561, %v3652
      %v3654 = vpop.f32.mrb[0].mxu0
      %v3655 = vadd.f32 %v3565, %v3654
      %v3656 = vpop.f32.mrb[0].mxu0
      %v3657 = vadd.f32 %v3561, %v3656
      %v3658 = vpop.f32.mrb[0].mxu0
      %v3659 = vadd.f32 %v3565, %v3658
      %3660 = vdwg.mxu0
      %3661 = vmatprep.subr.bf16.mxu0 %v3605
      %3662 = vmatpush1.bf16.msra.mxu0 %v3604
      %3663 = vmatprep.subr.bf16.mxu0 %v3609
      %3664 = vmatpush1.bf16.msra.mxu0 %v3608
      %3665 = vmatprep.subr.bf16.mxu0 0
      %3666 = vmatpush1.bf16.msra.mxu0 0
      %3667 = vmatprep.subr.bf16.mxu0 0
      %3668 = vmatpush1.bf16.msra.mxu0 0
      %3669 = vmatprep.subr.bf16.mxu0 0
      %3670 = vmatpush1.bf16.msra.mxu0 0
      %3671 = vmatprep.subr.bf16.mxu0 0
      %3672 = vmatpush1.bf16.msra.mxu0 0
      %3673 = vmatprep.subr.bf16.mxu0 0
      %3674 = vmatpush1.bf16.msra.mxu0 0
      %3675 = vmatprep.subr.bf16.mxu0 0
      %3676 = vmatpush1.bf16.msra.mxu0 0
      %3677 = vmatprep.subr.bf16.mxu0 0
      %3678 = vmatpush1.bf16.msra.mxu0 0
      %3679 = vmatprep.subr.bf16.mxu0 0
      %3680 = vmatpush1.bf16.msra.mxu0 0
      %3681 = vmatprep.subr.bf16.mxu0 0
      %3682 = vmatpush1.bf16.msra.mxu0 0
      %3683 = vmatprep.subr.bf16.mxu0 0
      %3684 = vmatpush1.bf16.msra.mxu0 0
      %3685 = vmatprep.subr.bf16.mxu0 0
      %3686 = vmatpush1.bf16.msra.mxu0 0
      %3687 = vmatprep.subr.bf16.mxu0 0
      %3688 = vmatpush1.bf16.msra.mxu0 0
      %3689 = vmatprep.subr.bf16.mxu0 0
      %3690 = vmatpush1.bf16.msra.mxu0 0
      %3691 = vmatprep.subr.bf16.mxu0 0
      %3692 = vmatpush1.bf16.msra.mxu0 0
      %3693 = vmatprep.mubr.bf16.mxu0 0
      %3694 = vmatmul.mubr.bf16.gmra.mrb[0].mxu0 %v2096
      %v3695 = vpop.f32.mrb[0].mxu0
      %v3696 = vadd.f32 %v3569, %v3695
      %v3697 = vpop.f32.mrb[0].mxu0
      %v3698 = vadd.f32 %v3573, %v3697
      %v3699 = vpop.f32.mrb[0].mxu0
      %v3700 = vadd.f32 %v3569, %v3699
      %v3701 = vpop.f32.mrb[0].mxu0
      %v3702 = vadd.f32 %v3573, %v3701
      %3703 = vdwg.mxu0
      %v3704 = vmax.f32 %v3653, 0.0
      %v3705 = vmax.f32 %v3655, 0.0
      %v3706 = vmax.f32 %v3696, 0.0
      %v3707 = vmax.f32 %v3698, 0.0
      %v3708 = vmax.f32 %v3657, 0.0
      %v3709 = vmax.f32 %v3659, 0.0
      %v3710 = vmax.f32 %v3700, 0.0
      %v3711 = vmax.f32 %v3702, 0.0
      %v3712 = vpack.c.bf16 %v3708, %v3704
      %v3713 = vpack.c.bf16 %v3709, %v3705
      %v3714 = vpack.c.bf16 %v3710, %v3706
      %v3715 = vpack.c.bf16 %v3711, %v3707
      %v3716 = vld [vmem:[%s587 + $0x300] sm:$0xf]
      %v3717 = vld [vmem:[%s587 + $0x304] sm:$0xf]
      %v3718 = vld [vmem:[%s587 + $0x308] sm:$0xf]
      %v3719 = vld [vmem:[%s587 + $0x30c] sm:$0xf]
      %v3720 = vld [vmem:[%s587 + $0x310] sm:$0xf]
      %v3721 = vld [vmem:[%s587 + $0x314] sm:$0xf]
      %v3722 = vld [vmem:[%s587 + $0x318] sm:$0xf]
      %v3723 = vld [vmem:[%s587 + $0x31c] sm:$0xf]
      %v3724 = vld [vmem:[%s587 + $0x320] sm:$0xf]
      %v3725 = vld [vmem:[%s587 + $0x324] sm:$0xf]
      %v3726 = vld [vmem:[%s587 + $0x328] sm:$0xf]
      %v3727 = vld [vmem:[%s587 + $0x32c] sm:$0xf]
      %v3728 = vld [vmem:[%s587 + $0x330] sm:$0xf]
      %v3729 = vld [vmem:[%s587 + $0x334] sm:$0xf]
      %v3730 = vld [vmem:[%s587 + $0x338] sm:$0xf]
      %v3731 = vld [vmem:[%s587 + $0x33c] sm:$0xf]
      %v3732 = vld [vmem:[%s587 + $0x340] sm:$0xf]
      %v3733 = vld [vmem:[%s587 + $0x344] sm:$0xf]
      %v3734 = vld [vmem:[%s587 + $0x348] sm:$0xf]
      %v3735 = vld [vmem:[%s587 + $0x34c] sm:$0xf]
      %v3736 = vld [vmem:[%s587 + $0x350] sm:$0xf]
      %v3737 = vld [vmem:[%s587 + $0x354] sm:$0xf]
      %v3738 = vld [vmem:[%s587 + $0x358] sm:$0xf]
      %v3739 = vld [vmem:[%s587 + $0x35c] sm:$0xf]
      %v3740 = vld [vmem:[%s587 + $0x360] sm:$0xf]
      %v3741 = vld [vmem:[%s587 + $0x364] sm:$0xf]
      %v3742 = vld [vmem:[%s587 + $0x368] sm:$0xf]
      %v3743 = vld [vmem:[%s587 + $0x36c] sm:$0xf]
      %v3744 = vld [vmem:[%s587 + $0x370] sm:$0xf]
      %v3745 = vld [vmem:[%s587 + $0x374] sm:$0xf]
      %v3746 = vld [vmem:[%s587 + $0x378] sm:$0xf]
      %v3747 = vld [vmem:[%s587 + $0x37c] sm:$0xf]
      %v3748 = vld [vmem:[%s587 + $0x380] sm:$0xf]
      %v3749 = vld [vmem:[%s587 + $0x384] sm:$0xf]
      %v3750 = vld [vmem:[%s587 + $0x388] sm:$0xf]
      %v3751 = vld [vmem:[%s587 + $0x38c] sm:$0xf]
      %v3752 = vld [vmem:[%s587 + $0x390] sm:$0xf]
      %v3753 = vld [vmem:[%s587 + $0x394] sm:$0xf]
      %v3754 = vld [vmem:[%s587 + $0x398] sm:$0xf]
      %v3755 = vld [vmem:[%s587 + $0x39c] sm:$0xf]
      %v3756 = vld [vmem:[%s587 + $0x3a0] sm:$0xf]
      %v3757 = vld [vmem:[%s587 + $0x3a4] sm:$0xf]
      %v3758 = vld [vmem:[%s587 + $0x3a8] sm:$0xf]
      %v3759 = vld [vmem:[%s587 + $0x3ac] sm:$0xf]
      %v3760 = vld [vmem:[%s587 + $0x3b0] sm:$0xf]
      %v3761 = vld [vmem:[%s587 + $0x3b4] sm:$0xf]
      %v3762 = vld [vmem:[%s587 + $0x3b8] sm:$0xf]
      %v3763 = vld [vmem:[%s587 + $0x3bc] sm:$0xf]
      %v3764 = vld [vmem:[%s587 + $0x3c0] sm:$0xf]
      %v3765 = vld [vmem:[%s587 + $0x3c4] sm:$0xf]
      %v3766 = vld [vmem:[%s587 + $0x3c8] sm:$0xf]
      %v3767 = vld [vmem:[%s587 + $0x3cc] sm:$0xf]
      %v3768 = vld [vmem:[%s587 + $0x3d0] sm:$0xf]
      %v3769 = vld [vmem:[%s587 + $0x3d4] sm:$0xf]
      %v3770 = vld [vmem:[%s587 + $0x3d8] sm:$0xf]
      %v3771 = vld [vmem:[%s587 + $0x3dc] sm:$0xf]
      %v3772 = vld [vmem:[%s587 + $0x3e0] sm:$0xf]
      %v3773 = vld [vmem:[%s587 + $0x3e4] sm:$0xf]
      %v3774 = vld [vmem:[%s587 + $0x3e8] sm:$0xf]
      %v3775 = vld [vmem:[%s587 + $0x3ec] sm:$0xf]
      %v3776 = vld [vmem:[%s587 + $0x3f0] sm:$0xf]
      %v3777 = vld [vmem:[%s587 + $0x3f4] sm:$0xf]
      %v3778 = vld [vmem:[%s587 + $0x3f8] sm:$0xf]
      %v3779 = vld [vmem:[%s587 + $0x3fc] sm:$0xf]
      %v3844 = vunpack.c.l.b16 %v3716
      %v3845 = vunpack.c.l.b16 %v3717
      %v3846 = vunpack.c.l.b16 %v3718
      %v3847 = vunpack.c.l.b16 %v3719
      %v3848 = vunpack.c.l.b16 %v3720
      %v3849 = vunpack.c.l.b16 %v3721
      %v3850 = vunpack.c.l.b16 %v3722
      %v3851 = vunpack.c.l.b16 %v3723
      %v3852 = vunpack.c.l.b16 %v3724
      %v3853 = vunpack.c.l.b16 %v3725
      %v3854 = vunpack.c.l.b16 %v3726
      %v3855 = vunpack.c.l.b16 %v3727
      %v3856 = vunpack.c.l.b16 %v3728
      %v3857 = vunpack.c.l.b16 %v3729
      %v3858 = vunpack.c.l.b16 %v3730
      %v3859 = vunpack.c.l.b16 %v3731
      %v3860 = vunpack.c.l.b16 %v3732
      %v3861 = vunpack.c.l.b16 %v3733
      %v3862 = vunpack.c.l.b16 %v3734
      %v3863 = vunpack.c.l.b16 %v3735
      %v3864 = vunpack.c.l.b16 %v3736
      %v3865 = vunpack.c.l.b16 %v3737
      %v3866 = vunpack.c.l.b16 %v3738
      %v3867 = vunpack.c.l.b16 %v3739
      %v3868 = vunpack.c.l.b16 %v3740
      %v3869 = vunpack.c.l.b16 %v3741
      %v3870 = vunpack.c.l.b16 %v3742
      %v3871 = vunpack.c.l.b16 %v3743
      %v3872 = vunpack.c.l.b16 %v3744
      %v3873 = vunpack.c.l.b16 %v3745
      %v3874 = vunpack.c.l.b16 %v3746
      %v3875 = vunpack.c.l.b16 %v3747
      %v3876 = vunpack.c.l.b16 %v3748
      %v3877 = vunpack.c.l.b16 %v3749
      %v3878 = vunpack.c.l.b16 %v3750
      %v3879 = vunpack.c.l.b16 %v3751
      %v3880 = vunpack.c.l.b16 %v3752
      %v3881 = vunpack.c.l.b16 %v3753
      %v3882 = vunpack.c.l.b16 %v3754
      %v3883 = vunpack.c.l.b16 %v3755
      %v3884 = vunpack.c.l.b16 %v3756
      %v3885 = vunpack.c.l.b16 %v3757
      %v3886 = vunpack.c.l.b16 %v3758
      %v3887 = vunpack.c.l.b16 %v3759
      %v3888 = vunpack.c.l.b16 %v3760
      %v3889 = vunpack.c.l.b16 %v3761
      %v3890 = vunpack.c.l.b16 %v3762
      %v3891 = vunpack.c.l.b16 %v3763
      %v3892 = vunpack.c.l.b16 %v3764
      %v3893 = vunpack.c.l.b16 %v3765
      %v3894 = vunpack.c.l.b16 %v3766
      %v3895 = vunpack.c.l.b16 %v3767
      %v3896 = vunpack.c.l.b16 %v3768
      %v3897 = vunpack.c.l.b16 %v3769
      %v3898 = vunpack.c.l.b16 %v3770
      %v3899 = vunpack.c.l.b16 %v3771
      %v3900 = vunpack.c.l.b16 %v3772
      %v3901 = vunpack.c.l.b16 %v3773
      %v3902 = vunpack.c.l.b16 %v3774
      %v3903 = vunpack.c.l.b16 %v3775
      %v3904 = vunpack.c.l.b16 %v3776
      %v3905 = vunpack.c.l.b16 %v3777
      %v3906 = vunpack.c.l.b16 %v3778
      %v3907 = vunpack.c.l.b16 %v3779
      %v3908 = vpack.c.b16 %v3845, %v3844
      %v3909 = vpack.c.b16 %v3847, %v3846
      %v3910 = vpack.c.b16 %v3849, %v3848
      %v3911 = vpack.c.b16 %v3851, %v3850
      %v3912 = vpack.c.b16 %v3853, %v3852
      %v3913 = vpack.c.b16 %v3855, %v3854
      %v3914 = vpack.c.b16 %v3857, %v3856
      %v3915 = vpack.c.b16 %v3859, %v3858
      %v3916 = vpack.c.b16 %v3861, %v3860
      %v3917 = vpack.c.b16 %v3863, %v3862
      %v3918 = vpack.c.b16 %v3865, %v3864
      %v3919 = vpack.c.b16 %v3867, %v3866
      %v3920 = vpack.c.b16 %v3869, %v3868
      %v3921 = vpack.c.b16 %v3871, %v3870
      %v3922 = vpack.c.b16 %v3873, %v3872
      %v3923 = vpack.c.b16 %v3875, %v3874
      %v3924 = vpack.c.b16 %v3877, %v3876
      %v3925 = vpack.c.b16 %v3879, %v3878
      %v3926 = vpack.c.b16 %v3881, %v3880
      %v3927 = vpack.c.b16 %v3883, %v3882
      %v3928 = vpack.c.b16 %v3885, %v3884
      %v3929 = vpack.c.b16 %v3887, %v3886
      %v3930 = vpack.c.b16 %v3889, %v3888
      %v3931 = vpack.c.b16 %v3891, %v3890
      %v3932 = vpack.c.b16 %v3893, %v3892
      %v3933 = vpack.c.b16 %v3895, %v3894
      %v3934 = vpack.c.b16 %v3897, %v3896
      %v3935 = vpack.c.b16 %v3899, %v3898
      %v3936 = vpack.c.b16 %v3901, %v3900
      %v3937 = vpack.c.b16 %v3903, %v3902
      %v3938 = vpack.c.b16 %v3905, %v3904
      %v3939 = vpack.c.b16 %v3907, %v3906
      %3972 = vmatprep.subr.bf16.mxu0 0
      %3973 = vmatpush1.bf16.msra.mxu0 %v3908
      %3974 = vmatprep.subr.bf16.mxu0 0
      %3975 = vmatpush1.bf16.msra.mxu0 %v3909
      %3976 = vmatprep.subr.bf16.mxu0 0
      %3977 = vmatpush1.bf16.msra.mxu0 %v3910
      %3978 = vmatprep.subr.bf16.mxu0 0
      %3979 = vmatpush1.bf16.msra.mxu0 %v3911
      %3980 = vmatprep.subr.bf16.mxu0 0
      %3981 = vmatpush1.bf16.msra.mxu0 %v3912
      %3982 = vmatprep.subr.bf16.mxu0 0
      %3983 = vmatpush1.bf16.msra.mxu0 %v3913
      %3984 = vmatprep.subr.bf16.mxu0 0
      %3985 = vmatpush1.bf16.msra.mxu0 %v3914
      %3986 = vmatprep.subr.bf16.mxu0 0
      %3987 = vmatpush1.bf16.msra.mxu0 %v3915
      %3988 = vmatprep.subr.bf16.mxu0 0
      %3989 = vmatpush1.bf16.msra.mxu0 %v3916
      %3990 = vmatprep.subr.bf16.mxu0 0
      %3991 = vmatpush1.bf16.msra.mxu0 %v3917
      %3992 = vmatprep.subr.bf16.mxu0 0
      %3993 = vmatpush1.bf16.msra.mxu0 %v3918
      %3994 = vmatprep.subr.bf16.mxu0 0
      %3995 = vmatpush1.bf16.msra.mxu0 %v3919
      %3996 = vmatprep.subr.bf16.mxu0 0
      %3997 = vmatpush1.bf16.msra.mxu0 %v3920
      %3998 = vmatprep.subr.bf16.mxu0 0
      %3999 = vmatpush1.bf16.msra.mxu0 %v3921
      %4000 = vmatprep.subr.bf16.mxu0 0
      %4001 = vmatpush1.bf16.msra.mxu0 %v3922
      %4002 = vmatprep.subr.bf16.mxu0 0
      %4003 = vmatpush1.bf16.msra.mxu0 %v3923
      %4004 = vmatprep.mubr.bf16.mxu0 %v3713
      %4005 = vmatmul.mubr.bf16.gmra.mrb[0].mxu0 %v3712
      %v4006 = vpop.f32.mrb[0].mxu0
      %v4007 = vadd.f32 0.0, %v4006
      %v4008 = vpop.f32.mrb[0].mxu0
      %v4009 = vpop.f32.mrb[0].mxu0
      %v4010 = vadd.f32 0.0, %v4009
      %v4011 = vpop.f32.mrb[0].mxu0
      %4012 = vdwg.mxu0
      %4013 = vmatprep.subr.bf16.mxu0 0
      %4014 = vmatpush1.bf16.msra.mxu0 %v3924
      %4015 = vmatprep.subr.bf16.mxu0 0
      %4016 = vmatpush1.bf16.msra.mxu0 %v3925
      %4017 = vmatprep.subr.bf16.mxu0 0
      %4018 = vmatpush1.bf16.msra.mxu0 %v3926
      %4019 = vmatprep.subr.bf16.mxu0 0
      %4020 = vmatpush1.bf16.msra.mxu0 %v3927
      %4021 = vmatprep.subr.bf16.mxu0 0
      %4022 = vmatpush1.bf16.msra.mxu0 %v3928
      %4023 = vmatprep.subr.bf16.mxu0 0
      %4024 = vmatpush1.bf16.msra.mxu0 %v3929
      %4025 = vmatprep.subr.bf16.mxu0 0
      %4026 = vmatpush1.bf16.msra.mxu0 %v3930
      %4027 = vmatprep.subr.bf16.mxu0 0
      %4028 = vmatpush1.bf16.msra.mxu0 %v3931
      %4029 = vmatprep.subr.bf16.mxu0 0
      %4030 = vmatpush1.bf16.msra.mxu0 %v3932
      %4031 = vmatprep.subr.bf16.mxu0 0
      %4032 = vmatpush1.bf16.msra.mxu0 %v3933
      %4033 = vmatprep.subr.bf16.mxu0 0
      %4034 = vmatpush1.bf16.msra.mxu0 %v3934
      %4035 = vmatprep.subr.bf16.mxu0 0
      %4036 = vmatpush1.bf16.msra.mxu0 %v3935
      %4037 = vmatprep.subr.bf16.mxu0 0
      %4038 = vmatpush1.bf16.msra.mxu0 %v3936
      %4039 = vmatprep.subr.bf16.mxu0 0
      %4040 = vmatpush1.bf16.msra.mxu0 %v3937
      %4041 = vmatprep.subr.bf16.mxu0 0
      %4042 = vmatpush1.bf16.msra.mxu0 %v3938
      %4043 = vmatprep.subr.bf16.mxu0 0
      %4044 = vmatpush1.bf16.msra.mxu0 %v3939
      %4045 = vmatprep.mubr.bf16.mxu0 %v3715
      %4046 = vmatmul.mubr.bf16.gmra.mrb[0].mxu0 %v3714
      %v4047 = vpop.f32.mrb[0].mxu0
      %v4048 = vadd.f32 %v4007, %v4047
      %v4049 = vpop.f32.mrb[0].mxu0
      %v4050 = vpop.f32.mrb[0].mxu0
      %v4051 = vadd.f32 %v4010, %v4050
      %v4052 = vpop.f32.mrb[0].mxu0
      %4053 = vdwg.mxu0
      %v4054 = vadd.f32 %v3546, %v4048
      %v4055 = vadd.f32 %v3547, %v4051
      %v4056 = vld [vmem:[%s573 + $0x3] sm:$0x1]
      %v4057 = vlaneseq
      %v4058 = vshrl.u32 %v4057, 7
      %v4059 = vsub.s32 0, %v4058
      %v4060 = vrot.slane %v4056, %v4059
      %v4061 = vadd.f32 %v4054, %v4060
      %v4062 = vadd.f32 %v4055, %v4060
      %v4063 = vadd.f32 %v2022, %v4061
      %v4064 = vadd.f32 %v2023, %v4062
      %v4065 = vld [vmem:[%s573 + $0x4] sm:$0x1]
      %v4066 = vld [vmem:[%s573 + $0x5] sm:$0x1]
      %v4067 = vsel %vm972, %v4063, 0.0
      %4068 = vadd.xlane.f32.xlu0 %v4067
      %v4069 = vpop.xlane.xlu0 %4068
      %v4070 = vsel %vm972, %v4064, 0.0
      %4071 = vadd.xlane.f32.xlu0 %v4070
      %v4072 = vpop.xlane.xlu0 %4071
      %v4073 = vmul.f32 %v4069, %v1985
      %v4074 = vmul.f32 %v4072, %v1985
      %v4075 = vmul.f32 %v4063, %v4063
      %v4076 = vmul.f32 %v4064, %v4064
      %v4077 = vsel %vm972, %v4075, 0.0
      %4078 = vadd.xlane.f32.xlu0 %v4077
      %v4079 = vpop.xlane.xlu0 %4078
      %v4080 = vsel %vm972, %v4076, 0.0
      %4081 = vadd.xlane.f32.xlu0 %v4080
      %v4082 = vpop.xlane.xlu0 %4081
      %v4083 = vmul.f32 %v4079, %v1985
      %v4084 = vmul.f32 %v4082, %v1985
      %v4085 = vmul.f32 %v4073, %v4073
      %v4086 = vmul.f32 %v4074, %v4074
      %v4087 = vsub.f32 %v4083, %v4085
      %v4088 = vsub.f32 %v4084, %v4086
      %v4089 = vmax.f32 %v4087, 0.0
      %v4090 = vmax.f32 %v4088, 0.0
      %v4091 = vsub.f32 %v4063, %v4073
      %v4092 = vsub.f32 %v4064, %v4074
      %v4093 = vadd.f32 %v4089, 1e-05
      %v4094 = vadd.f32 %v4090, 1e-05
      %v4095 = vrsqrt.pop %v4093
      %v4096 = vrsqrt.pop %v4094
      %v4097 = vmul.f32 %v4091, %v4095
      %v4098 = vmul.f32 %v4092, %v4096
      %v4099 = vlaneseq
      %v4100 = vshrl.u32 %v4099, 7
      %v4101 = vsub.s32 0, %v4100
      %v4102 = vrot.slane %v4065, %v4101
      %v4103 = vmul.f32 %v4097, %v4102
      %v4104 = vmul.f32 %v4098, %v4102
      %v4105 = vlaneseq
      %v4106 = vshrl.u32 %v4105, 7
      %v4107 = vsub.s32 0, %v4106
      %v4108 = vrot.slane %v4066, %v4107
      %v4109 = vadd.f32 %v4103, %v4108
      %v4110 = vadd.f32 %v4104, %v4108
      %4111 = vst.msk [vmem:[#allocation2] sm:$0xff] %vm972, %v4109
      %4112 = vst.msk [vmem:[#allocation2 + $0x8] sm:$0xff] %vm972, %v4110
      %p4113 = scmp.eq.s32.totalorder %s26, 3
      // Predicated region
      $region85: #{transgcn_forward.1} parent=79 // pred_check
        %p4114 = pneg %p4113
      $region86: #{transgcn_forward.1} parent=79 // pred_check_branch
        %4116 = sbr.rel (%p4114) target = $region88
      $region87: #{transgcn_forward.1} parent=79 // pred_region
        %v4117 = vld [vmem:[%s1] sm:$0xff]
        %v4118 = vld [vmem:[%s1 + $0x8] sm:$0xff]
        %v4119 = vld [vmem:[%s6] sm:$0xff]
        %v4120 = vld [vmem:[%s6 + $0x8] sm:$0xff]
        %v4121 = vld [vmem:[%s6 + $0x10] sm:$0xff]
        %v4122 = vld [vmem:[%s6 + $0x18] sm:$0xff]
        %v4124 = vsel %vm972, %v4109, 0
        %v4127 = vsel %vm972, %v4110, 0
        %4129 = vmatprep.subr.mxu0 0.0
        %4130 = vmatpush1.msra.mxu0 %v4119
        %4131 = vmatprep.subr.mxu0 0.0
        %4132 = vmatpush1.msra.mxu0 %v4120
        %4133 = vmatprep.subr.mxu0 0.0
        %4134 = vmatpush1.msra.mxu0 %v4121
        %4135 = vmatprep.subr.mxu0 0.0
        %4136 = vmatpush1.msra.mxu0 %v4122
        %4137 = vmatprep.subr.mxu0 0.0
        %4138 = vmatpush1.msra.mxu0 0.0
        %4139 = vmatprep.subr.mxu0 0.0
        %4140 = vmatpush1.msra.mxu0 0.0
        %4141 = vmatprep.subr.mxu0 0.0
        %4142 = vmatpush1.msra.mxu0 0.0
        %4143 = vmatprep.subr.mxu0 0.0
        %4144 = vmatpush1.msra.mxu0 0.0
        %4145 = vmatprep.subr.mxu0 0.0
        %4146 = vmatpush1.msra.mxu0 0.0
        %4147 = vmatprep.subr.mxu0 0.0
        %4148 = vmatpush1.msra.mxu0 0.0
        %4149 = vmatprep.subr.mxu0 0.0
        %4150 = vmatpush1.msra.mxu0 0.0
        %4151 = vmatprep.subr.mxu0 0.0
        %4152 = vmatpush1.msra.mxu0 0.0
        %4153 = vmatprep.subr.mxu0 0.0
        %4154 = vmatpush1.msra.mxu0 0.0
        %4155 = vmatprep.subr.mxu0 0.0
        %4156 = vmatpush1.msra.mxu0 0.0
        %4157 = vmatprep.subr.mxu0 0.0
        %4158 = vmatpush1.msra.mxu0 0.0
        %4159 = vmatprep.subr.mxu0 0.0
        %4160 = vmatpush1.msra.mxu0 0.0
        %4161 = vmatprep.subr.mxu0 0.0
        %4162 = vmatpush1.msra.mxu0 0.0
        %4163 = vmatprep.subr.mxu0 0.0
        %4164 = vmatpush1.msra.mxu0 0.0
        %4165 = vmatprep.subr.mxu0 0.0
        %4166 = vmatpush1.msra.mxu0 0.0
        %4167 = vmatprep.subr.mxu0 0.0
        %4168 = vmatpush1.msra.mxu0 0.0
        %4169 = vmatprep.subr.mxu0 0.0
        %4170 = vmatpush1.msra.mxu0 0.0
        %4171 = vmatprep.subr.mxu0 0.0
        %4172 = vmatpush1.msra.mxu0 0.0
        %4173 = vmatprep.subr.mxu0 0.0
        %4174 = vmatpush1.msra.mxu0 0.0
        %4175 = vmatprep.subr.mxu0 0.0
        %4176 = vmatpush1.msra.mxu0 0.0
        %4177 = vmatprep.subr.mxu0 0.0
        %4178 = vmatpush1.msra.mxu0 0.0
        %4179 = vmatprep.subr.mxu0 0.0
        %4180 = vmatpush1.msra.mxu0 0.0
        %4181 = vmatprep.subr.mxu0 0.0
        %4182 = vmatpush1.msra.mxu0 0.0
        %4183 = vmatprep.subr.mxu0 0.0
        %4184 = vmatpush1.msra.mxu0 0.0
        %4185 = vmatprep.subr.mxu0 0.0
        %4186 = vmatpush1.msra.mxu0 0.0
        %4187 = vmatprep.subr.mxu0 0.0
        %4188 = vmatpush1.msra.mxu0 0.0
        %4189 = vmatprep.subr.mxu0 0.0
        %4190 = vmatpush1.msra.mxu0 0.0
        %4191 = vmatprep.subr.mxu0 0.0
        %4192 = vmatpush1.msra.mxu0 0.0
        %4193 = vmatprep.mubr.f32.mxu0 0.0
        %4194 = vmatmul.mubr.f32.gmra.mrb[0].mxu0 %v4124
        %v4195 = vpop.f32.mrb[0].mxu0
        %v4196 = vadd.f32 0.0, %v4195
        %v4197 = vpop.f32.mrb[0].mxu0
        %4198 = vmatprep.mubr.f32.mxu0 0.0
        %4199 = vmatmul.mubr.f32.gmra.mrb[0].mxu0 %v4127
        %v4200 = vpop.f32.mrb[0].mxu0
        %v4201 = vadd.f32 0.0, %v4200
        %v4202 = vpop.f32.mrb[0].mxu0
        %4203 = vdwg.mxu0
        %v4204 = vld [vmem:[%s7] sm:$0x1]
        %v4206 = vlaneseq
        %v4207 = vshrl.u32 %v4206, 7
        %v4208 = vsub.s32 0, %v4207
        %v4209 = vrot.slane %v4204, %v4208
        %v4212 = vsel %vm1144, %v4117, 0
        %v4215 = vsel %vm1144, %v4118, 0
        %4217 = vmatprep.subr.mxu0 0.0
        %4218 = vmatpush1.msra.mxu0 %v4196
        %4219 = vmatprep.subr.mxu0 0.0
        %4220 = vmatpush1.msra.mxu0 %v4201
        %4221 = vmatprep.subr.mxu0 0.0
        %4222 = vmatpush1.msra.mxu0 0.0
        %4223 = vmatprep.subr.mxu0 0.0
        %4224 = vmatpush1.msra.mxu0 0.0
        %4225 = vmatprep.subr.mxu0 0.0
        %4226 = vmatpush1.msra.mxu0 0.0
        %4227 = vmatprep.subr.mxu0 0.0
        %4228 = vmatpush1.msra.mxu0 0.0
        %4229 = vmatprep.subr.mxu0 0.0
        %4230 = vmatpush1.msra.mxu0 0.0
        %4231 = vmatprep.subr.mxu0 0.0
        %4232 = vmatpush1.msra.mxu0 0.0
        %4233 = vmatprep.subr.mxu0 0.0
        %4234 = vmatpush1.msra.mxu0 0.0
        %4235 = vmatprep.subr.mxu0 0.0
        %4236 = vmatpush1.msra.mxu0 0.0
        %4237 = vmatprep.subr.mxu0 0.0
        %4238 = vmatpush1.msra.mxu0 0.0
        %4239 = vmatprep.subr.mxu0 0.0
        %4240 = vmatpush1.msra.mxu0 0.0
        %4241 = vmatprep.subr.mxu0 0.0
        %4242 = vmatpush1.msra.mxu0 0.0
        %4243 = vmatprep.subr.mxu0 0.0
        %4244 = vmatpush1.msra.mxu0 0.0
        %4245 = vmatprep.subr.mxu0 0.0
        %4246 = vmatpush1.msra.mxu0 0.0
        %4247 = vmatprep.subr.mxu0 0.0
        %4248 = vmatpush1.msra.mxu0 0.0
        %4249 = vmatprep.subr.mxu0 0.0
        %4250 = vmatpush1.msra.mxu0 0.0
        %4251 = vmatprep.subr.mxu0 0.0
        %4252 = vmatpush1.msra.mxu0 0.0
        %4253 = vmatprep.subr.mxu0 0.0
        %4254 = vmatpush1.msra.mxu0 0.0
        %4255 = vmatprep.subr.mxu0 0.0
        %4256 = vmatpush1.msra.mxu0 0.0
        %4257 = vmatprep.subr.mxu0 0.0
        %4258 = vmatpush1.msra.mxu0 0.0
        %4259 = vmatprep.subr.mxu0 0.0
        %4260 = vmatpush1.msra.mxu0 0.0
        %4261 = vmatprep.subr.mxu0 0.0
        %4262 = vmatpush1.msra.mxu0 0.0
        %4263 = vmatprep.subr.mxu0 0.0
        %4264 = vmatpush1.msra.mxu0 0.0
        %4265 = vmatprep.subr.mxu0 0.0
        %4266 = vmatpush1.msra.mxu0 0.0
        %4267 = vmatprep.subr.mxu0 0.0
        %4268 = vmatpush1.msra.mxu0 0.0
        %4269 = vmatprep.subr.mxu0 0.0
        %4270 = vmatpush1.msra.mxu0 0.0
        %4271 = vmatprep.subr.mxu0 0.0
        %4272 = vmatpush1.msra.mxu0 0.0
        %4273 = vmatprep.subr.mxu0 0.0
        %4274 = vmatpush1.msra.mxu0 0.0
        %4275 = vmatprep.subr.mxu0 0.0
        %4276 = vmatpush1.msra.mxu0 0.0
        %4277 = vmatprep.subr.mxu0 0.0
        %4278 = vmatpush1.msra.mxu0 0.0
        %4279 = vmatprep.subr.mxu0 0.0
        %4280 = vmatpush1.msra.mxu0 0.0
        %4281 = vmatprep.mubr.f32.mxu0 0.0
        %4282 = vmatmul.mubr.f32.gmra.mrb[0].mxu0 %v4212
        %v4283 = vpop.f32.mrb[0].mxu0
        %v4284 = vadd.f32 %v4209, %v4283
        %v4285 = vpop.f32.mrb[0].mxu0
        %4286 = vmatprep.mubr.f32.mxu0 0.0
        %4287 = vmatmul.mubr.f32.gmra.mrb[0].mxu0 %v4215
        %v4288 = vpop.f32.mrb[0].mxu0
        %v4289 = vadd.f32 %v4209, %v4288
        %v4290 = vpop.f32.mrb[0].mxu0
        %4291 = vdwg.mxu0
        %vm4292 = vcmask 31744
        %v4293 = vsel %vm4292, %v4284, -inf
        %4294 = vmax.xlane.f32.xlu0 %v4293
        %v4295 = vpop.xlane.xlu0 %4294
        %v4296 = vsel %vm4292, %v4289, -inf
        %4297 = vmax.xlane.f32.xlu0 %v4296
        %v4298 = vpop.xlane.xlu0 %4297
        %v4299 = vsub.f32 %v4284, %v4295
        %v4300 = vsub.f32 %v4289, %v4298
        %v4301 = vmul.f32 %v4299, 1.442695
        %v4302 = vpow.pop %v4301
        %v4303 = vmul.f32 %v4300, 1.442695
        %v4304 = vpow.pop %v4303
        %v4305 = vsel %vm4292, %v4302, 0.0
        %4306 = vadd.xlane.f32.xlu0 %v4305
        %v4307 = vpop.xlane.xlu0 %4306
        %v4308 = vsel %vm4292, %v4304, 0.0
        %4309 = vadd.xlane.f32.xlu0 %v4308
        %v4310 = vpop.xlane.xlu0 %4309
        %v4311 = vlog2.pop %v4307
        %v4312 = vmul.f32 %v4311, 0.6931472
        %v4313 = vlog2.pop %v4310
        %v4314 = vmul.f32 %v4313, 0.6931472
        %v4315 = vsub.f32 %v4299, %v4312
        %v4316 = vsub.f32 %v4300, %v4314
        %4317 = vst.msk [vmem:[%s15] sm:$0xff] %vm4292, %v4315
        %4318 = vst.msk [vmem:[%s15 + $0x8] sm:$0xff] %vm4292, %v4316
      $region88: #{transgcn_forward.1} parent=79 // pred_fallthru
        _
      // Predicated region
      $region89: #{transgcn_forward.1} parent=79 // pred_check
        %p4319 = pneg %p389
      $region90: #{transgcn_forward.1} parent=79 // pred_check_branch
        %4321 = sbr.rel (%p4319) target = $region92
      $region91: #{transgcn_forward.1} parent=79 // pred_region
        _
      $region92: #{transgcn_forward.1} parent=79 // pred_fallthru
        _
      // Predicated region
      $region93: #{transgcn_forward.1} parent=79 // pred_check
        %p4322 = pneg %p389
      $region94: #{transgcn_forward.1} parent=79 // pred_check_branch
        %4324 = sbr.rel (%p4322) target = $region96
      $region95: #{transgcn_forward.1} parent=79 // pred_region
        _
      $region96: #{transgcn_forward.1} parent=79 // pred_fallthru
        _
    $region80: #{transgcn_forward.1} parent=5 // pred_fallthru
      _
    %p4325 = scmp.le.s32.totalorder 2, %s21
    // Predicated region
    $region97: #{transgcn_forward.1} parent=5 // pred_check
      %p4326 = pneg %p4325
    $region98: #{transgcn_forward.1} parent=5 // pred_check_branch
      %4328 = sbr.rel (%p4326) target = $region100
    $region99: #{transgcn_forward.1} parent=5 // pred_region
      %s4329 = ssub.s32 %s21, 2
    $region100: #{transgcn_forward.1} parent=5 // pred_fallthru
      _
  $region6: #{transgcn_forward.1} parent=0 // loop_footer
    %s25 = sadd.s32 1, %s21
  $region7: #{transgcn_forward.1} parent=0 // loop_footer_branch
    %20 = sbr.rel target = $region3
  $region8: #{transgcn_forward.1} parent=0 // loop_exit
    _

</llo_original>
